<compile_context>
chip_gen: v7x
topology: tpu7x:2x2x1
jax: 0.10.0
libtpu: 0.0.40
codegen_flags: <defaults>
</compile_context>

<pallas_src>
import math
import functools

import jax
import jax.numpy as jnp
from jax import lax
from jax.experimental import pallas as pl
from jax.experimental.pallas import tpu as pltpu


# ------------------------------ fused kernel --------------------------------


def gesture_net_kernel(d_k, K,
                       x_ref, emb_ref,
                       wc_ref, bc_ref,
                       wgi_ref, bgi_ref, wgh_ref, bhn_ref,
                       wbig_ref, bbig_ref, wf2_ref, waw_ref, baw_ref,
                       o_ref, conv_ref, hs_ref):
    """One grid step == one batch element (grid axis marked 'parallel').

    x_ref:    (1, T, Cin)  raw input block for this batch element
    emb_ref:  (1, T, E)    gathered gesture embeddings
    wc_ref:   (K, Cin, Cc) conv weights, one (Cin, Cc) slab per tap; bc: (1, Cc)
    wgi_ref:  (Cc, 3H)     fused GRU input weights [r|z|n];  bgi: (1, 3H)
    wgh_ref:  (H, 3H)      fused GRU hidden weights [r|z|n]; bhn: (1, H)
    wbig_ref: (H, H+3)     [w_fusion | w_agnostic | w_w0 | w_w1]; bbig: (1, H+3)
    wf2_ref:  (E, H)       embedding half of the fusion Linear
    waw_ref:  (H, 1)       aware head;                       baw: (1, 1)
    o_ref:    (1, 1, T)    lane-dense output row
    conv_ref: (T, Cc)      f32 VMEM scratch (conv accumulator)
    hs_ref:   (T, H)       f32 VMEM scratch (GRU hidden states)
    """
    _, T, Cin = x_ref.shape
    H = wgh_ref.shape[0]
    pad = K // 2

    # ---- stage 1: Conv1d('same') + ReLU as K accumulated matmuls -----------
    # conv[t] = sum_k x[t + k - pad] @ Wc[k]; no im2col matrix is built.
    conv_ref[...] = jnp.dot(x_ref[0], wc_ref[pad],
                            preferred_element_type=jnp.float32)
    for k in range(K):
        if k == pad:
            continue
        s = k - pad
        n = T - abs(s)
        if n <= 0:
            continue
        lo_out, lo_in = max(0, -s), max(0, s)
        sl = slice(lo_out, lo_out + n)
        conv_ref[sl, :] = conv_ref[sl, :] + jnp.dot(
            x_ref[0, lo_in:lo_in + n, :], wc_ref[k],
            preferred_element_type=jnp.float32)

    conv = jnp.maximum(conv_ref[...] + bc_ref[...], 0.0)            # (T, Cc)

    # ---- stage 2a: hoisted GRU input projections (t-major) -----------------
    xin = jnp.dot(conv, wgi_ref[...],
                  preferred_element_type=jnp.float32) + bgi_ref[...]  # (T, 3H)

    # ---- stage 2b: GRU recurrence, one fused hidden matmul per step --------
    bhn = bhn_ref[...]                                               # (1, H)
    h = jnp.zeros((1, H), jnp.float32)
    # TODO(synk): for long T switch to lax.fori_loop(..., unroll=4) writing
    # hs_ref each step to bound live ranges / compile time.
    for t in range(T):                                  # static unroll, T small
        xt = xin[t:t + 1, :]                            # contiguous row (1, 3H)
        hp = jnp.dot(h, wgh_ref[...], preferred_element_type=jnp.float32)
        r = jax.nn.sigmoid(xt[:, 0:H] + hp[:, 0:H])
        z = jax.nn.sigmoid(xt[:, H:2 * H] + hp[:, H:2 * H])
        g = jnp.tanh(xt[:, 2 * H:3 * H] + r * (hp[:, 2 * H:3 * H] + bhn))
        h = (1.0 - z) * g + z * h
        hs_ref[t:t + 1, :] = h                          # VMEM scratch row store

    # ---- stage 3: self-attention (exact softmax) ----------------------------
    q = hs_ref[...]                                                  # (T, H)
    scores = lax.dot_general(q, q, (((1,), (1,)), ((), ())),
                             preferred_element_type=jnp.float32)
    scores = scores * (1.0 / math.sqrt(d_k))
    m = jnp.max(scores, axis=-1, keepdims=True)
    e = jnp.exp(scores - m)
    attn = e / jnp.sum(e, axis=-1, keepdims=True)
    attn_out = jnp.dot(attn, q, preferred_element_type=jnp.float32)  # (T, H)

    # ---- stage 4: fused heads (one (H, H+3) matmul) --------------------------
    proj = jnp.dot(attn_out, wbig_ref[...],
                   preferred_element_type=jnp.float32) + bbig_ref[...]  # (T, H+3)
    fus = jnp.maximum(
        proj[:, 0:H] + jnp.dot(emb_ref[0], wf2_ref[...],
                               preferred_element_type=jnp.float32), 0.0)  # (T, H)
    agn = proj[:, H:H + 1]
    l0 = proj[:, H + 1:H + 2]
    l1 = proj[:, H + 2:H + 3]
    awr = jnp.dot(fus, waw_ref[...],
                  preferred_element_type=jnp.float32) + baw_ref[...]      # (T, 1)

    # 2-way blend softmax (exact) and final blend
    mm = jnp.maximum(l0, l1)
    e0 = jnp.exp(l0 - mm)
    e1 = jnp.exp(l1 - mm)
    final = (e0 * agn + e1 * awr) / (e0 + e1)                        # (T, 1)

    # Lane-dense output: turn the (T, 1) column into a (1, T) row via a tiny
    # MXU contraction (same pattern as q@k^T), avoiding an XLU relayout.
    row = lax.dot_general(jnp.ones((1, 1), jnp.float32), final,
                          (((1,), (1,)), ((), ())),
                          preferred_element_type=jnp.float32)        # (1, T)
    o_ref[...] = row[None]                                           # (1, 1, T)


# -------------------------------- wrapper ------------------------------------


def gesture_net_forward(params, x, gesture, *, window_size=5, attn_dim=64):
    assert window_size % 2 == 1, "'same' padding matches reference only for odd K"
    B, T, Cin = x.shape
    K = window_size
    H = params['w_hr'].shape[0]
    Cc = params['conv_w'].shape[0]                   # conv output channels
    E = params['emb'].shape[1]

    # one-time parameter fusion (plain JAX, outside the kernel)
    w_conv = jnp.transpose(params['conv_w'], (2, 1, 0))             # (K, Cin, Cc)
    w_gi = jnp.concatenate([params['w_ir'], params['w_iz'], params['w_in']],
                           axis=1)                                   # (Cc, 3H)
    b_gi = jnp.concatenate([params['b_ir'] + params['b_hr'],
                            params['b_iz'] + params['b_hz'],
                            params['b_in']], axis=1)                 # (1, 3H)
    w_gh = jnp.concatenate([params['w_hr'], params['w_hz'], params['w_hn']],
                           axis=1)                                   # (H, 3H)
    w_big = jnp.concatenate([params['w_f1'], params['w_ag'],
                             params['w_w0'], params['w_w1']], axis=1)  # (H, H+3)
    b_big = jnp.concatenate([params['b_f'], params['b_ag'],
                             params['b_w0'], params['b_w1']], axis=1)  # (1, H+3)

    # embedding lookup (gather) stays in plain JAX
    embed = params['emb'][gesture]                                   # (B, T, E)

    def rep(shape):
        nd = len(shape)
        return pl.BlockSpec(shape, lambda b, nd=nd: (0,) * nd)

    in_specs = [
        pl.BlockSpec((1, T, Cin), lambda b: (b, 0, 0)),   # x
        pl.BlockSpec((1, T, E), lambda b: (b, 0, 0)),     # embed
        rep(w_conv.shape), rep(params['conv_b'].shape),
        rep(w_gi.shape), rep(b_gi.shape),
        rep(w_gh.shape), rep(params['b_hn'].shape),
        rep(w_big.shape), rep(b_big.shape),
        rep(params['w_f2'].shape),
        rep(params['w_aw'].shape), rep(params['b_aw'].shape),
    ]
    out_specs = pl.BlockSpec((1, 1, T), lambda b: (b, 0, 0))

    out = pl.pallas_call(
        functools.partial(gesture_net_kernel, attn_dim, K),
        out_shape=jax.ShapeDtypeStruct((B, 1, T), jnp.float32),
        grid_spec=pltpu.PrefetchScalarGridSpec(
            num_scalar_prefetch=0,
            grid=(B,),                         # one batch element per grid step
            in_specs=in_specs,
            out_specs=out_specs,
            scratch_shapes=[pltpu.VMEM((T, Cc), jnp.float32),   # conv accumulator
                            pltpu.VMEM((T, H), jnp.float32)]),  # GRU hidden states
        compiler_params=pltpu.CompilerParams(
            dimension_semantics=("parallel",)),
    )(x, embed,
      w_conv, params['conv_b'],
      w_gi, b_gi, w_gh, params['b_hn'],
      w_big, b_big, params['w_f2'], params['w_aw'], params['b_aw'])

    return out[:, 0, :]                                              # (B, T)


# --------------------------- pure-JAX reference ------------------------------


def gesture_net_reference(params, x, gesture, *, window_size=5, attn_dim=64):
    K = window_size
    pad = K // 2
    x_nch = jnp.transpose(x, (0, 2, 1))              # (B, Cin, T)
    conv = lax.conv_general_dilated(
        x_nch, params['conv_w'], window_strides=(1,), padding=[(pad, pad)],
        dimension_numbers=('NCH', 'OIH', 'NCH'))
    conv = jnp.maximum(conv + params['conv_b'][0][None, :, None], 0.0)
    xseq = jnp.transpose(conv, (0, 2, 1))            # (B, T, Cc)

    B, T, _ = xseq.shape
    H = params['w_hr'].shape[0]

    def step(h, xt):
        r = jax.nn.sigmoid(xt @ params['w_ir'] + params['b_ir']
                           + h @ params['w_hr'] + params['b_hr'])
        z = jax.nn.sigmoid(xt @ params['w_iz'] + params['b_iz']
                           + h @ params['w_hz'] + params['b_hz'])
        n = jnp.tanh(xt @ params['w_in'] + params['b_in']
                     + r * (h @ params['w_hn'] + params['b_hn']))
        hn = (1.0 - z) * n + z * h
        return hn, hn

    h0 = jnp.zeros((B, H), jnp.float32)
    _, outs = lax.scan(step, h0, jnp.transpose(xseq, (1, 0, 2)))
    gru_out = jnp.transpose(outs, (1, 0, 2))         # (B, T, H)

    scores = jnp.einsum('btd,bsd->bts', gru_out, gru_out) / jnp.sqrt(
        jnp.float32(attn_dim))
    attn = jax.nn.softmax(scores, axis=-1)
    attn_out = jnp.einsum('bts,bsd->btd', attn, gru_out)

    agn = (attn_out @ params['w_ag'] + params['b_ag'])[..., 0]
    embed = params['emb'][gesture]
    fus = jnp.maximum(attn_out @ params['w_f1'] + embed @ params['w_f2']
                      + params['b_f'], 0.0)
    awr = (fus @ params['w_aw'] + params['b_aw'])[..., 0]
    l0 = (attn_out @ params['w_w0'] + params['b_w0'])[..., 0]
    l1 = (attn_out @ params['w_w1'] + params['b_w1'])[..., 0]
    w = jax.nn.softmax(jnp.stack([l0, l1], axis=-1), axis=-1)
    return w[..., 0] * agn + w[..., 1] * awr


# --------------------------------- main --------------------------------------


if __name__ == "__main__":
    B, T = 2, 8
    INPUT_DIM = 64          # small stand-in for the default 2048
    NUM_GESTURES = 15
    WINDOW = 5
    GRU_H = 64
    ATTN_DIM = 64
    EMBED = 32
    CONV_OUT = 128

    key = jax.random.PRNGKey(0)
    ks = list(jax.random.split(key, 32))

    def init(k, shape, scale=0.1):
        return jax.random.normal(k, shape, jnp.float32) * scale

    params = {
        'conv_w': init(ks[0], (CONV_OUT, INPUT_DIM, WINDOW), 0.05),
        'conv_b': init(ks[1], (1, CONV_OUT)),
        'w_ir': init(ks[2], (CONV_OUT, GRU_H)),
        'w_iz': init(ks[3], (CONV_OUT, GRU_H)),
        'w_in': init(ks[4], (CONV_OUT, GRU_H)),
        'w_hr': init(ks[5], (GRU_H, GRU_H)),
        'w_hz': init(ks[6], (GRU_H, GRU_H)),
        'w_hn': init(ks[7], (GRU_H, GRU_H)),
        'b_ir': init(ks[8], (1, GRU_H)),
        'b_iz': init(ks[9], (1, GRU_H)),
        'b_in': init(ks[10], (1, GRU_H)),
        'b_hr': init(ks[11], (1, GRU_H)),
        'b_hz': init(ks[12], (1, GRU_H)),
        'b_hn': init(ks[13], (1, GRU_H)),
        'emb': init(ks[14], (NUM_GESTURES, EMBED), 0.5),
        'w_ag': init(ks[15], (GRU_H, 1)),
        'b_ag': init(ks[16], (1, 1)),
        'w_f1': init(ks[17], (GRU_H, GRU_H)),
        'w_f2': init(ks[18], (EMBED, GRU_H)),
        'b_f': init(ks[19], (1, GRU_H)),
        'w_aw': init(ks[20], (GRU_H, 1)),
        'b_aw': init(ks[21], (1, 1)),
        'w_w0': init(ks[22], (GRU_H, 1)),
        'w_w1': init(ks[23], (GRU_H, 1)),
        'b_w0': init(ks[24], (1, 1)),
        'b_w1': init(ks[25], (1, 1)),
    }

    xk, gk = jax.random.split(ks[31], 2)
    x = jax.random.normal(xk, (B, T, INPUT_DIM), jnp.float32)
    gesture = jax.random.randint(gk, (B, T), 0, NUM_GESTURES, dtype=jnp.int32)

    out = gesture_net_forward(params, x, gesture,
                              window_size=WINDOW, attn_dim=ATTN_DIM)
    out = jax.block_until_ready(out)

    ref = gesture_net_reference(params, x, gesture,
                                window_size=WINDOW, attn_dim=ATTN_DIM)
    ref = jax.block_until_ready(ref)

    assert out.shape == (B, T)
    assert jnp.allclose(out, ref, rtol=2e-2, atol=2e-2), float(
        jnp.max(jnp.abs(out - ref)))
    print("KERNEL_OK")
</pallas_src>

<mosaic_0001>
module attributes {stable_mosaic.version = 11 : i64} {
  func.func @gesture_net_kernel(%arg0: i32, %arg1: memref<1x8x64xf32, #tpu.memory_space<vmem>>, %arg2: memref<1x8x32xf32, #tpu.memory_space<vmem>>, %arg3: memref<5x64x128xf32, #tpu.memory_space<vmem>>, %arg4: memref<1x128xf32, #tpu.memory_space<vmem>>, %arg5: memref<128x192xf32, #tpu.memory_space<vmem>>, %arg6: memref<1x192xf32, #tpu.memory_space<vmem>>, %arg7: memref<64x192xf32, #tpu.memory_space<vmem>>, %arg8: memref<1x64xf32, #tpu.memory_space<vmem>>, %arg9: memref<64x67xf32, #tpu.memory_space<vmem>>, %arg10: memref<1x67xf32, #tpu.memory_space<vmem>>, %arg11: memref<32x64xf32, #tpu.memory_space<vmem>>, %arg12: memref<64x1xf32, #tpu.memory_space<vmem>>, %arg13: memref<1x1xf32, #tpu.memory_space<vmem>>, %arg14: memref<1x1x8xf32, #tpu.memory_space<vmem>>, %arg15: memref<8x128xf32, #tpu.memory_space<vmem>>, %arg16: memref<8x64xf32, #tpu.memory_space<vmem>>) attributes {dimension_semantics = [#tpu.dimension_semantics<parallel>], iteration_bounds = array<i64: 2>, scalar_prefetch = 0 : i64, scratch_operands = 2 : i64, tpu.core_type = #tpu.core_type<tc>, window_params = [{transform_indices = @transform_0, window_bounds = array<i64: 1, 8, 64>}, {transform_indices = @transform_1, window_bounds = array<i64: 1, 8, 32>}, {pipeline_mode = #tpu.pipeline_mode<synchronous>, transform_indices = @transform_2, window_bounds = array<i64: 5, 64, 128>}, {pipeline_mode = #tpu.pipeline_mode<synchronous>, transform_indices = @transform_3, window_bounds = array<i64: 1, 128>}, {pipeline_mode = #tpu.pipeline_mode<synchronous>, transform_indices = @transform_4, window_bounds = array<i64: 128, 192>}, {pipeline_mode = #tpu.pipeline_mode<synchronous>, transform_indices = @transform_5, window_bounds = array<i64: 1, 192>}, {pipeline_mode = #tpu.pipeline_mode<synchronous>, transform_indices = @transform_6, window_bounds = array<i64: 64, 192>}, {pipeline_mode = #tpu.pipeline_mode<synchronous>, transform_indices = @transform_7, window_bounds = array<i64: 1, 64>}, {pipeline_mode = #tpu.pipeline_mode<synchronous>, transform_indices = @transform_8, window_bounds = array<i64: 64, 67>}, {pipeline_mode = #tpu.pipeline_mode<synchronous>, transform_indices = @transform_9, window_bounds = array<i64: 1, 67>}, {pipeline_mode = #tpu.pipeline_mode<synchronous>, transform_indices = @transform_10, window_bounds = array<i64: 32, 64>}, {pipeline_mode = #tpu.pipeline_mode<synchronous>, transform_indices = @transform_11, window_bounds = array<i64: 64, 1>}, {pipeline_mode = #tpu.pipeline_mode<synchronous>, transform_indices = @transform_12, window_bounds = array<i64: 1, 1>}, {transform_indices = @transform_13, window_bounds = array<i64: 1, 1, 8>}]} {
    %c0 = arith.constant 0 : index
    %c0_0 = arith.constant 0 : index
    %c0_1 = arith.constant 0 : index
    %0 = vector.load %arg1[%c0, %c0_0, %c0_1] : memref<1x8x64xf32, #tpu.memory_space<vmem>>, vector<1x8x64xf32>
    %1 = vector.shape_cast %0 : vector<1x8x64xf32> to vector<8x64xf32>
    %c2 = arith.constant 2 : index
    %c0_2 = arith.constant 0 : index
    %c0_3 = arith.constant 0 : index
    %2 = vector.load %arg3[%c2, %c0_2, %c0_3] : memref<5x64x128xf32, #tpu.memory_space<vmem>>, vector<1x64x128xf32>
    %3 = vector.shape_cast %2 : vector<1x64x128xf32> to vector<64x128xf32>
    %cst = arith.constant dense<0.000000e+00> : vector<8x128xf32>
    %4 = tpu.matmul %1, %3, %cst {dimension_numbers = #tpu.dot_dimension_numbers<[1], [0], [0], [1], [0, 0, 1, 1], [], []>} : vector<8x64xf32>, vector<64x128xf32>, vector<8x128xf32> -> vector<8x128xf32>
    %c0_4 = arith.constant 0 : index
    %c0_5 = arith.constant 0 : index
    %5 = vector.load %arg15[%c0_4, %c0_5] : memref<8x128xf32, #tpu.memory_space<vmem>>, vector<8x128xf32>
    tpu.vector_store %arg15[%c0_4, %c0_5], %4 {strides = array<i32>} : memref<8x128xf32, #tpu.memory_space<vmem>>, vector<8x128xf32>,
    %c2_6 = arith.constant 2 : index
    %c0_7 = arith.constant 0 : index
    %6 = vector.load %arg15[%c2_6, %c0_7] : memref<8x128xf32, #tpu.memory_space<vmem>>, vector<6x128xf32>
    %c0_8 = arith.constant 0 : index
    %c0_9 = arith.constant 0 : index
    %c0_10 = arith.constant 0 : index
    %7 = vector.load %arg1[%c0_8, %c0_9, %c0_10] : memref<1x8x64xf32, #tpu.memory_space<vmem>>, vector<1x6x64xf32>
    %8 = vector.shape_cast %7 : vector<1x6x64xf32> to vector<6x64xf32>
    %c0_11 = arith.constant 0 : index
    %c0_12 = arith.constant 0 : index
    %c0_13 = arith.constant 0 : index
    %9 = vector.load %arg3[%c0_11, %c0_12, %c0_13] : memref<5x64x128xf32, #tpu.memory_space<vmem>>, vector<1x64x128xf32>
    %10 = vector.shape_cast %9 : vector<1x64x128xf32> to vector<64x128xf32>
    %cst_14 = arith.constant dense<0.000000e+00> : vector<6x128xf32>
    %11 = tpu.matmul %8, %10, %cst_14 {dimension_numbers = #tpu.dot_dimension_numbers<[1], [0], [0], [1], [0, 0, 1, 1], [], []>} : vector<6x64xf32>, vector<64x128xf32>, vector<6x128xf32> -> vector<6x128xf32>
    %12 = arith.addf %6, %11 : vector<6x128xf32>
    %c2_15 = arith.constant 2 : index
    %c0_16 = arith.constant 0 : index
    %13 = vector.load %arg15[%c2_15, %c0_16] : memref<8x128xf32, #tpu.memory_space<vmem>>, vector<6x128xf32>
    tpu.vector_store %arg15[%c2_15, %c0_16], %12 {strides = array<i32>} : memref<8x128xf32, #tpu.memory_space<vmem>>, vector<6x128xf32>,
    %c1 = arith.constant 1 : index
    %c0_17 = arith.constant 0 : index
    %14 = vector.load %arg15[%c1, %c0_17] : memref<8x128xf32, #tpu.memory_space<vmem>>, vector<7x128xf32>
    %c0_18 = arith.constant 0 : index
    %c0_19 = arith.constant 0 : index
    %c0_20 = arith.constant 0 : index
    %15 = vector.load %arg1[%c0_18, %c0_19, %c0_20] : memref<1x8x64xf32, #tpu.memory_space<vmem>>, vector<1x7x64xf32>
    %16 = vector.shape_cast %15 : vector<1x7x64xf32> to vector<7x64xf32>
    %c1_21 = arith.constant 1 : index
    %c0_22 = arith.constant 0 : index
    %c0_23 = arith.constant 0 : index
    %17 = vector.load %arg3[%c1_21, %c0_22, %c0_23] : memref<5x64x128xf32, #tpu.memory_space<vmem>>, vector<1x64x128xf32>
    %18 = vector.shape_cast %17 : vector<1x64x128xf32> to vector<64x128xf32>
    %cst_24 = arith.constant dense<0.000000e+00> : vector<7x128xf32>
    %19 = tpu.matmul %16, %18, %cst_24 {dimension_numbers = #tpu.dot_dimension_numbers<[1], [0], [0], [1], [0, 0, 1, 1], [], []>} : vector<7x64xf32>, vector<64x128xf32>, vector<7x128xf32> -> vector<7x128xf32>
    %20 = arith.addf %14, %19 : vector<7x128xf32>
    %c1_25 = arith.constant 1 : index
    %c0_26 = arith.constant 0 : index
    %21 = vector.load %arg15[%c1_25, %c0_26] : memref<8x128xf32, #tpu.memory_space<vmem>>, vector<7x128xf32>
    tpu.vector_store %arg15[%c1_25, %c0_26], %20 {strides = array<i32>} : memref<8x128xf32, #tpu.memory_space<vmem>>, vector<7x128xf32>,
    %c0_27 = arith.constant 0 : index
    %c0_28 = arith.constant 0 : index
    %22 = vector.load %arg15[%c0_27, %c0_28] : memref<8x128xf32, #tpu.memory_space<vmem>>, vector<7x128xf32>
    %c0_29 = arith.constant 0 : index
    %c1_30 = arith.constant 1 : index
    %c0_31 = arith.constant 0 : index
    %23 = vector.load %arg1[%c0_29, %c1_30, %c0_31] : memref<1x8x64xf32, #tpu.memory_space<vmem>>, vector<1x7x64xf32>
    %24 = vector.shape_cast %23 : vector<1x7x64xf32> to vector<7x64xf32>
    %c3 = arith.constant 3 : index
    %c0_32 = arith.constant 0 : index
    %c0_33 = arith.constant 0 : index
    %25 = vector.load %arg3[%c3, %c0_32, %c0_33] : memref<5x64x128xf32, #tpu.memory_space<vmem>>, vector<1x64x128xf32>
    %26 = vector.shape_cast %25 : vector<1x64x128xf32> to vector<64x128xf32>
    %cst_34 = arith.constant dense<0.000000e+00> : vector<7x128xf32>
    %27 = tpu.matmul %24, %26, %cst_34 {dimension_numbers = #tpu.dot_dimension_numbers<[1], [0], [0], [1], [0, 0, 1, 1], [], []>} : vector<7x64xf32>, vector<64x128xf32>, vector<7x128xf32> -> vector<7x128xf32>
    %28 = arith.addf %22, %27 : vector<7x128xf32>
    %c0_35 = arith.constant 0 : index
    %c0_36 = arith.constant 0 : index
    %29 = vector.load %arg15[%c0_35, %c0_36] : memref<8x128xf32, #tpu.memory_space<vmem>>, vector<7x128xf32>
    tpu.vector_store %arg15[%c0_35, %c0_36], %28 {strides = array<i32>} : memref<8x128xf32, #tpu.memory_space<vmem>>, vector<7x128xf32>,
    %c0_37 = arith.constant 0 : index
    %c0_38 = arith.constant 0 : index
    %30 = vector.load %arg15[%c0_37, %c0_38] : memref<8x128xf32, #tpu.memory_space<vmem>>, vector<6x128xf32>
    %c0_39 = arith.constant 0 : index
    %c2_40 = arith.constant 2 : index
    %c0_41 = arith.constant 0 : index
    %31 = vector.load %arg1[%c0_39, %c2_40, %c0_41] : memref<1x8x64xf32, #tpu.memory_space<vmem>>, vector<1x6x64xf32>
    %32 = vector.shape_cast %31 : vector<1x6x64xf32> to vector<6x64xf32>
    %c4 = arith.constant 4 : index
    %c0_42 = arith.constant 0 : index
    %c0_43 = arith.constant 0 : index
    %33 = vector.load %arg3[%c4, %c0_42, %c0_43] : memref<5x64x128xf32, #tpu.memory_space<vmem>>, vector<1x64x128xf32>
    %34 = vector.shape_cast %33 : vector<1x64x128xf32> to vector<64x128xf32>
    %cst_44 = arith.constant dense<0.000000e+00> : vector<6x128xf32>
    %35 = tpu.matmul %32, %34, %cst_44 {dimension_numbers = #tpu.dot_dimension_numbers<[1], [0], [0], [1], [0, 0, 1, 1], [], []>} : vector<6x64xf32>, vector<64x128xf32>, vector<6x128xf32> -> vector<6x128xf32>
    %36 = arith.addf %30, %35 : vector<6x128xf32>
    %c0_45 = arith.constant 0 : index
    %c0_46 = arith.constant 0 : index
    %37 = vector.load %arg15[%c0_45, %c0_46] : memref<8x128xf32, #tpu.memory_space<vmem>>, vector<6x128xf32>
    tpu.vector_store %arg15[%c0_45, %c0_46], %36 {strides = array<i32>} : memref<8x128xf32, #tpu.memory_space<vmem>>, vector<6x128xf32>,
    %c0_47 = arith.constant 0 : index
    %c0_48 = arith.constant 0 : index
    %38 = vector.load %arg15[%c0_47, %c0_48] : memref<8x128xf32, #tpu.memory_space<vmem>>, vector<8x128xf32>
    %c0_49 = arith.constant 0 : index
    %c0_50 = arith.constant 0 : index
    %39 = vector.load %arg4[%c0_49, %c0_50] : memref<1x128xf32, #tpu.memory_space<vmem>>, vector<1x128xf32>
    %40 = vector.broadcast %39 : vector<1x128xf32> to vector<8x128xf32>
    %41 = arith.addf %38, %40 : vector<8x128xf32>
    %cst_51 = arith.constant 0.000000e+00 : f32
    %42 = vector.broadcast %cst_51 : f32 to vector<8x128xf32>
    %43 = arith.maximumf %41, %42 : vector<8x128xf32>
    %c0_52 = arith.constant 0 : index
    %c0_53 = arith.constant 0 : index
    %44 = vector.load %arg5[%c0_52, %c0_53] : memref<128x192xf32, #tpu.memory_space<vmem>>, vector<128x192xf32>
    %cst_54 = arith.constant dense<0.000000e+00> : vector<8x192xf32>
    %45 = tpu.matmul %43, %44, %cst_54 {dimension_numbers = #tpu.dot_dimension_numbers<[1], [0], [0], [1], [0, 0, 1, 1], [], []>} : vector<8x128xf32>, vector<128x192xf32>, vector<8x192xf32> -> vector<8x192xf32>
    %c0_55 = arith.constant 0 : index
    %c0_56 = arith.constant 0 : index
    %46 = vector.load %arg6[%c0_55, %c0_56] : memref<1x192xf32, #tpu.memory_space<vmem>>, vector<1x192xf32>
    %47 = vector.broadcast %46 : vector<1x192xf32> to vector<8x192xf32>
    %48 = arith.addf %45, %47 : vector<8x192xf32>
    %c0_57 = arith.constant 0 : index
    %c0_58 = arith.constant 0 : index
    %49 = vector.load %arg8[%c0_57, %c0_58] : memref<1x64xf32, #tpu.memory_space<vmem>>, vector<1x64xf32>
    %cst_59 = arith.constant 0.000000e+00 : f32
    %50 = vector.broadcast %cst_59 : f32 to vector<1x64xf32>
    %51 = vector.extract_strided_slice %48 {offsets = [0, 0], sizes = [1, 192], strides = [1, 1]} : vector<8x192xf32> to vector<1x192xf32>
    %c0_60 = arith.constant 0 : index
    %c0_61 = arith.constant 0 : index
    %52 = vector.load %arg7[%c0_60, %c0_61] : memref<64x192xf32, #tpu.memory_space<vmem>>, vector<64x192xf32>
    %cst_62 = arith.constant dense<0.000000e+00> : vector<1x192xf32>
    %53 = tpu.matmul %50, %52, %cst_62 {dimension_numbers = #tpu.dot_dimension_numbers<[1], [0], [0], [1], [0, 0, 1, 1], [], []>} : vector<1x64xf32>, vector<64x192xf32>, vector<1x192xf32> -> vector<1x192xf32>
    %54 = vector.extract_strided_slice %51 {offsets = [0, 0], sizes = [1, 64], strides = [1, 1]} : vector<1x192xf32> to vector<1x64xf32>
    %55 = vector.extract_strided_slice %53 {offsets = [0, 0], sizes = [1, 64], strides = [1, 1]} : vector<1x192xf32> to vector<1x64xf32>
    %56 = arith.addf %54, %55 : vector<1x64xf32>
    %57 = arith.negf %56 : vector<1x64xf32>
    %58 = math.exp %57 : vector<1x64xf32>
    %cst_63 = arith.constant 1.000000e+00 : f32
    %59 = vector.broadcast %cst_63 : f32 to vector<1x64xf32>
    %60 = arith.addf %59, %58 : vector<1x64xf32>
    %61 = arith.divf %59, %60 : vector<1x64xf32>
    %62 = vector.extract_strided_slice %51 {offsets = [0, 64], sizes = [1, 64], strides = [1, 1]} : vector<1x192xf32> to vector<1x64xf32>
    %63 = vector.extract_strided_slice %53 {offsets = [0, 64], sizes = [1, 64], strides = [1, 1]} : vector<1x192xf32> to vector<1x64xf32>
    %64 = arith.addf %62, %63 : vector<1x64xf32>
    %65 = arith.negf %64 : vector<1x64xf32>
    %66 = math.exp %65 : vector<1x64xf32>
    %cst_64 = arith.constant 1.000000e+00 : f32
    %67 = vector.broadcast %cst_64 : f32 to vector<1x64xf32>
    %68 = arith.addf %67, %66 : vector<1x64xf32>
    %69 = arith.divf %67, %68 : vector<1x64xf32>
    %70 = vector.extract_strided_slice %51 {offsets = [0, 128], sizes = [1, 64], strides = [1, 1]} : vector<1x192xf32> to vector<1x64xf32>
    %71 = vector.extract_strided_slice %53 {offsets = [0, 128], sizes = [1, 64], strides = [1, 1]} : vector<1x192xf32> to vector<1x64xf32>
    %72 = arith.addf %71, %49 : vector<1x64xf32>
    %73 = arith.mulf %61, %72 : vector<1x64xf32>
    %74 = arith.addf %70, %73 : vector<1x64xf32>
    %75 = math.tanh %74 : vector<1x64xf32>
    %cst_65 = arith.constant 1.000000e+00 : f32
    %76 = vector.broadcast %cst_65 : f32 to vector<1x64xf32>
    %77 = arith.subf %76, %69 : vector<1x64xf32>
    %78 = arith.mulf %77, %75 : vector<1x64xf32>
    %79 = arith.mulf %69, %50 : vector<1x64xf32>
    %80 = arith.addf %78, %79 : vector<1x64xf32>
    %c0_66 = arith.constant 0 : index
    %c0_67 = arith.constant 0 : index
    %81 = vector.load %arg16[%c0_66, %c0_67] : memref<8x64xf32, #tpu.memory_space<vmem>>, vector<1x64xf32>
    tpu.vector_store %arg16[%c0_66, %c0_67], %80 {strides = array<i32>} : memref<8x64xf32, #tpu.memory_space<vmem>>, vector<1x64xf32>,
    %82 = vector.extract_strided_slice %48 {offsets = [1, 0], sizes = [1, 192], strides = [1, 1]} : vector<8x192xf32> to vector<1x192xf32>
    %c0_68 = arith.constant 0 : index
    %c0_69 = arith.constant 0 : index
    %83 = vector.load %arg7[%c0_68, %c0_69] : memref<64x192xf32, #tpu.memory_space<vmem>>, vector<64x192xf32>
    %cst_70 = arith.constant dense<0.000000e+00> : vector<1x192xf32>
    %84 = tpu.matmul %80, %83, %cst_70 {dimension_numbers = #tpu.dot_dimension_numbers<[1], [0], [0], [1], [0, 0, 1, 1], [], []>} : vector<1x64xf32>, vector<64x192xf32>, vector<1x192xf32> -> vector<1x192xf32>
    %85 = vector.extract_strided_slice %82 {offsets = [0, 0], sizes = [1, 64], strides = [1, 1]} : vector<1x192xf32> to vector<1x64xf32>
    %86 = vector.extract_strided_slice %84 {offsets = [0, 0], sizes = [1, 64], strides = [1, 1]} : vector<1x192xf32> to vector<1x64xf32>
    %87 = arith.addf %85, %86 : vector<1x64xf32>
    %88 = arith.negf %87 : vector<1x64xf32>
    %89 = math.exp %88 : vector<1x64xf32>
    %cst_71 = arith.constant 1.000000e+00 : f32
    %90 = vector.broadcast %cst_71 : f32 to vector<1x64xf32>
    %91 = arith.addf %90, %89 : vector<1x64xf32>
    %92 = arith.divf %90, %91 : vector<1x64xf32>
    %93 = vector.extract_strided_slice %82 {offsets = [0, 64], sizes = [1, 64], strides = [1, 1]} : vector<1x192xf32> to vector<1x64xf32>
    %94 = vector.extract_strided_slice %84 {offsets = [0, 64], sizes = [1, 64], strides = [1, 1]} : vector<1x192xf32> to vector<1x64xf32>
    %95 = arith.addf %93, %94 : vector<1x64xf32>
    %96 = arith.negf %95 : vector<1x64xf32>
    %97 = math.exp %96 : vector<1x64xf32>
    %cst_72 = arith.constant 1.000000e+00 : f32
    %98 = vector.broadcast %cst_72 : f32 to vector<1x64xf32>
    %99 = arith.addf %98, %97 : vector<1x64xf32>
    %100 = arith.divf %98, %99 : vector<1x64xf32>
    %101 = vector.extract_strided_slice %82 {offsets = [0, 128], sizes = [1, 64], strides = [1, 1]} : vector<1x192xf32> to vector<1x64xf32>
    %102 = vector.extract_strided_slice %84 {offsets = [0, 128], sizes = [1, 64], strides = [1, 1]} : vector<1x192xf32> to vector<1x64xf32>
    %103 = arith.addf %102, %49 : vector<1x64xf32>
    %104 = arith.mulf %92, %103 : vector<1x64xf32>
    %105 = arith.addf %101, %104 : vector<1x64xf32>
    %106 = math.tanh %105 : vector<1x64xf32>
    %cst_73 = arith.constant 1.000000e+00 : f32
    %107 = vector.broadcast %cst_73 : f32 to vector<1x64xf32>
    %108 = arith.subf %107, %100 : vector<1x64xf32>
    %109 = arith.mulf %108, %106 : vector<1x64xf32>
    %110 = arith.mulf %100, %80 : vector<1x64xf32>
    %111 = arith.addf %109, %110 : vector<1x64xf32>
    %c1_74 = arith.constant 1 : index
    %c0_75 = arith.constant 0 : index
    %112 = vector.load %arg16[%c1_74, %c0_75] : memref<8x64xf32, #tpu.memory_space<vmem>>, vector<1x64xf32>
    tpu.vector_store %arg16[%c1_74, %c0_75], %111 {strides = array<i32>} : memref<8x64xf32, #tpu.memory_space<vmem>>, vector<1x64xf32>,
    %113 = vector.extract_strided_slice %48 {offsets = [2, 0], sizes = [1, 192], strides = [1, 1]} : vector<8x192xf32> to vector<1x192xf32>
    %c0_76 = arith.constant 0 : index
    %c0_77 = arith.constant 0 : index
    %114 = vector.load %arg7[%c0_76, %c0_77] : memref<64x192xf32, #tpu.memory_space<vmem>>, vector<64x192xf32>
    %cst_78 = arith.constant dense<0.000000e+00> : vector<1x192xf32>
    %115 = tpu.matmul %111, %114, %cst_78 {dimension_numbers = #tpu.dot_dimension_numbers<[1], [0], [0], [1], [0, 0, 1, 1], [], []>} : vector<1x64xf32>, vector<64x192xf32>, vector<1x192xf32> -> vector<1x192xf32>
    %116 = vector.extract_strided_slice %113 {offsets = [0, 0], sizes = [1, 64], strides = [1, 1]} : vector<1x192xf32> to vector<1x64xf32>
    %117 = vector.extract_strided_slice %115 {offsets = [0, 0], sizes = [1, 64], strides = [1, 1]} : vector<1x192xf32> to vector<1x64xf32>
    %118 = arith.addf %116, %117 : vector<1x64xf32>
    %119 = arith.negf %118 : vector<1x64xf32>
    %120 = math.exp %119 : vector<1x64xf32>
    %cst_79 = arith.constant 1.000000e+00 : f32
    %121 = vector.broadcast %cst_79 : f32 to vector<1x64xf32>
    %122 = arith.addf %121, %120 : vector<1x64xf32>
    %123 = arith.divf %121, %122 : vector<1x64xf32>
    %124 = vector.extract_strided_slice %113 {offsets = [0, 64], sizes = [1, 64], strides = [1, 1]} : vector<1x192xf32> to vector<1x64xf32>
    %125 = vector.extract_strided_slice %115 {offsets = [0, 64], sizes = [1, 64], strides = [1, 1]} : vector<1x192xf32> to vector<1x64xf32>
    %126 = arith.addf %124, %125 : vector<1x64xf32>
    %127 = arith.negf %126 : vector<1x64xf32>
    %128 = math.exp %127 : vector<1x64xf32>
    %cst_80 = arith.constant 1.000000e+00 : f32
    %129 = vector.broadcast %cst_80 : f32 to vector<1x64xf32>
    %130 = arith.addf %129, %128 : vector<1x64xf32>
    %131 = arith.divf %129, %130 : vector<1x64xf32>
    %132 = vector.extract_strided_slice %113 {offsets = [0, 128], sizes = [1, 64], strides = [1, 1]} : vector<1x192xf32> to vector<1x64xf32>
    %133 = vector.extract_strided_slice %115 {offsets = [0, 128], sizes = [1, 64], strides = [1, 1]} : vector<1x192xf32> to vector<1x64xf32>
    %134 = arith.addf %133, %49 : vector<1x64xf32>
    %135 = arith.mulf %123, %134 : vector<1x64xf32>
    %136 = arith.addf %132, %135 : vector<1x64xf32>
    %137 = math.tanh %136 : vector<1x64xf32>
    %cst_81 = arith.constant 1.000000e+00 : f32
    %138 = vector.broadcast %cst_81 : f32 to vector<1x64xf32>
    %139 = arith.subf %138, %131 : vector<1x64xf32>
    %140 = arith.mulf %139, %137 : vector<1x64xf32>
    %141 = arith.mulf %131, %111 : vector<1x64xf32>
    %142 = arith.addf %140, %141 : vector<1x64xf32>
    %c2_82 = arith.constant 2 : index
    %c0_83 = arith.constant 0 : index
    %143 = vector.load %arg16[%c2_82, %c0_83] : memref<8x64xf32, #tpu.memory_space<vmem>>, vector<1x64xf32>
    tpu.vector_store %arg16[%c2_82, %c0_83], %142 {strides = array<i32>} : memref<8x64xf32, #tpu.memory_space<vmem>>, vector<1x64xf32>,
    %144 = vector.extract_strided_slice %48 {offsets = [3, 0], sizes = [1, 192], strides = [1, 1]} : vector<8x192xf32> to vector<1x192xf32>
    %c0_84 = arith.constant 0 : index
    %c0_85 = arith.constant 0 : index
    %145 = vector.load %arg7[%c0_84, %c0_85] : memref<64x192xf32, #tpu.memory_space<vmem>>, vector<64x192xf32>
    %cst_86 = arith.constant dense<0.000000e+00> : vector<1x192xf32>
    %146 = tpu.matmul %142, %145, %cst_86 {dimension_numbers = #tpu.dot_dimension_numbers<[1], [0], [0], [1], [0, 0, 1, 1], [], []>} : vector<1x64xf32>, vector<64x192xf32>, vector<1x192xf32> -> vector<1x192xf32>
    %147 = vector.extract_strided_slice %144 {offsets = [0, 0], sizes = [1, 64], strides = [1, 1]} : vector<1x192xf32> to vector<1x64xf32>
    %148 = vector.extract_strided_slice %146 {offsets = [0, 0], sizes = [1, 64], strides = [1, 1]} : vector<1x192xf32> to vector<1x64xf32>
    %149 = arith.addf %147, %148 : vector<1x64xf32>
    %150 = arith.negf %149 : vector<1x64xf32>
    %151 = math.exp %150 : vector<1x64xf32>
    %cst_87 = arith.constant 1.000000e+00 : f32
    %152 = vector.broadcast %cst_87 : f32 to vector<1x64xf32>
    %153 = arith.addf %152, %151 : vector<1x64xf32>
    %154 = arith.divf %152, %153 : vector<1x64xf32>
    %155 = vector.extract_strided_slice %144 {offsets = [0, 64], sizes = [1, 64], strides = [1, 1]} : vector<1x192xf32> to vector<1x64xf32>
    %156 = vector.extract_strided_slice %146 {offsets = [0, 64], sizes = [1, 64], strides = [1, 1]} : vector<1x192xf32> to vector<1x64xf32>
    %157 = arith.addf %155, %156 : vector<1x64xf32>
    %158 = arith.negf %157 : vector<1x64xf32>
    %159 = math.exp %158 : vector<1x64xf32>
    %cst_88 = arith.constant 1.000000e+00 : f32
    %160 = vector.broadcast %cst_88 : f32 to vector<1x64xf32>
    %161 = arith.addf %160, %159 : vector<1x64xf32>
    %162 = arith.divf %160, %161 : vector<1x64xf32>
    %163 = vector.extract_strided_slice %144 {offsets = [0, 128], sizes = [1, 64], strides = [1, 1]} : vector<1x192xf32> to vector<1x64xf32>
    %164 = vector.extract_strided_slice %146 {offsets = [0, 128], sizes = [1, 64], strides = [1, 1]} : vector<1x192xf32> to vector<1x64xf32>
    %165 = arith.addf %164, %49 : vector<1x64xf32>
    %166 = arith.mulf %154, %165 : vector<1x64xf32>
    %167 = arith.addf %163, %166 : vector<1x64xf32>
    %168 = math.tanh %167 : vector<1x64xf32>
    %cst_89 = arith.constant 1.000000e+00 : f32
    %169 = vector.broadcast %cst_89 : f32 to vector<1x64xf32>
    %170 = arith.subf %169, %162 : vector<1x64xf32>
    %171 = arith.mulf %170, %168 : vector<1x64xf32>
    %172 = arith.mulf %162, %142 : vector<1x64xf32>
    %173 = arith.addf %171, %172 : vector<1x64xf32>
    %c3_90 = arith.constant 3 : index
    %c0_91 = arith.constant 0 : index
    %174 = vector.load %arg16[%c3_90, %c0_91] : memref<8x64xf32, #tpu.memory_space<vmem>>, vector<1x64xf32>
    tpu.vector_store %arg16[%c3_90, %c0_91], %173 {strides = array<i32>} : memref<8x64xf32, #tpu.memory_space<vmem>>, vector<1x64xf32>,
    %175 = vector.extract_strided_slice %48 {offsets = [4, 0], sizes = [1, 192], strides = [1, 1]} : vector<8x192xf32> to vector<1x192xf32>
    %c0_92 = arith.constant 0 : index
    %c0_93 = arith.constant 0 : index
    %176 = vector.load %arg7[%c0_92, %c0_93] : memref<64x192xf32, #tpu.memory_space<vmem>>, vector<64x192xf32>
    %cst_94 = arith.constant dense<0.000000e+00> : vector<1x192xf32>
    %177 = tpu.matmul %173, %176, %cst_94 {dimension_numbers = #tpu.dot_dimension_numbers<[1], [0], [0], [1], [0, 0, 1, 1], [], []>} : vector<1x64xf32>, vector<64x192xf32>, vector<1x192xf32> -> vector<1x192xf32>
    %178 = vector.extract_strided_slice %175 {offsets = [0, 0], sizes = [1, 64], strides = [1, 1]} : vector<1x192xf32> to vector<1x64xf32>
    %179 = vector.extract_strided_slice %177 {offsets = [0, 0], sizes = [1, 64], strides = [1, 1]} : vector<1x192xf32> to vector<1x64xf32>
    %180 = arith.addf %178, %179 : vector<1x64xf32>
    %181 = arith.negf %180 : vector<1x64xf32>
    %182 = math.exp %181 : vector<1x64xf32>
    %cst_95 = arith.constant 1.000000e+00 : f32
    %183 = vector.broadcast %cst_95 : f32 to vector<1x64xf32>
    %184 = arith.addf %183, %182 : vector<1x64xf32>
    %185 = arith.divf %183, %184 : vector<1x64xf32>
    %186 = vector.extract_strided_slice %175 {offsets = [0, 64], sizes = [1, 64], strides = [1, 1]} : vector<1x192xf32> to vector<1x64xf32>
    %187 = vector.extract_strided_slice %177 {offsets = [0, 64], sizes = [1, 64], strides = [1, 1]} : vector<1x192xf32> to vector<1x64xf32>
    %188 = arith.addf %186, %187 : vector<1x64xf32>
    %189 = arith.negf %188 : vector<1x64xf32>
    %190 = math.exp %189 : vector<1x64xf32>
    %cst_96 = arith.constant 1.000000e+00 : f32
    %191 = vector.broadcast %cst_96 : f32 to vector<1x64xf32>
    %192 = arith.addf %191, %190 : vector<1x64xf32>
    %193 = arith.divf %191, %192 : vector<1x64xf32>
    %194 = vector.extract_strided_slice %175 {offsets = [0, 128], sizes = [1, 64], strides = [1, 1]} : vector<1x192xf32> to vector<1x64xf32>
    %195 = vector.extract_strided_slice %177 {offsets = [0, 128], sizes = [1, 64], strides = [1, 1]} : vector<1x192xf32> to vector<1x64xf32>
    %196 = arith.addf %195, %49 : vector<1x64xf32>
    %197 = arith.mulf %185, %196 : vector<1x64xf32>
    %198 = arith.addf %194, %197 : vector<1x64xf32>
    %199 = math.tanh %198 : vector<1x64xf32>
    %cst_97 = arith.constant 1.000000e+00 : f32
    %200 = vector.broadcast %cst_97 : f32 to vector<1x64xf32>
    %201 = arith.subf %200, %193 : vector<1x64xf32>
    %202 = arith.mulf %201, %199 : vector<1x64xf32>
    %203 = arith.mulf %193, %173 : vector<1x64xf32>
    %204 = arith.addf %202, %203 : vector<1x64xf32>
    %c4_98 = arith.constant 4 : index
    %c0_99 = arith.constant 0 : index
    %205 = vector.load %arg16[%c4_98, %c0_99] : memref<8x64xf32, #tpu.memory_space<vmem>>, vector<1x64xf32>
    tpu.vector_store %arg16[%c4_98, %c0_99], %204 {strides = array<i32>} : memref<8x64xf32, #tpu.memory_space<vmem>>, vector<1x64xf32>,
    %206 = vector.extract_strided_slice %48 {offsets = [5, 0], sizes = [1, 192], strides = [1, 1]} : vector<8x192xf32> to vector<1x192xf32>
    %c0_100 = arith.constant 0 : index
    %c0_101 = arith.constant 0 : index
    %207 = vector.load %arg7[%c0_100, %c0_101] : memref<64x192xf32, #tpu.memory_space<vmem>>, vector<64x192xf32>
    %cst_102 = arith.constant dense<0.000000e+00> : vector<1x192xf32>
    %208 = tpu.matmul %204, %207, %cst_102 {dimension_numbers = #tpu.dot_dimension_numbers<[1], [0], [0], [1], [0, 0, 1, 1], [], []>} : vector<1x64xf32>, vector<64x192xf32>, vector<1x192xf32> -> vector<1x192xf32>
    %209 = vector.extract_strided_slice %206 {offsets = [0, 0], sizes = [1, 64], strides = [1, 1]} : vector<1x192xf32> to vector<1x64xf32>
    %210 = vector.extract_strided_slice %208 {offsets = [0, 0], sizes = [1, 64], strides = [1, 1]} : vector<1x192xf32> to vector<1x64xf32>
    %211 = arith.addf %209, %210 : vector<1x64xf32>
    %212 = arith.negf %211 : vector<1x64xf32>
    %213 = math.exp %212 : vector<1x64xf32>
    %cst_103 = arith.constant 1.000000e+00 : f32
    %214 = vector.broadcast %cst_103 : f32 to vector<1x64xf32>
    %215 = arith.addf %214, %213 : vector<1x64xf32>
    %216 = arith.divf %214, %215 : vector<1x64xf32>
    %217 = vector.extract_strided_slice %206 {offsets = [0, 64], sizes = [1, 64], strides = [1, 1]} : vector<1x192xf32> to vector<1x64xf32>
    %218 = vector.extract_strided_slice %208 {offsets = [0, 64], sizes = [1, 64], strides = [1, 1]} : vector<1x192xf32> to vector<1x64xf32>
    %219 = arith.addf %217, %218 : vector<1x64xf32>
    %220 = arith.negf %219 : vector<1x64xf32>
    %221 = math.exp %220 : vector<1x64xf32>
    %cst_104 = arith.constant 1.000000e+00 : f32
    %222 = vector.broadcast %cst_104 : f32 to vector<1x64xf32>
    %223 = arith.addf %222, %221 : vector<1x64xf32>
    %224 = arith.divf %222, %223 : vector<1x64xf32>
    %225 = vector.extract_strided_slice %206 {offsets = [0, 128], sizes = [1, 64], strides = [1, 1]} : vector<1x192xf32> to vector<1x64xf32>
    %226 = vector.extract_strided_slice %208 {offsets = [0, 128], sizes = [1, 64], strides = [1, 1]} : vector<1x192xf32> to vector<1x64xf32>
    %227 = arith.addf %226, %49 : vector<1x64xf32>
    %228 = arith.mulf %216, %227 : vector<1x64xf32>
    %229 = arith.addf %225, %228 : vector<1x64xf32>
    %230 = math.tanh %229 : vector<1x64xf32>
    %cst_105 = arith.constant 1.000000e+00 : f32
    %231 = vector.broadcast %cst_105 : f32 to vector<1x64xf32>
    %232 = arith.subf %231, %224 : vector<1x64xf32>
    %233 = arith.mulf %232, %230 : vector<1x64xf32>
    %234 = arith.mulf %224, %204 : vector<1x64xf32>
    %235 = arith.addf %233, %234 : vector<1x64xf32>
    %c5 = arith.constant 5 : index
    %c0_106 = arith.constant 0 : index
    %236 = vector.load %arg16[%c5, %c0_106] : memref<8x64xf32, #tpu.memory_space<vmem>>, vector<1x64xf32>
    tpu.vector_store %arg16[%c5, %c0_106], %235 {strides = array<i32>} : memref<8x64xf32, #tpu.memory_space<vmem>>, vector<1x64xf32>,
    %237 = vector.extract_strided_slice %48 {offsets = [6, 0], sizes = [1, 192], strides = [1, 1]} : vector<8x192xf32> to vector<1x192xf32>
    %c0_107 = arith.constant 0 : index
    %c0_108 = arith.constant 0 : index
    %238 = vector.load %arg7[%c0_107, %c0_108] : memref<64x192xf32, #tpu.memory_space<vmem>>, vector<64x192xf32>
    %cst_109 = arith.constant dense<0.000000e+00> : vector<1x192xf32>
    %239 = tpu.matmul %235, %238, %cst_109 {dimension_numbers = #tpu.dot_dimension_numbers<[1], [0], [0], [1], [0, 0, 1, 1], [], []>} : vector<1x64xf32>, vector<64x192xf32>, vector<1x192xf32> -> vector<1x192xf32>
    %240 = vector.extract_strided_slice %237 {offsets = [0, 0], sizes = [1, 64], strides = [1, 1]} : vector<1x192xf32> to vector<1x64xf32>
    %241 = vector.extract_strided_slice %239 {offsets = [0, 0], sizes = [1, 64], strides = [1, 1]} : vector<1x192xf32> to vector<1x64xf32>
    %242 = arith.addf %240, %241 : vector<1x64xf32>
    %243 = arith.negf %242 : vector<1x64xf32>
    %244 = math.exp %243 : vector<1x64xf32>
    %cst_110 = arith.constant 1.000000e+00 : f32
    %245 = vector.broadcast %cst_110 : f32 to vector<1x64xf32>
    %246 = arith.addf %245, %244 : vector<1x64xf32>
    %247 = arith.divf %245, %246 : vector<1x64xf32>
    %248 = vector.extract_strided_slice %237 {offsets = [0, 64], sizes = [1, 64], strides = [1, 1]} : vector<1x192xf32> to vector<1x64xf32>
    %249 = vector.extract_strided_slice %239 {offsets = [0, 64], sizes = [1, 64], strides = [1, 1]} : vector<1x192xf32> to vector<1x64xf32>
    %250 = arith.addf %248, %249 : vector<1x64xf32>
    %251 = arith.negf %250 : vector<1x64xf32>
    %252 = math.exp %251 : vector<1x64xf32>
    %cst_111 = arith.constant 1.000000e+00 : f32
    %253 = vector.broadcast %cst_111 : f32 to vector<1x64xf32>
    %254 = arith.addf %253, %252 : vector<1x64xf32>
    %255 = arith.divf %253, %254 : vector<1x64xf32>
    %256 = vector.extract_strided_slice %237 {offsets = [0, 128], sizes = [1, 64], strides = [1, 1]} : vector<1x192xf32> to vector<1x64xf32>
    %257 = vector.extract_strided_slice %239 {offsets = [0, 128], sizes = [1, 64], strides = [1, 1]} : vector<1x192xf32> to vector<1x64xf32>
    %258 = arith.addf %257, %49 : vector<1x64xf32>
    %259 = arith.mulf %247, %258 : vector<1x64xf32>
    %260 = arith.addf %256, %259 : vector<1x64xf32>
    %261 = math.tanh %260 : vector<1x64xf32>
    %cst_112 = arith.constant 1.000000e+00 : f32
    %262 = vector.broadcast %cst_112 : f32 to vector<1x64xf32>
    %263 = arith.subf %262, %255 : vector<1x64xf32>
    %264 = arith.mulf %263, %261 : vector<1x64xf32>
    %265 = arith.mulf %255, %235 : vector<1x64xf32>
    %266 = arith.addf %264, %265 : vector<1x64xf32>
    %c6 = arith.constant 6 : index
    %c0_113 = arith.constant 0 : index
    %267 = vector.load %arg16[%c6, %c0_113] : memref<8x64xf32, #tpu.memory_space<vmem>>, vector<1x64xf32>
    tpu.vector_store %arg16[%c6, %c0_113], %266 {strides = array<i32>} : memref<8x64xf32, #tpu.memory_space<vmem>>, vector<1x64xf32>,
    %268 = vector.extract_strided_slice %48 {offsets = [7, 0], sizes = [1, 192], strides = [1, 1]} : vector<8x192xf32> to vector<1x192xf32>
    %c0_114 = arith.constant 0 : index
    %c0_115 = arith.constant 0 : index
    %269 = vector.load %arg7[%c0_114, %c0_115] : memref<64x192xf32, #tpu.memory_space<vmem>>, vector<64x192xf32>
    %cst_116 = arith.constant dense<0.000000e+00> : vector<1x192xf32>
    %270 = tpu.matmul %266, %269, %cst_116 {dimension_numbers = #tpu.dot_dimension_numbers<[1], [0], [0], [1], [0, 0, 1, 1], [], []>} : vector<1x64xf32>, vector<64x192xf32>, vector<1x192xf32> -> vector<1x192xf32>
    %271 = vector.extract_strided_slice %268 {offsets = [0, 0], sizes = [1, 64], strides = [1, 1]} : vector<1x192xf32> to vector<1x64xf32>
    %272 = vector.extract_strided_slice %270 {offsets = [0, 0], sizes = [1, 64], strides = [1, 1]} : vector<1x192xf32> to vector<1x64xf32>
    %273 = arith.addf %271, %272 : vector<1x64xf32>
    %274 = arith.negf %273 : vector<1x64xf32>
    %275 = math.exp %274 : vector<1x64xf32>
    %cst_117 = arith.constant 1.000000e+00 : f32
    %276 = vector.broadcast %cst_117 : f32 to vector<1x64xf32>
    %277 = arith.addf %276, %275 : vector<1x64xf32>
    %278 = arith.divf %276, %277 : vector<1x64xf32>
    %279 = vector.extract_strided_slice %268 {offsets = [0, 64], sizes = [1, 64], strides = [1, 1]} : vector<1x192xf32> to vector<1x64xf32>
    %280 = vector.extract_strided_slice %270 {offsets = [0, 64], sizes = [1, 64], strides = [1, 1]} : vector<1x192xf32> to vector<1x64xf32>
    %281 = arith.addf %279, %280 : vector<1x64xf32>
    %282 = arith.negf %281 : vector<1x64xf32>
    %283 = math.exp %282 : vector<1x64xf32>
    %cst_118 = arith.constant 1.000000e+00 : f32
    %284 = vector.broadcast %cst_118 : f32 to vector<1x64xf32>
    %285 = arith.addf %284, %283 : vector<1x64xf32>
    %286 = arith.divf %284, %285 : vector<1x64xf32>
    %287 = vector.extract_strided_slice %268 {offsets = [0, 128], sizes = [1, 64], strides = [1, 1]} : vector<1x192xf32> to vector<1x64xf32>
    %288 = vector.extract_strided_slice %270 {offsets = [0, 128], sizes = [1, 64], strides = [1, 1]} : vector<1x192xf32> to vector<1x64xf32>
    %289 = arith.addf %288, %49 : vector<1x64xf32>
    %290 = arith.mulf %278, %289 : vector<1x64xf32>
    %291 = arith.addf %287, %290 : vector<1x64xf32>
    %292 = math.tanh %291 : vector<1x64xf32>
    %cst_119 = arith.constant 1.000000e+00 : f32
    %293 = vector.broadcast %cst_119 : f32 to vector<1x64xf32>
    %294 = arith.subf %293, %286 : vector<1x64xf32>
    %295 = arith.mulf %294, %292 : vector<1x64xf32>
    %296 = arith.mulf %286, %266 : vector<1x64xf32>
    %297 = arith.addf %295, %296 : vector<1x64xf32>
    %c7 = arith.constant 7 : index
    %c0_120 = arith.constant 0 : index
    %298 = vector.load %arg16[%c7, %c0_120] : memref<8x64xf32, #tpu.memory_space<vmem>>, vector<1x64xf32>
    tpu.vector_store %arg16[%c7, %c0_120], %297 {strides = array<i32>} : memref<8x64xf32, #tpu.memory_space<vmem>>, vector<1x64xf32>,
    %c0_121 = arith.constant 0 : index
    %c0_122 = arith.constant 0 : index
    %299 = vector.load %arg16[%c0_121, %c0_122] : memref<8x64xf32, #tpu.memory_space<vmem>>, vector<8x64xf32>
    %cst_123 = arith.constant dense<0.000000e+00> : vector<8x8xf32>
    %300 = tpu.matmul %299, %299, %cst_123 {dimension_numbers = #tpu.dot_dimension_numbers<[1], [1], [0], [0], [0, 0, 1, 0], [], []>} : vector<8x64xf32>, vector<8x64xf32>, vector<8x8xf32> -> vector<8x8xf32>
    %cst_124 = arith.constant 1.250000e-01 : f32
    %301 = vector.broadcast %cst_124 : f32 to vector<8x8xf32>
    %302 = arith.mulf %300, %301 : vector<8x8xf32>
    %cst_125 = arith.constant dense<0xFF800000> : vector<8xf32>
    %303 = vector.multi_reduction <maximumf>, %302, %cst_125 [1] : vector<8x8xf32> to vector<8xf32>
    %304 = vector.shape_cast %303 : vector<8xf32> to vector<8x1xf32>
    %305 = vector.broadcast %304 : vector<8x1xf32> to vector<8x8xf32>
    %306 = arith.subf %302, %305 : vector<8x8xf32>
    %307 = math.exp %306 : vector<8x8xf32>
    %cst_126 = arith.constant dense<0.000000e+00> : vector<8xf32>
    %308 = vector.multi_reduction <add>, %307, %cst_126 [1] : vector<8x8xf32> to vector<8xf32>
    %309 = vector.shape_cast %308 : vector<8xf32> to vector<8x1xf32>
    %310 = vector.broadcast %309 : vector<8x1xf32> to vector<8x8xf32>
    %311 = arith.divf %307, %310 : vector<8x8xf32>
    %cst_127 = arith.constant dense<0.000000e+00> : vector<8x64xf32>
    %312 = tpu.matmul %311, %299, %cst_127 {dimension_numbers = #tpu.dot_dimension_numbers<[1], [0], [0], [1], [0, 0, 1, 1], [], []>} : vector<8x8xf32>, vector<8x64xf32>, vector<8x64xf32> -> vector<8x64xf32>
    %c0_128 = arith.constant 0 : index
    %c0_129 = arith.constant 0 : index
    %313 = vector.load %arg9[%c0_128, %c0_129] : memref<64x67xf32, #tpu.memory_space<vmem>>, vector<64x67xf32>
    %cst_130 = arith.constant dense<0.000000e+00> : vector<8x67xf32>
    %314 = tpu.matmul %312, %313, %cst_130 {dimension_numbers = #tpu.dot_dimension_numbers<[1], [0], [0], [1], [0, 0, 1, 1], [], []>} : vector<8x64xf32>, vector<64x67xf32>, vector<8x67xf32> -> vector<8x67xf32>
    %c0_131 = arith.constant 0 : index
    %c0_132 = arith.constant 0 : index
    %315 = vector.load %arg10[%c0_131, %c0_132] : memref<1x67xf32, #tpu.memory_space<vmem>>, vector<1x67xf32>
    %316 = vector.broadcast %315 : vector<1x67xf32> to vector<8x67xf32>
    %317 = arith.addf %314, %316 : vector<8x67xf32>
    %318 = vector.extract_strided_slice %317 {offsets = [0, 0], sizes = [8, 64], strides = [1, 1]} : vector<8x67xf32> to vector<8x64xf32>
    %c0_133 = arith.constant 0 : index
    %c0_134 = arith.constant 0 : index
    %c0_135 = arith.constant 0 : index
    %319 = vector.load %arg2[%c0_133, %c0_134, %c0_135] : memref<1x8x32xf32, #tpu.memory_space<vmem>>, vector<1x8x32xf32>
    %320 = vector.shape_cast %319 : vector<1x8x32xf32> to vector<8x32xf32>
    %c0_136 = arith.constant 0 : index
    %c0_137 = arith.constant 0 : index
    %321 = vector.load %arg11[%c0_136, %c0_137] : memref<32x64xf32, #tpu.memory_space<vmem>>, vector<32x64xf32>
    %cst_138 = arith.constant dense<0.000000e+00> : vector<8x64xf32>
    %322 = tpu.matmul %320, %321, %cst_138 {dimension_numbers = #tpu.dot_dimension_numbers<[1], [0], [0], [1], [0, 0, 1, 1], [], []>} : vector<8x32xf32>, vector<32x64xf32>, vector<8x64xf32> -> vector<8x64xf32>
    %323 = arith.addf %318, %322 : vector<8x64xf32>
    %cst_139 = arith.constant 0.000000e+00 : f32
    %324 = vector.broadcast %cst_139 : f32 to vector<8x64xf32>
    %325 = arith.maximumf %323, %324 : vector<8x64xf32>
    %326 = vector.extract_strided_slice %317 {offsets = [0, 64], sizes = [8, 1], strides = [1, 1]} : vector<8x67xf32> to vector<8x1xf32>
    %327 = vector.extract_strided_slice %317 {offsets = [0, 65], sizes = [8, 1], strides = [1, 1]} : vector<8x67xf32> to vector<8x1xf32>
    %328 = vector.extract_strided_slice %317 {offsets = [0, 66], sizes = [8, 1], strides = [1, 1]} : vector<8x67xf32> to vector<8x1xf32>
    %c0_140 = arith.constant 0 : index
    %c0_141 = arith.constant 0 : index
    %329 = vector.load %arg12[%c0_140, %c0_141] : memref<64x1xf32, #tpu.memory_space<vmem>>, vector<64x1xf32>
    %cst_142 = arith.constant dense<0.000000e+00> : vector<8x1xf32>
    %330 = tpu.matmul %325, %329, %cst_142 {dimension_numbers = #tpu.dot_dimension_numbers<[1], [0], [0], [1], [0, 0, 1, 1], [], []>} : vector<8x64xf32>, vector<64x1xf32>, vector<8x1xf32> -> vector<8x1xf32>
    %c0_143 = arith.constant 0 : index
    %c0_144 = arith.constant 0 : index
    %331 = vector.load %arg13[%c0_143, %c0_144] : memref<1x1xf32, #tpu.memory_space<vmem>>, vector<1x1xf32>
    %332 = vector.broadcast %331 : vector<1x1xf32> to vector<8x1xf32>
    %333 = arith.addf %330, %332 : vector<8x1xf32>
    %334 = arith.maximumf %327, %328 : vector<8x1xf32>
    %335 = arith.subf %327, %334 : vector<8x1xf32>
    %336 = math.exp %335 : vector<8x1xf32>
    %337 = arith.subf %328, %334 : vector<8x1xf32>
    %338 = math.exp %337 : vector<8x1xf32>
    %339 = arith.mulf %336, %326 : vector<8x1xf32>
    %340 = arith.mulf %338, %333 : vector<8x1xf32>
    %341 = arith.addf %339, %340 : vector<8x1xf32>
    %342 = arith.addf %336, %338 : vector<8x1xf32>
    %343 = arith.divf %341, %342 : vector<8x1xf32>
    %cst_145 = arith.constant 1.000000e+00 : f32
    %344 = vector.broadcast %cst_145 : f32 to vector<1x1xf32>
    %cst_146 = arith.constant dense<0.000000e+00> : vector<1x8xf32>
    %345 = tpu.matmul %344, %343, %cst_146 {dimension_numbers = #tpu.dot_dimension_numbers<[1], [1], [0], [0], [0, 0, 1, 0], [], []>} : vector<1x1xf32>, vector<8x1xf32>, vector<1x8xf32> -> vector<1x8xf32>
    %346 = vector.shape_cast %345 : vector<1x8xf32> to vector<1x1x8xf32>
    %c0_147 = arith.constant 0 : index
    %c0_148 = arith.constant 0 : index
    %c0_149 = arith.constant 0 : index
    %347 = vector.load %arg14[%c0_147, %c0_148, %c0_149] : memref<1x1x8xf32, #tpu.memory_space<vmem>>, vector<1x1x8xf32>
    tpu.vector_store %arg14[%c0_147, %c0_148, %c0_149], %346 {strides = array<i32>} : memref<1x1x8xf32, #tpu.memory_space<vmem>>, vector<1x1x8xf32>,
    return
  }
  func.func @transform_0(%arg0: i32) -> (i32, i32, i32) {
    %c0_i32 = arith.constant 0 : i32
    %c0_i32_0 = arith.constant 0 : i32
    %c0_i32_1 = arith.constant 0 : i32
    return %arg0, %c0_i32, %c0_i32_0 : i32, i32, i32
  }
  func.func @transform_1(%arg0: i32) -> (i32, i32, i32) {
    %c0_i32 = arith.constant 0 : i32
    %c0_i32_0 = arith.constant 0 : i32
    %c0_i32_1 = arith.constant 0 : i32
    return %arg0, %c0_i32, %c0_i32_0 : i32, i32, i32
  }
  func.func @transform_2(%arg0: i32) -> (i32, i32, i32) {
    %c0_i32 = arith.constant 0 : i32
    %c0_i32_0 = arith.constant 0 : i32
    %c0_i32_1 = arith.constant 0 : i32
    %c0_i32_2 = arith.constant 0 : i32
    return %c0_i32, %c0_i32_0, %c0_i32_1 : i32, i32, i32
  }
  func.func @transform_3(%arg0: i32) -> (i32, i32) {
    %c0_i32 = arith.constant 0 : i32
    %c0_i32_0 = arith.constant 0 : i32
    %c0_i32_1 = arith.constant 0 : i32
    return %c0_i32, %c0_i32_0 : i32, i32
  }
  func.func @transform_4(%arg0: i32) -> (i32, i32) {
    %c0_i32 = arith.constant 0 : i32
    %c0_i32_0 = arith.constant 0 : i32
    %c0_i32_1 = arith.constant 0 : i32
    return %c0_i32, %c0_i32_0 : i32, i32
  }
  func.func @transform_5(%arg0: i32) -> (i32, i32) {
    %c0_i32 = arith.constant 0 : i32
    %c0_i32_0 = arith.constant 0 : i32
    %c0_i32_1 = arith.constant 0 : i32
    return %c0_i32, %c0_i32_0 : i32, i32
  }
  func.func @transform_6(%arg0: i32) -> (i32, i32) {
    %c0_i32 = arith.constant 0 : i32
    %c0_i32_0 = arith.constant 0 : i32
    %c0_i32_1 = arith.constant 0 : i32
    return %c0_i32, %c0_i32_0 : i32, i32
  }
  func.func @transform_7(%arg0: i32) -> (i32, i32) {
    %c0_i32 = arith.constant 0 : i32
    %c0_i32_0 = arith.constant 0 : i32
    %c0_i32_1 = arith.constant 0 : i32
    return %c0_i32, %c0_i32_0 : i32, i32
  }
  func.func @transform_8(%arg0: i32) -> (i32, i32) {
    %c0_i32 = arith.constant 0 : i32
    %c0_i32_0 = arith.constant 0 : i32
    %c0_i32_1 = arith.constant 0 : i32
    return %c0_i32, %c0_i32_0 : i32, i32
  }
  func.func @transform_9(%arg0: i32) -> (i32, i32) {
    %c0_i32 = arith.constant 0 : i32
    %c0_i32_0 = arith.constant 0 : i32
    %c0_i32_1 = arith.constant 0 : i32
    return %c0_i32, %c0_i32_0 : i32, i32
  }
  func.func @transform_10(%arg0: i32) -> (i32, i32) {
    %c0_i32 = arith.constant 0 : i32
    %c0_i32_0 = arith.constant 0 : i32
    %c0_i32_1 = arith.constant 0 : i32
    return %c0_i32, %c0_i32_0 : i32, i32
  }
  func.func @transform_11(%arg0: i32) -> (i32, i32) {
    %c0_i32 = arith.constant 0 : i32
    %c0_i32_0 = arith.constant 0 : i32
    %c0_i32_1 = arith.constant 0 : i32
    return %c0_i32, %c0_i32_0 : i32, i32
  }
  func.func @transform_12(%arg0: i32) -> (i32, i32) {
    %c0_i32 = arith.constant 0 : i32
    %c0_i32_0 = arith.constant 0 : i32
    %c0_i32_1 = arith.constant 0 : i32
    return %c0_i32, %c0_i32_0 : i32, i32
  }
  func.func @transform_13(%arg0: i32) -> (i32, i32, i32) {
    %c0_i32 = arith.constant 0 : i32
    %c0_i32_0 = arith.constant 0 : i32
    %c0_i32_1 = arith.constant 0 : i32
    return %arg0, %c0_i32, %c0_i32_0 : i32, i32, i32
  }
}

</mosaic_0001>

<llo_original>
// kernel: tpu_custom_call.1
$region0: #{tpu_custom_call.1}
  #allocation0 [shape = 'u32[]', space=smem, size = 0x4, offset = 0x4, fixed_abs, tag = 'smem constant byte address 0x4 - core index']
  #allocation1 [shape = 'u32[144,128]{1,0:T(1,128)}', space=vmem, size = 0x12000, scoped, tag = 'internal scratch']
  #allocation2 [shape = 'f32[8,128]{1,0:T(8,128)}', space=vmem, size = 0x1000, scoped, tag = 'scratch operand']
  #allocation3 [shape = 'f32[8,64]{1,0:T(8,128)}', space=vmem, size = 0x1000, scoped, tag = 'scratch operand']
  #allocation4 [shape = 'f32[1,1]{1,0:T(1,128)S(1)}', space=vmem, size = 0x200, scoped, tag = 'scoped memory for tpu_custom_call.1']
  %s0 = inlined_call_operand.hbm [shape: f32[2,8,64], index: 0, kind: input, shape index: {}]
  %s1 = inlined_call_operand.hbm [shape: f32[2,8,32], index: 1, kind: input, shape index: {}]
  %s2 = inlined_call_operand.vmem [shape: f32[5,64,128], index: 2, kind: input, shape index: {}]
  %s3 = inlined_call_operand.vmem [shape: f32[1,128], index: 3, kind: input, shape index: {}]
  %s4 = inlined_call_operand.vmem [shape: f32[128,192], index: 4, kind: input, shape index: {}]
  %s5 = inlined_call_operand.vmem [shape: f32[1,192], index: 5, kind: input, shape index: {}]
  %s6 = inlined_call_operand.vmem [shape: f32[64,192], index: 6, kind: input, shape index: {}]
  %s7 = inlined_call_operand.vmem [shape: f32[1,64], index: 7, kind: input, shape index: {}]
  %s8 = inlined_call_operand.vmem [shape: f32[64,67], index: 8, kind: input, shape index: {}]
  %s9 = inlined_call_operand.vmem [shape: f32[1,67], index: 9, kind: input, shape index: {}]
  %s10 = inlined_call_operand.vmem [shape: f32[32,64], index: 10, kind: input, shape index: {}]
  %s11 = inlined_call_operand.vmem [shape: f32[64,1], index: 11, kind: input, shape index: {}]
  %s12 = inlined_call_operand.<no memory space> [shape: f32[1,1], index: 12, kind: input, shape index: {}]
  %s13 = inlined_call_operand.hbm [shape: f32[2,1,8], index: 13, kind: output, shape index: {}]
  %s14 = sld [smem:[#allocation0]]
  $region93: #{tpu_custom_call.1} parent=0
    _
  %s16 = ssub.s32 1, %s14
  %s17 = scalar_select 0, %s16, %s14
  %v18 = vstv %s12
  %19 = vst [vmem:[#allocation4] sm:$0x1] %v18
  $region1: #{tpu_custom_call.1} parent=0
    #allocation5 [shape = 'u8[8192]{0}', space=vmem, size = 0x2000, scoped, tag = 'input window, operand 0']
    #allocation6 [shape = 's32[2]{0}', space=sflag, size = 0x8, scoped, tag = 'scoped memory for tpu_custom_call.1']
    #allocation7 [shape = 's32[2]{0}', space=sflag, size = 0x8, scoped, tag = 'scoped memory for tpu_custom_call.1']
    #allocation8 [shape = 'u8[8192]{0}', space=vmem, size = 0x2000, scoped, tag = 'input window, operand 1']
    #allocation9 [shape = 's32[2]{0}', space=sflag, size = 0x8, scoped, tag = 'scoped memory for tpu_custom_call.1']
    #allocation10 [shape = 'u8[1024]{0}', space=vmem, size = 0x400, scoped, tag = 'output window, operand 0']
    %20 = vsyncpa [#allocation6], 0
    %s21 = scalar_lea.sflag [#allocation6], 1
    %22 = vsyncpa %s21, 0
    %23 = vsyncpa [#allocation9], 0
    %s24 = scalar_lea.sflag [#allocation9], 1
    %25 = vsyncpa %s24, 0
    %26 = vsyncpa [#allocation7], 0
    %s27 = scalar_lea.sflag [#allocation7], 1
    %28 = vsyncpa %s27, 0
    loop: start=0, step=1, limit=4
    $region2: #{tpu_custom_call.1} parent=1 // loop_pre_header
      _
    $region3: #{tpu_custom_call.1} parent=1 // loop_header
      %s30 = sphi 0, %s34
      %p31 = scmp.ge.s32.totalorder %s30, 4
      %s40 = sphi 0, %s42
      %s43 = sphi 0, %s40
      %s44 = sphi 0, %s43
      %s60 = sphi 0, %s44
      %s66 = sphi 0, %s68
      %s69 = sphi 0, %s66
      %s70 = sphi 0, %s69
      %s86 = sphi 0, %s70
      %s90 = sphi 0, %s90
      %s92 = sphi 0, %s90
      %s93 = sphi 0, %s92
      %s107 = sphi 0, %s93
      %s111 = sphi 0, %s111
      %s113 = sphi 0, %s111
      %s114 = sphi 0, %s113
      %s128 = sphi 0, %s114
      %s132 = sphi 0, %s132
      %s134 = sphi 0, %s132
      %s135 = sphi 0, %s134
      %s149 = sphi 0, %s135
      %s153 = sphi 0, %s153
      %s155 = sphi 0, %s153
      %s156 = sphi 0, %s155
      %s170 = sphi 0, %s156
      %s174 = sphi 0, %s174
      %s176 = sphi 0, %s174
      %s177 = sphi 0, %s176
      %s191 = sphi 0, %s177
      %s195 = sphi 0, %s195
      %s197 = sphi 0, %s195
      %s198 = sphi 0, %s197
      %s212 = sphi 0, %s198
      %s216 = sphi 0, %s216
      %s218 = sphi 0, %s216
      %s219 = sphi 0, %s218
      %s233 = sphi 0, %s219
      %s237 = sphi 0, %s237
      %s239 = sphi 0, %s237
      %s240 = sphi 0, %s239
      %s254 = sphi 0, %s240
      %s258 = sphi 0, %s258
      %s260 = sphi 0, %s258
      %s261 = sphi 0, %s260
      %s275 = sphi 0, %s261
      %s279 = sphi 0, %s279
      %s281 = sphi 0, %s279
      %s282 = sphi 0, %s281
      %s296 = sphi 0, %s282
      %s300 = sphi 0, %s300
      %s302 = sphi 0, %s300
      %s303 = sphi 0, %s302
      %s317 = sphi 0, %s303
      %s323 = sphi 0, %s325
      %s326 = sphi 0, %s323
      %s327 = sphi 0, %s326
      %s343 = sphi 0, %s327
    $region4: #{tpu_custom_call.1} parent=1 // loop_header_branch
      %33 = sbr.rel (%p31) target = $region8
    $region5: #{tpu_custom_call.1} parent=1 // loop_body
      %s35 = ssub.s32 %s30, 1
      %s36 = ssub.s32 %s30, 2
      %s37 = sadd.s32 %s30, 1
      %s38 = ssub.s32 %s30, %s37
      %p39 = scmp.eq.s32.totalorder %s38, 0
      %s41 = sadd.s32 %s40, 1
      %s42 = scalar_select %p39, %s40, %s41
      %p45 = pneg %p39
      %p46 = scmp.eq.s32.totalorder %s30, 1
      %p47 = por %p45, %p46
      %p48 = scmp.ne.s32.totalorder %s40, %s43
      %p49 = scmp.eq.s32.totalorder %s30, 0
      %p50 = por %p48, %p49
      %p51 = scmp.ne.s32.totalorder %s40, %s43
      %p52 = scmp.eq.s32.totalorder %s35, 1
      %p53 = por %p51, %p52
      %p54 = scmp.ne.s32.totalorder %s43, %s44
      %p55 = scmp.eq.s32.totalorder %s35, 0
      %p56 = por %p54, %p55
      %p57 = scmp.ne.s32.totalorder %s43, %s44
      %p58 = scmp.eq.s32.totalorder %s36, 1
      %p59 = por %p57, %p58
      %p61 = scmp.ne.s32.totalorder %s44, %s60
      %p62 = scmp.eq.s32.totalorder %s36, 0
      %p63 = por %p61, %p62
      %s64 = ssub.s32 %s30, %s37
      %p65 = scmp.eq.s32.totalorder %s64, 0
      %s67 = sadd.s32 %s66, 1
      %s68 = scalar_select %p65, %s66, %s67
      %p71 = pneg %p65
      %p72 = scmp.eq.s32.totalorder %s30, 1
      %p73 = por %p71, %p72
      %p74 = scmp.ne.s32.totalorder %s66, %s69
      %p75 = scmp.eq.s32.totalorder %s30, 0
      %p76 = por %p74, %p75
      %p77 = scmp.ne.s32.totalorder %s66, %s69
      %p78 = scmp.eq.s32.totalorder %s35, 1
      %p79 = por %p77, %p78
      %p80 = scmp.ne.s32.totalorder %s69, %s70
      %p81 = scmp.eq.s32.totalorder %s35, 0
      %p82 = por %p80, %p81
      %p83 = scmp.ne.s32.totalorder %s69, %s70
      %p84 = scmp.eq.s32.totalorder %s36, 1
      %p85 = por %p83, %p84
      %p87 = scmp.ne.s32.totalorder %s70, %s86
      %p88 = scmp.eq.s32.totalorder %s36, 0
      %p89 = por %p87, %p88
      %s91 = sadd.s32 %s90, 1
      %p94 = scmp.eq.s32.totalorder %s30, 1
      %p95 = scmp.ne.s32.totalorder %s90, %s92
      %p96 = scmp.eq.s32.totalorder %s30, 0
      %p97 = por %p95, %p96
      %p98 = scmp.ne.s32.totalorder %s90, %s92
      %p99 = scmp.eq.s32.totalorder %s35, 1
      %p100 = por %p98, %p99
      %p101 = scmp.ne.s32.totalorder %s92, %s93
      %p102 = scmp.eq.s32.totalorder %s35, 0
      %p103 = por %p101, %p102
      %p104 = scmp.ne.s32.totalorder %s92, %s93
      %p105 = scmp.eq.s32.totalorder %s36, 1
      %p106 = por %p104, %p105
      %p108 = scmp.ne.s32.totalorder %s93, %s107
      %p109 = scmp.eq.s32.totalorder %s36, 0
      %p110 = por %p108, %p109
      %s112 = sadd.s32 %s111, 1
      %p115 = scmp.eq.s32.totalorder %s30, 1
      %p116 = scmp.ne.s32.totalorder %s111, %s113
      %p117 = scmp.eq.s32.totalorder %s30, 0
      %p118 = por %p116, %p117
      %p119 = scmp.ne.s32.totalorder %s111, %s113
      %p120 = scmp.eq.s32.totalorder %s35, 1
      %p121 = por %p119, %p120
      %p122 = scmp.ne.s32.totalorder %s113, %s114
      %p123 = scmp.eq.s32.totalorder %s35, 0
      %p124 = por %p122, %p123
      %p125 = scmp.ne.s32.totalorder %s113, %s114
      %p126 = scmp.eq.s32.totalorder %s36, 1
      %p127 = por %p125, %p126
      %p129 = scmp.ne.s32.totalorder %s114, %s128
      %p130 = scmp.eq.s32.totalorder %s36, 0
      %p131 = por %p129, %p130
      %s133 = sadd.s32 %s132, 1
      %p136 = scmp.eq.s32.totalorder %s30, 1
      %p137 = scmp.ne.s32.totalorder %s132, %s134
      %p138 = scmp.eq.s32.totalorder %s30, 0
      %p139 = por %p137, %p138
      %p140 = scmp.ne.s32.totalorder %s132, %s134
      %p141 = scmp.eq.s32.totalorder %s35, 1
      %p142 = por %p140, %p141
      %p143 = scmp.ne.s32.totalorder %s134, %s135
      %p144 = scmp.eq.s32.totalorder %s35, 0
      %p145 = por %p143, %p144
      %p146 = scmp.ne.s32.totalorder %s134, %s135
      %p147 = scmp.eq.s32.totalorder %s36, 1
      %p148 = por %p146, %p147
      %p150 = scmp.ne.s32.totalorder %s135, %s149
      %p151 = scmp.eq.s32.totalorder %s36, 0
      %p152 = por %p150, %p151
      %s154 = sadd.s32 %s153, 1
      %p157 = scmp.eq.s32.totalorder %s30, 1
      %p158 = scmp.ne.s32.totalorder %s153, %s155
      %p159 = scmp.eq.s32.totalorder %s30, 0
      %p160 = por %p158, %p159
      %p161 = scmp.ne.s32.totalorder %s153, %s155
      %p162 = scmp.eq.s32.totalorder %s35, 1
      %p163 = por %p161, %p162
      %p164 = scmp.ne.s32.totalorder %s155, %s156
      %p165 = scmp.eq.s32.totalorder %s35, 0
      %p166 = por %p164, %p165
      %p167 = scmp.ne.s32.totalorder %s155, %s156
      %p168 = scmp.eq.s32.totalorder %s36, 1
      %p169 = por %p167, %p168
      %p171 = scmp.ne.s32.totalorder %s156, %s170
      %p172 = scmp.eq.s32.totalorder %s36, 0
      %p173 = por %p171, %p172
      %s175 = sadd.s32 %s174, 1
      %p178 = scmp.eq.s32.totalorder %s30, 1
      %p179 = scmp.ne.s32.totalorder %s174, %s176
      %p180 = scmp.eq.s32.totalorder %s30, 0
      %p181 = por %p179, %p180
      %p182 = scmp.ne.s32.totalorder %s174, %s176
      %p183 = scmp.eq.s32.totalorder %s35, 1
      %p184 = por %p182, %p183
      %p185 = scmp.ne.s32.totalorder %s176, %s177
      %p186 = scmp.eq.s32.totalorder %s35, 0
      %p187 = por %p185, %p186
      %p188 = scmp.ne.s32.totalorder %s176, %s177
      %p189 = scmp.eq.s32.totalorder %s36, 1
      %p190 = por %p188, %p189
      %p192 = scmp.ne.s32.totalorder %s177, %s191
      %p193 = scmp.eq.s32.totalorder %s36, 0
      %p194 = por %p192, %p193
      %s196 = sadd.s32 %s195, 1
      %p199 = scmp.eq.s32.totalorder %s30, 1
      %p200 = scmp.ne.s32.totalorder %s195, %s197
      %p201 = scmp.eq.s32.totalorder %s30, 0
      %p202 = por %p200, %p201
      %p203 = scmp.ne.s32.totalorder %s195, %s197
      %p204 = scmp.eq.s32.totalorder %s35, 1
      %p205 = por %p203, %p204
      %p206 = scmp.ne.s32.totalorder %s197, %s198
      %p207 = scmp.eq.s32.totalorder %s35, 0
      %p208 = por %p206, %p207
      %p209 = scmp.ne.s32.totalorder %s197, %s198
      %p210 = scmp.eq.s32.totalorder %s36, 1
      %p211 = por %p209, %p210
      %p213 = scmp.ne.s32.totalorder %s198, %s212
      %p214 = scmp.eq.s32.totalorder %s36, 0
      %p215 = por %p213, %p214
      %s217 = sadd.s32 %s216, 1
      %p220 = scmp.eq.s32.totalorder %s30, 1
      %p221 = scmp.ne.s32.totalorder %s216, %s218
      %p222 = scmp.eq.s32.totalorder %s30, 0
      %p223 = por %p221, %p222
      %p224 = scmp.ne.s32.totalorder %s216, %s218
      %p225 = scmp.eq.s32.totalorder %s35, 1
      %p226 = por %p224, %p225
      %p227 = scmp.ne.s32.totalorder %s218, %s219
      %p228 = scmp.eq.s32.totalorder %s35, 0
      %p229 = por %p227, %p228
      %p230 = scmp.ne.s32.totalorder %s218, %s219
      %p231 = scmp.eq.s32.totalorder %s36, 1
      %p232 = por %p230, %p231
      %p234 = scmp.ne.s32.totalorder %s219, %s233
      %p235 = scmp.eq.s32.totalorder %s36, 0
      %p236 = por %p234, %p235
      %s238 = sadd.s32 %s237, 1
      %p241 = scmp.eq.s32.totalorder %s30, 1
      %p242 = scmp.ne.s32.totalorder %s237, %s239
      %p243 = scmp.eq.s32.totalorder %s30, 0
      %p244 = por %p242, %p243
      %p245 = scmp.ne.s32.totalorder %s237, %s239
      %p246 = scmp.eq.s32.totalorder %s35, 1
      %p247 = por %p245, %p246
      %p248 = scmp.ne.s32.totalorder %s239, %s240
      %p249 = scmp.eq.s32.totalorder %s35, 0
      %p250 = por %p248, %p249
      %p251 = scmp.ne.s32.totalorder %s239, %s240
      %p252 = scmp.eq.s32.totalorder %s36, 1
      %p253 = por %p251, %p252
      %p255 = scmp.ne.s32.totalorder %s240, %s254
      %p256 = scmp.eq.s32.totalorder %s36, 0
      %p257 = por %p255, %p256
      %s259 = sadd.s32 %s258, 1
      %p262 = scmp.eq.s32.totalorder %s30, 1
      %p263 = scmp.ne.s32.totalorder %s258, %s260
      %p264 = scmp.eq.s32.totalorder %s30, 0
      %p265 = por %p263, %p264
      %p266 = scmp.ne.s32.totalorder %s258, %s260
      %p267 = scmp.eq.s32.totalorder %s35, 1
      %p268 = por %p266, %p267
      %p269 = scmp.ne.s32.totalorder %s260, %s261
      %p270 = scmp.eq.s32.totalorder %s35, 0
      %p271 = por %p269, %p270
      %p272 = scmp.ne.s32.totalorder %s260, %s261
      %p273 = scmp.eq.s32.totalorder %s36, 1
      %p274 = por %p272, %p273
      %p276 = scmp.ne.s32.totalorder %s261, %s275
      %p277 = scmp.eq.s32.totalorder %s36, 0
      %p278 = por %p276, %p277
      %s280 = sadd.s32 %s279, 1
      %p283 = scmp.eq.s32.totalorder %s30, 1
      %p284 = scmp.ne.s32.totalorder %s279, %s281
      %p285 = scmp.eq.s32.totalorder %s30, 0
      %p286 = por %p284, %p285
      %p287 = scmp.ne.s32.totalorder %s279, %s281
      %p288 = scmp.eq.s32.totalorder %s35, 1
      %p289 = por %p287, %p288
      %p290 = scmp.ne.s32.totalorder %s281, %s282
      %p291 = scmp.eq.s32.totalorder %s35, 0
      %p292 = por %p290, %p291
      %p293 = scmp.ne.s32.totalorder %s281, %s282
      %p294 = scmp.eq.s32.totalorder %s36, 1
      %p295 = por %p293, %p294
      %p297 = scmp.ne.s32.totalorder %s282, %s296
      %p298 = scmp.eq.s32.totalorder %s36, 0
      %p299 = por %p297, %p298
      %s301 = sadd.s32 %s300, 1
      %p304 = scmp.eq.s32.totalorder %s30, 1
      %p305 = scmp.ne.s32.totalorder %s300, %s302
      %p306 = scmp.eq.s32.totalorder %s30, 0
      %p307 = por %p305, %p306
      %p308 = scmp.ne.s32.totalorder %s300, %s302
      %p309 = scmp.eq.s32.totalorder %s35, 1
      %p310 = por %p308, %p309
      %p311 = scmp.ne.s32.totalorder %s302, %s303
      %p312 = scmp.eq.s32.totalorder %s35, 0
      %p313 = por %p311, %p312
      %p314 = scmp.ne.s32.totalorder %s302, %s303
      %p315 = scmp.eq.s32.totalorder %s36, 1
      %p316 = por %p314, %p315
      %p318 = scmp.ne.s32.totalorder %s303, %s317
      %p319 = scmp.eq.s32.totalorder %s36, 0
      %p320 = por %p318, %p319
      %s321 = ssub.s32 %s30, %s37
      %p322 = scmp.eq.s32.totalorder %s321, 0
      %s324 = sadd.s32 %s323, 1
      %s325 = scalar_select %p322, %s323, %s324
      %p328 = pneg %p322
      %p329 = scmp.eq.s32.totalorder %s30, 1
      %p330 = por %p328, %p329
      %p331 = scmp.ne.s32.totalorder %s323, %s326
      %p332 = scmp.eq.s32.totalorder %s30, 0
      %p333 = por %p331, %p332
      %p334 = scmp.ne.s32.totalorder %s323, %s326
      %p335 = scmp.eq.s32.totalorder %s35, 1
      %p336 = por %p334, %p335
      %p337 = scmp.ne.s32.totalorder %s326, %s327
      %p338 = scmp.eq.s32.totalorder %s35, 0
      %p339 = por %p337, %p338
      %p340 = scmp.ne.s32.totalorder %s326, %s327
      %p341 = scmp.eq.s32.totalorder %s36, 1
      %p342 = por %p340, %p341
      %p344 = scmp.ne.s32.totalorder %s327, %s343
      %p345 = scmp.eq.s32.totalorder %s36, 0
      %p346 = por %p344, %p345
      %p347 = scmp.le.s32.totalorder 1, %s30
      %p348 = scmp.lt.s32.totalorder %s30, 3
      %p349 = pnand %p347, %p348
      %p350 = pneg %p349
      // Predicated region
      $region9: #{tpu_custom_call.1} parent=5 // pred_check
        _
      $region10: #{tpu_custom_call.1} parent=5 // pred_check_branch
        %352 = sbr.rel (%p349) target = $region12
      $region11: #{tpu_custom_call.1} parent=5 // pred_region
        %s353 = ssub.s32 %s30, 1
        // Predicated region
        $region13: #{tpu_custom_call.1} parent=11 // pred_check
          %p354 = pneg %p103
        $region14: #{tpu_custom_call.1} parent=11 // pred_check_branch
          %356 = sbr.rel (%p354) target = $region16
        $region15: #{tpu_custom_call.1} parent=11 // pred_region
          _
        $region16: #{tpu_custom_call.1} parent=11 // pred_fallthru
          _
        // Predicated region
        $region17: #{tpu_custom_call.1} parent=11 // pred_check
          %p357 = pneg %p124
        $region18: #{tpu_custom_call.1} parent=11 // pred_check_branch
          %359 = sbr.rel (%p357) target = $region20
        $region19: #{tpu_custom_call.1} parent=11 // pred_region
          _
        $region20: #{tpu_custom_call.1} parent=11 // pred_fallthru
          _
        // Predicated region
        $region21: #{tpu_custom_call.1} parent=11 // pred_check
          %p360 = pneg %p145
        $region22: #{tpu_custom_call.1} parent=11 // pred_check_branch
          %362 = sbr.rel (%p360) target = $region24
        $region23: #{tpu_custom_call.1} parent=11 // pred_region
          _
        $region24: #{tpu_custom_call.1} parent=11 // pred_fallthru
          _
        // Predicated region
        $region25: #{tpu_custom_call.1} parent=11 // pred_check
          %p363 = pneg %p166
        $region26: #{tpu_custom_call.1} parent=11 // pred_check_branch
          %365 = sbr.rel (%p363) target = $region28
        $region27: #{tpu_custom_call.1} parent=11 // pred_region
          _
        $region28: #{tpu_custom_call.1} parent=11 // pred_fallthru
          _
        // Predicated region
        $region29: #{tpu_custom_call.1} parent=11 // pred_check
          %p366 = pneg %p187
        $region30: #{tpu_custom_call.1} parent=11 // pred_check_branch
          %368 = sbr.rel (%p366) target = $region32
        $region31: #{tpu_custom_call.1} parent=11 // pred_region
          _
        $region32: #{tpu_custom_call.1} parent=11 // pred_fallthru
          _
        // Predicated region
        $region33: #{tpu_custom_call.1} parent=11 // pred_check
          %p369 = pneg %p208
        $region34: #{tpu_custom_call.1} parent=11 // pred_check_branch
          %371 = sbr.rel (%p369) target = $region36
        $region35: #{tpu_custom_call.1} parent=11 // pred_region
          _
        $region36: #{tpu_custom_call.1} parent=11 // pred_fallthru
          _
        // Predicated region
        $region37: #{tpu_custom_call.1} parent=11 // pred_check
          %p372 = pneg %p229
        $region38: #{tpu_custom_call.1} parent=11 // pred_check_branch
          %374 = sbr.rel (%p372) target = $region40
        $region39: #{tpu_custom_call.1} parent=11 // pred_region
          _
        $region40: #{tpu_custom_call.1} parent=11 // pred_fallthru
          _
        // Predicated region
        $region41: #{tpu_custom_call.1} parent=11 // pred_check
          %p375 = pneg %p250
        $region42: #{tpu_custom_call.1} parent=11 // pred_check_branch
          %377 = sbr.rel (%p375) target = $region44
        $region43: #{tpu_custom_call.1} parent=11 // pred_region
          _
        $region44: #{tpu_custom_call.1} parent=11 // pred_fallthru
          _
        // Predicated region
        $region45: #{tpu_custom_call.1} parent=11 // pred_check
          %p378 = pneg %p271
        $region46: #{tpu_custom_call.1} parent=11 // pred_check_branch
          %380 = sbr.rel (%p378) target = $region48
        $region47: #{tpu_custom_call.1} parent=11 // pred_region
          _
        $region48: #{tpu_custom_call.1} parent=11 // pred_fallthru
          _
        // Predicated region
        $region49: #{tpu_custom_call.1} parent=11 // pred_check
          %p381 = pneg %p292
        $region50: #{tpu_custom_call.1} parent=11 // pred_check_branch
          %383 = sbr.rel (%p381) target = $region52
        $region51: #{tpu_custom_call.1} parent=11 // pred_region
          _
        $region52: #{tpu_custom_call.1} parent=11 // pred_fallthru
          _
        // Predicated region
        $region53: #{tpu_custom_call.1} parent=11 // pred_check
          %p384 = pneg %p313
        $region54: #{tpu_custom_call.1} parent=11 // pred_check_branch
          %386 = sbr.rel (%p384) target = $region56
        $region55: #{tpu_custom_call.1} parent=11 // pred_region
          _
        $region56: #{tpu_custom_call.1} parent=11 // pred_fallthru
          _
      $region12: #{tpu_custom_call.1} parent=5 // pred_fallthru
        _
      %p387 = scmp.lt.s32.totalorder %s30, 2
      // Predicated region
      $region57: #{tpu_custom_call.1} parent=5 // pred_check
        %p388 = pneg %p387
      $region58: #{tpu_custom_call.1} parent=5 // pred_check_branch
        %390 = sbr.rel (%p388) target = $region60
      $region59: #{tpu_custom_call.1} parent=5 // pred_region
        // Predicated region
        $region61: #{tpu_custom_call.1} parent=59 // pred_check
          %p391 = pneg %p50
        $region62: #{tpu_custom_call.1} parent=59 // pred_check_branch
          %393 = sbr.rel (%p391) target = $region64
        $region63: #{tpu_custom_call.1} parent=59 // pred_region
          %s394 = sand.u32 %s40, 1
          %s395 = scalar_lea.sflag [#allocation6], %s394
          %s396 = sand.u32 %s40, 1
          %s397 = smul.addr %s396, 8
          %s398 = scalar_lea.vmem [#allocation5], %s397
          %s400 = ssub.s32 128, 128
          %401 = vsyncadd %s395, %s400
          %s402 = smul.addr %s30, 128
          %s403 = scalar_lea.hbm %s0, %s402
          %s405 = sshll.u32 %s398, 4
          %s406 = int_to_ptr.vmem [resolvable:$true] %s405
          %408 = dma.hbm_to_vmem [thread:$0]  %s403, 128, %s406, %s395
        $region64: #{tpu_custom_call.1} parent=59 // pred_fallthru
          _
        // Predicated region
        $region65: #{tpu_custom_call.1} parent=59 // pred_check
          %p409 = pneg %p76
        $region66: #{tpu_custom_call.1} parent=59 // pred_check_branch
          %411 = sbr.rel (%p409) target = $region68
        $region67: #{tpu_custom_call.1} parent=59 // pred_region
          %s412 = sand.u32 %s66, 1
          %s413 = scalar_lea.sflag [#allocation9], %s412
          %s414 = sand.u32 %s66, 1
          %s415 = smul.addr %s414, 8
          %s416 = scalar_lea.vmem [#allocation8], %s415
          %s418 = ssub.s32 128, 128
          %419 = vsyncadd %s413, %s418
          %s420 = smul.addr %s30, 128
          %s421 = scalar_lea.hbm %s1, %s420
          %s423 = sshll.u32 %s416, 4
          %s424 = int_to_ptr.vmem [resolvable:$true] %s423
          %426 = dma.hbm_to_vmem [thread:$0]  %s421, 128, %s424, %s413
        $region68: #{tpu_custom_call.1} parent=59 // pred_fallthru
          _
      $region60: #{tpu_custom_call.1} parent=5 // pred_fallthru
        _
      %p427 = scmp.le.s32.totalorder 1, %s30
      %p428 = scmp.lt.s32.totalorder %s30, 3
      %p429 = pnand %p427, %p428
      %p430 = pneg %p429
      // Predicated region
      $region69: #{tpu_custom_call.1} parent=5 // pred_check
        _
      $region70: #{tpu_custom_call.1} parent=5 // pred_check_branch
        %432 = sbr.rel (%p429) target = $region72
      $region71: #{tpu_custom_call.1} parent=5 // pred_region
        %s433 = ssub.s32 %s30, 1
        %s434 = sand.u32 %s43, 1
        %s435 = scalar_lea.sflag [#allocation6], %s434
        %s436 = sand.u32 %s43, 1
        %s437 = smul.addr %s436, 8
        %s438 = scalar_lea.vmem [#allocation5], %s437
        // Predicated region
        $region73: #{tpu_custom_call.1} parent=71 // pred_check
          %p439 = pneg %p56
        $region74: #{tpu_custom_call.1} parent=71 // pred_check_branch
          %441 = sbr.rel (%p439) target = $region76
        $region75: #{tpu_custom_call.1} parent=71 // pred_region
          %442 = dma.done %s435, 128
        $region76: #{tpu_custom_call.1} parent=71 // pred_fallthru
          _
        %s443 = sand.u32 %s69, 1
        %s444 = scalar_lea.sflag [#allocation9], %s443
        %s445 = sand.u32 %s69, 1
        %s446 = smul.addr %s445, 8
        %s447 = scalar_lea.vmem [#allocation8], %s446
        // Predicated region
        $region77: #{tpu_custom_call.1} parent=71 // pred_check
          %p448 = pneg %p82
        $region78: #{tpu_custom_call.1} parent=71 // pred_check_branch
          %450 = sbr.rel (%p448) target = $region80
        $region79: #{tpu_custom_call.1} parent=71 // pred_region
          %451 = dma.done %s444, 128
        $region80: #{tpu_custom_call.1} parent=71 // pred_fallthru
          _
        %s452 = sand.u32 %s43, 1
        %s453 = scalar_lea.sflag [#allocation6], %s452
        %s454 = sand.u32 %s43, 1
        %s455 = smul.addr %s454, 8
        %s456 = scalar_lea.vmem [#allocation5], %s455
        %p457 = pneg %p56
        %p458 = pneg %p53
        %s459 = sand.u32 %s69, 1
        %s460 = scalar_lea.sflag [#allocation9], %s459
        %s461 = sand.u32 %s69, 1
        %s462 = smul.addr %s461, 8
        %s463 = scalar_lea.vmem [#allocation8], %s462
        %p464 = pneg %p82
        %p465 = pneg %p79
        %p466 = pneg %p103
        %p467 = pneg %p100
        %p468 = pneg %p124
        %p469 = pneg %p121
        %p470 = pneg %p145
        %p471 = pneg %p142
        %p472 = pneg %p166
        %p473 = pneg %p163
        %p474 = pneg %p187
        %p475 = pneg %p184
        %p476 = pneg %p208
        %p477 = pneg %p205
        %p478 = pneg %p229
        %p479 = pneg %p226
        %p480 = pneg %p250
        %p481 = pneg %p247
        %p482 = pneg %p271
        %p483 = pneg %p268
        %p484 = pneg %p292
        %p485 = pneg %p289
        %p486 = pneg %p313
        %p487 = pneg %p310
        %p488 = pneg %p339
        %p489 = pneg %p336
        %s490 = sand.u32 %s326, 1
        %s491 = scalar_lea.sflag [#allocation7], %s490
        %s492 = sand.u32 %s326, 1
        %s493 = scalar_lea.vmem [#allocation10], %s492
        %v494 = vld [vmem:[%s438] sm:$0xff]
        %s495 = scalar_lea.vmem %s2, 128
        %v496 = vld [vmem:[%s495] sm:$0xff]
        %v497 = vld [vmem:[%s495 + $0x8] sm:$0xff]
        %v498 = vld [vmem:[%s495 + $0x10] sm:$0xff]
        %v499 = vld [vmem:[%s495 + $0x18] sm:$0xff]
        %v500 = vld [vmem:[%s495 + $0x20] sm:$0xff]
        %v501 = vld [vmem:[%s495 + $0x28] sm:$0xff]
        %v502 = vld [vmem:[%s495 + $0x30] sm:$0xff]
        %v503 = vld [vmem:[%s495 + $0x38] sm:$0xff]
        %vm504 = vcmask 523264
        %v506 = vsel %vm504, %v494, 0
        %508 = vmatprep.subr.mxu0 0.0
        %509 = vmatpush1.msra.mxu0 %v496
        %510 = vmatprep.subr.mxu0 0.0
        %511 = vmatpush1.msra.mxu0 %v497
        %512 = vmatprep.subr.mxu0 0.0
        %513 = vmatpush1.msra.mxu0 %v498
        %514 = vmatprep.subr.mxu0 0.0
        %515 = vmatpush1.msra.mxu0 %v499
        %516 = vmatprep.subr.mxu0 0.0
        %517 = vmatpush1.msra.mxu0 %v500
        %518 = vmatprep.subr.mxu0 0.0
        %519 = vmatpush1.msra.mxu0 %v501
        %520 = vmatprep.subr.mxu0 0.0
        %521 = vmatpush1.msra.mxu0 %v502
        %522 = vmatprep.subr.mxu0 0.0
        %523 = vmatpush1.msra.mxu0 %v503
        %524 = vmatprep.subr.mxu0 0.0
        %525 = vmatpush1.msra.mxu0 0.0
        %526 = vmatprep.subr.mxu0 0.0
        %527 = vmatpush1.msra.mxu0 0.0
        %528 = vmatprep.subr.mxu0 0.0
        %529 = vmatpush1.msra.mxu0 0.0
        %530 = vmatprep.subr.mxu0 0.0
        %531 = vmatpush1.msra.mxu0 0.0
        %532 = vmatprep.subr.mxu0 0.0
        %533 = vmatpush1.msra.mxu0 0.0
        %534 = vmatprep.subr.mxu0 0.0
        %535 = vmatpush1.msra.mxu0 0.0
        %536 = vmatprep.subr.mxu0 0.0
        %537 = vmatpush1.msra.mxu0 0.0
        %538 = vmatprep.subr.mxu0 0.0
        %539 = vmatpush1.msra.mxu0 0.0
        %540 = vmatprep.subr.mxu0 0.0
        %541 = vmatpush1.msra.mxu0 0.0
        %542 = vmatprep.subr.mxu0 0.0
        %543 = vmatpush1.msra.mxu0 0.0
        %544 = vmatprep.subr.mxu0 0.0
        %545 = vmatpush1.msra.mxu0 0.0
        %546 = vmatprep.subr.mxu0 0.0
        %547 = vmatpush1.msra.mxu0 0.0
        %548 = vmatprep.subr.mxu0 0.0
        %549 = vmatpush1.msra.mxu0 0.0
        %550 = vmatprep.subr.mxu0 0.0
        %551 = vmatpush1.msra.mxu0 0.0
        %552 = vmatprep.subr.mxu0 0.0
        %553 = vmatpush1.msra.mxu0 0.0
        %554 = vmatprep.subr.mxu0 0.0
        %555 = vmatpush1.msra.mxu0 0.0
        %556 = vmatprep.subr.mxu0 0.0
        %557 = vmatpush1.msra.mxu0 0.0
        %558 = vmatprep.subr.mxu0 0.0
        %559 = vmatpush1.msra.mxu0 0.0
        %560 = vmatprep.subr.mxu0 0.0
        %561 = vmatpush1.msra.mxu0 0.0
        %562 = vmatprep.subr.mxu0 0.0
        %563 = vmatpush1.msra.mxu0 0.0
        %564 = vmatprep.subr.mxu0 0.0
        %565 = vmatpush1.msra.mxu0 0.0
        %566 = vmatprep.subr.mxu0 0.0
        %567 = vmatpush1.msra.mxu0 0.0
        %568 = vmatprep.subr.mxu0 0.0
        %569 = vmatpush1.msra.mxu0 0.0
        %570 = vmatprep.subr.mxu0 0.0
        %571 = vmatpush1.msra.mxu0 0.0
        %572 = vmatprep.mubr.f32.mxu0 0.0
        %573 = vmatmul.mubr.f32.gmra.mrb[0].mxu0 %v506
        %v574 = vpop.f32.mrb[0].mxu0
        %v575 = vadd.f32 0.0, %v574
        %v576 = vpop.f32.mrb[0].mxu0
        %577 = vdwg.mxu0
        %578 = vst [vmem:[#allocation2] sm:$0xff] %v575
        %v579 = vld [vmem:[#allocation2 + $0x2] sm:$0x3f]
        %v580 = vld [vmem:[%s438] sm:$0x3f]
        %v581 = vld [vmem:[%s2] sm:$0xff]
        %v582 = vld [vmem:[%s2 + $0x8] sm:$0xff]
        %v583 = vld [vmem:[%s2 + $0x10] sm:$0xff]
        %v584 = vld [vmem:[%s2 + $0x18] sm:$0xff]
        %v585 = vld [vmem:[%s2 + $0x20] sm:$0xff]
        %v586 = vld [vmem:[%s2 + $0x28] sm:$0xff]
        %v587 = vld [vmem:[%s2 + $0x30] sm:$0xff]
        %v588 = vld [vmem:[%s2 + $0x38] sm:$0xff]
        %v590 = vsel %vm504, %v580, 0
        %592 = vmatprep.subr.mxu0 0.0
        %593 = vmatpush1.msra.mxu0 %v581
        %594 = vmatprep.subr.mxu0 0.0
        %595 = vmatpush1.msra.mxu0 %v582
        %596 = vmatprep.subr.mxu0 0.0
        %597 = vmatpush1.msra.mxu0 %v583
        %598 = vmatprep.subr.mxu0 0.0
        %599 = vmatpush1.msra.mxu0 %v584
        %600 = vmatprep.subr.mxu0 0.0
        %601 = vmatpush1.msra.mxu0 %v585
        %602 = vmatprep.subr.mxu0 0.0
        %603 = vmatpush1.msra.mxu0 %v586
        %604 = vmatprep.subr.mxu0 0.0
        %605 = vmatpush1.msra.mxu0 %v587
        %606 = vmatprep.subr.mxu0 0.0
        %607 = vmatpush1.msra.mxu0 %v588
        %608 = vmatprep.subr.mxu0 0.0
        %609 = vmatpush1.msra.mxu0 0.0
        %610 = vmatprep.subr.mxu0 0.0
        %611 = vmatpush1.msra.mxu0 0.0
        %612 = vmatprep.subr.mxu0 0.0
        %613 = vmatpush1.msra.mxu0 0.0
        %614 = vmatprep.subr.mxu0 0.0
        %615 = vmatpush1.msra.mxu0 0.0
        %616 = vmatprep.subr.mxu0 0.0
        %617 = vmatpush1.msra.mxu0 0.0
        %618 = vmatprep.subr.mxu0 0.0
        %619 = vmatpush1.msra.mxu0 0.0
        %620 = vmatprep.subr.mxu0 0.0
        %621 = vmatpush1.msra.mxu0 0.0
        %622 = vmatprep.subr.mxu0 0.0
        %623 = vmatpush1.msra.mxu0 0.0
        %624 = vmatprep.subr.mxu0 0.0
        %625 = vmatpush1.msra.mxu0 0.0
        %626 = vmatprep.subr.mxu0 0.0
        %627 = vmatpush1.msra.mxu0 0.0
        %628 = vmatprep.subr.mxu0 0.0
        %629 = vmatpush1.msra.mxu0 0.0
        %630 = vmatprep.subr.mxu0 0.0
        %631 = vmatpush1.msra.mxu0 0.0
        %632 = vmatprep.subr.mxu0 0.0
        %633 = vmatpush1.msra.mxu0 0.0
        %634 = vmatprep.subr.mxu0 0.0
        %635 = vmatpush1.msra.mxu0 0.0
        %636 = vmatprep.subr.mxu0 0.0
        %637 = vmatpush1.msra.mxu0 0.0
        %638 = vmatprep.subr.mxu0 0.0
        %639 = vmatpush1.msra.mxu0 0.0
        %640 = vmatprep.subr.mxu0 0.0
        %641 = vmatpush1.msra.mxu0 0.0
        %642 = vmatprep.subr.mxu0 0.0
        %643 = vmatpush1.msra.mxu0 0.0
        %644 = vmatprep.subr.mxu0 0.0
        %645 = vmatpush1.msra.mxu0 0.0
        %646 = vmatprep.subr.mxu0 0.0
        %647 = vmatpush1.msra.mxu0 0.0
        %648 = vmatprep.subr.mxu0 0.0
        %649 = vmatpush1.msra.mxu0 0.0
        %650 = vmatprep.subr.mxu0 0.0
        %651 = vmatpush1.msra.mxu0 0.0
        %652 = vmatprep.subr.mxu0 0.0
        %653 = vmatpush1.msra.mxu0 0.0
        %654 = vmatprep.subr.mxu0 0.0
        %655 = vmatpush1.msra.mxu0 0.0
        %656 = vmatprep.mubr.f32.mxu0 0.0
        %657 = vmatmul.mubr.f32.gmra.mrb[0].mxu0 %v590
        %v658 = vpop.f32.mrb[0].mxu0
        %v659 = vadd.f32 0.0, %v658
        %v660 = vpop.f32.mrb[0].mxu0
        %661 = vdwg.mxu0
        %v662 = vadd.f32 %v579, %v659
        %663 = vst [vmem:[#allocation2 + $0x2] sm:$0x3f] %v662
        %v664 = vld [vmem:[#allocation2 + $0x1] sm:$0x7f]
        %v665 = vld [vmem:[%s438] sm:$0x7f]
        %s666 = scalar_lea.vmem %s2, 64
        %v667 = vld [vmem:[%s666] sm:$0xff]
        %v668 = vld [vmem:[%s666 + $0x8] sm:$0xff]
        %v669 = vld [vmem:[%s666 + $0x10] sm:$0xff]
        %v670 = vld [vmem:[%s666 + $0x18] sm:$0xff]
        %v671 = vld [vmem:[%s666 + $0x20] sm:$0xff]
        %v672 = vld [vmem:[%s666 + $0x28] sm:$0xff]
        %v673 = vld [vmem:[%s666 + $0x30] sm:$0xff]
        %v674 = vld [vmem:[%s666 + $0x38] sm:$0xff]
        %v676 = vsel %vm504, %v665, 0
        %678 = vmatprep.subr.mxu0 0.0
        %679 = vmatpush1.msra.mxu0 %v667
        %680 = vmatprep.subr.mxu0 0.0
        %681 = vmatpush1.msra.mxu0 %v668
        %682 = vmatprep.subr.mxu0 0.0
        %683 = vmatpush1.msra.mxu0 %v669
        %684 = vmatprep.subr.mxu0 0.0
        %685 = vmatpush1.msra.mxu0 %v670
        %686 = vmatprep.subr.mxu0 0.0
        %687 = vmatpush1.msra.mxu0 %v671
        %688 = vmatprep.subr.mxu0 0.0
        %689 = vmatpush1.msra.mxu0 %v672
        %690 = vmatprep.subr.mxu0 0.0
        %691 = vmatpush1.msra.mxu0 %v673
        %692 = vmatprep.subr.mxu0 0.0
        %693 = vmatpush1.msra.mxu0 %v674
        %694 = vmatprep.subr.mxu0 0.0
        %695 = vmatpush1.msra.mxu0 0.0
        %696 = vmatprep.subr.mxu0 0.0
        %697 = vmatpush1.msra.mxu0 0.0
        %698 = vmatprep.subr.mxu0 0.0
        %699 = vmatpush1.msra.mxu0 0.0
        %700 = vmatprep.subr.mxu0 0.0
        %701 = vmatpush1.msra.mxu0 0.0
        %702 = vmatprep.subr.mxu0 0.0
        %703 = vmatpush1.msra.mxu0 0.0
        %704 = vmatprep.subr.mxu0 0.0
        %705 = vmatpush1.msra.mxu0 0.0
        %706 = vmatprep.subr.mxu0 0.0
        %707 = vmatpush1.msra.mxu0 0.0
        %708 = vmatprep.subr.mxu0 0.0
        %709 = vmatpush1.msra.mxu0 0.0
        %710 = vmatprep.subr.mxu0 0.0
        %711 = vmatpush1.msra.mxu0 0.0
        %712 = vmatprep.subr.mxu0 0.0
        %713 = vmatpush1.msra.mxu0 0.0
        %714 = vmatprep.subr.mxu0 0.0
        %715 = vmatpush1.msra.mxu0 0.0
        %716 = vmatprep.subr.mxu0 0.0
        %717 = vmatpush1.msra.mxu0 0.0
        %718 = vmatprep.subr.mxu0 0.0
        %719 = vmatpush1.msra.mxu0 0.0
        %720 = vmatprep.subr.mxu0 0.0
        %721 = vmatpush1.msra.mxu0 0.0
        %722 = vmatprep.subr.mxu0 0.0
        %723 = vmatpush1.msra.mxu0 0.0
        %724 = vmatprep.subr.mxu0 0.0
        %725 = vmatpush1.msra.mxu0 0.0
        %726 = vmatprep.subr.mxu0 0.0
        %727 = vmatpush1.msra.mxu0 0.0
        %728 = vmatprep.subr.mxu0 0.0
        %729 = vmatpush1.msra.mxu0 0.0
        %730 = vmatprep.subr.mxu0 0.0
        %731 = vmatpush1.msra.mxu0 0.0
        %732 = vmatprep.subr.mxu0 0.0
        %733 = vmatpush1.msra.mxu0 0.0
        %734 = vmatprep.subr.mxu0 0.0
        %735 = vmatpush1.msra.mxu0 0.0
        %736 = vmatprep.subr.mxu0 0.0
        %737 = vmatpush1.msra.mxu0 0.0
        %738 = vmatprep.subr.mxu0 0.0
        %739 = vmatpush1.msra.mxu0 0.0
        %740 = vmatprep.subr.mxu0 0.0
        %741 = vmatpush1.msra.mxu0 0.0
        %742 = vmatprep.mubr.f32.mxu0 0.0
        %743 = vmatmul.mubr.f32.gmra.mrb[0].mxu0 %v676
        %v744 = vpop.f32.mrb[0].mxu0
        %v745 = vadd.f32 0.0, %v744
        %v746 = vpop.f32.mrb[0].mxu0
        %747 = vdwg.mxu0
        %v748 = vadd.f32 %v664, %v745
        %749 = vst [vmem:[#allocation2 + $0x1] sm:$0x7f] %v748
        %v750 = vld [vmem:[#allocation2] sm:$0x7f]
        %v751 = vld [vmem:[%s438 + $0x1] sm:$0x7f]
        %s752 = scalar_lea.vmem %s2, 192
        %v753 = vld [vmem:[%s752] sm:$0xff]
        %v754 = vld [vmem:[%s752 + $0x8] sm:$0xff]
        %v755 = vld [vmem:[%s752 + $0x10] sm:$0xff]
        %v756 = vld [vmem:[%s752 + $0x18] sm:$0xff]
        %v757 = vld [vmem:[%s752 + $0x20] sm:$0xff]
        %v758 = vld [vmem:[%s752 + $0x28] sm:$0xff]
        %v759 = vld [vmem:[%s752 + $0x30] sm:$0xff]
        %v760 = vld [vmem:[%s752 + $0x38] sm:$0xff]
        %v762 = vsel %vm504, %v751, 0
        %764 = vmatprep.subr.mxu0 0.0
        %765 = vmatpush1.msra.mxu0 %v753
        %766 = vmatprep.subr.mxu0 0.0
        %767 = vmatpush1.msra.mxu0 %v754
        %768 = vmatprep.subr.mxu0 0.0
        %769 = vmatpush1.msra.mxu0 %v755
        %770 = vmatprep.subr.mxu0 0.0
        %771 = vmatpush1.msra.mxu0 %v756
        %772 = vmatprep.subr.mxu0 0.0
        %773 = vmatpush1.msra.mxu0 %v757
        %774 = vmatprep.subr.mxu0 0.0
        %775 = vmatpush1.msra.mxu0 %v758
        %776 = vmatprep.subr.mxu0 0.0
        %777 = vmatpush1.msra.mxu0 %v759
        %778 = vmatprep.subr.mxu0 0.0
        %779 = vmatpush1.msra.mxu0 %v760
        %780 = vmatprep.subr.mxu0 0.0
        %781 = vmatpush1.msra.mxu0 0.0
        %782 = vmatprep.subr.mxu0 0.0
        %783 = vmatpush1.msra.mxu0 0.0
        %784 = vmatprep.subr.mxu0 0.0
        %785 = vmatpush1.msra.mxu0 0.0
        %786 = vmatprep.subr.mxu0 0.0
        %787 = vmatpush1.msra.mxu0 0.0
        %788 = vmatprep.subr.mxu0 0.0
        %789 = vmatpush1.msra.mxu0 0.0
        %790 = vmatprep.subr.mxu0 0.0
        %791 = vmatpush1.msra.mxu0 0.0
        %792 = vmatprep.subr.mxu0 0.0
        %793 = vmatpush1.msra.mxu0 0.0
        %794 = vmatprep.subr.mxu0 0.0
        %795 = vmatpush1.msra.mxu0 0.0
        %796 = vmatprep.subr.mxu0 0.0
        %797 = vmatpush1.msra.mxu0 0.0
        %798 = vmatprep.subr.mxu0 0.0
        %799 = vmatpush1.msra.mxu0 0.0
        %800 = vmatprep.subr.mxu0 0.0
        %801 = vmatpush1.msra.mxu0 0.0
        %802 = vmatprep.subr.mxu0 0.0
        %803 = vmatpush1.msra.mxu0 0.0
        %804 = vmatprep.subr.mxu0 0.0
        %805 = vmatpush1.msra.mxu0 0.0
        %806 = vmatprep.subr.mxu0 0.0
        %807 = vmatpush1.msra.mxu0 0.0
        %808 = vmatprep.subr.mxu0 0.0
        %809 = vmatpush1.msra.mxu0 0.0
        %810 = vmatprep.subr.mxu0 0.0
        %811 = vmatpush1.msra.mxu0 0.0
        %812 = vmatprep.subr.mxu0 0.0
        %813 = vmatpush1.msra.mxu0 0.0
        %814 = vmatprep.subr.mxu0 0.0
        %815 = vmatpush1.msra.mxu0 0.0
        %816 = vmatprep.subr.mxu0 0.0
        %817 = vmatpush1.msra.mxu0 0.0
        %818 = vmatprep.subr.mxu0 0.0
        %819 = vmatpush1.msra.mxu0 0.0
        %820 = vmatprep.subr.mxu0 0.0
        %821 = vmatpush1.msra.mxu0 0.0
        %822 = vmatprep.subr.mxu0 0.0
        %823 = vmatpush1.msra.mxu0 0.0
        %824 = vmatprep.subr.mxu0 0.0
        %825 = vmatpush1.msra.mxu0 0.0
        %826 = vmatprep.subr.mxu0 0.0
        %827 = vmatpush1.msra.mxu0 0.0
        %828 = vmatprep.mubr.f32.mxu0 0.0
        %829 = vmatmul.mubr.f32.gmra.mrb[0].mxu0 %v762
        %v830 = vpop.f32.mrb[0].mxu0
        %v831 = vadd.f32 0.0, %v830
        %v832 = vpop.f32.mrb[0].mxu0
        %833 = vdwg.mxu0
        %v834 = vadd.f32 %v750, %v831
        %835 = vst [vmem:[#allocation2] sm:$0x7f] %v834
        %v836 = vld [vmem:[#allocation2] sm:$0x3f]
        %v837 = vld [vmem:[%s438 + $0x2] sm:$0x3f]
        %s838 = scalar_lea.vmem %s2, 256
        %v839 = vld [vmem:[%s838] sm:$0xff]
        %v840 = vld [vmem:[%s838 + $0x8] sm:$0xff]
        %v841 = vld [vmem:[%s838 + $0x10] sm:$0xff]
        %v842 = vld [vmem:[%s838 + $0x18] sm:$0xff]
        %v843 = vld [vmem:[%s838 + $0x20] sm:$0xff]
        %v844 = vld [vmem:[%s838 + $0x28] sm:$0xff]
        %v845 = vld [vmem:[%s838 + $0x30] sm:$0xff]
        %v846 = vld [vmem:[%s838 + $0x38] sm:$0xff]
        %v848 = vsel %vm504, %v837, 0
        %850 = vmatprep.subr.mxu0 0.0
        %851 = vmatpush1.msra.mxu0 %v839
        %852 = vmatprep.subr.mxu0 0.0
        %853 = vmatpush1.msra.mxu0 %v840
        %854 = vmatprep.subr.mxu0 0.0
        %855 = vmatpush1.msra.mxu0 %v841
        %856 = vmatprep.subr.mxu0 0.0
        %857 = vmatpush1.msra.mxu0 %v842
        %858 = vmatprep.subr.mxu0 0.0
        %859 = vmatpush1.msra.mxu0 %v843
        %860 = vmatprep.subr.mxu0 0.0
        %861 = vmatpush1.msra.mxu0 %v844
        %862 = vmatprep.subr.mxu0 0.0
        %863 = vmatpush1.msra.mxu0 %v845
        %864 = vmatprep.subr.mxu0 0.0
        %865 = vmatpush1.msra.mxu0 %v846
        %866 = vmatprep.subr.mxu0 0.0
        %867 = vmatpush1.msra.mxu0 0.0
        %868 = vmatprep.subr.mxu0 0.0
        %869 = vmatpush1.msra.mxu0 0.0
        %870 = vmatprep.subr.mxu0 0.0
        %871 = vmatpush1.msra.mxu0 0.0
        %872 = vmatprep.subr.mxu0 0.0
        %873 = vmatpush1.msra.mxu0 0.0
        %874 = vmatprep.subr.mxu0 0.0
        %875 = vmatpush1.msra.mxu0 0.0
        %876 = vmatprep.subr.mxu0 0.0
        %877 = vmatpush1.msra.mxu0 0.0
        %878 = vmatprep.subr.mxu0 0.0
        %879 = vmatpush1.msra.mxu0 0.0
        %880 = vmatprep.subr.mxu0 0.0
        %881 = vmatpush1.msra.mxu0 0.0
        %882 = vmatprep.subr.mxu0 0.0
        %883 = vmatpush1.msra.mxu0 0.0
        %884 = vmatprep.subr.mxu0 0.0
        %885 = vmatpush1.msra.mxu0 0.0
        %886 = vmatprep.subr.mxu0 0.0
        %887 = vmatpush1.msra.mxu0 0.0
        %888 = vmatprep.subr.mxu0 0.0
        %889 = vmatpush1.msra.mxu0 0.0
        %890 = vmatprep.subr.mxu0 0.0
        %891 = vmatpush1.msra.mxu0 0.0
        %892 = vmatprep.subr.mxu0 0.0
        %893 = vmatpush1.msra.mxu0 0.0
        %894 = vmatprep.subr.mxu0 0.0
        %895 = vmatpush1.msra.mxu0 0.0
        %896 = vmatprep.subr.mxu0 0.0
        %897 = vmatpush1.msra.mxu0 0.0
        %898 = vmatprep.subr.mxu0 0.0
        %899 = vmatpush1.msra.mxu0 0.0
        %900 = vmatprep.subr.mxu0 0.0
        %901 = vmatpush1.msra.mxu0 0.0
        %902 = vmatprep.subr.mxu0 0.0
        %903 = vmatpush1.msra.mxu0 0.0
        %904 = vmatprep.subr.mxu0 0.0
        %905 = vmatpush1.msra.mxu0 0.0
        %906 = vmatprep.subr.mxu0 0.0
        %907 = vmatpush1.msra.mxu0 0.0
        %908 = vmatprep.subr.mxu0 0.0
        %909 = vmatpush1.msra.mxu0 0.0
        %910 = vmatprep.subr.mxu0 0.0
        %911 = vmatpush1.msra.mxu0 0.0
        %912 = vmatprep.subr.mxu0 0.0
        %913 = vmatpush1.msra.mxu0 0.0
        %914 = vmatprep.mubr.f32.mxu0 0.0
        %915 = vmatmul.mubr.f32.gmra.mrb[0].mxu0 %v848
        %v916 = vpop.f32.mrb[0].mxu0
        %v917 = vadd.f32 0.0, %v916
        %v918 = vpop.f32.mrb[0].mxu0
        %919 = vdwg.mxu0
        %v920 = vadd.f32 %v836, %v917
        %921 = vst [vmem:[#allocation2] sm:$0x3f] %v920
        %v922 = vld [vmem:[#allocation2] sm:$0xff]
        %v923 = vld [vmem:[%s3] sm:$0x1]
        %v925 = vlaneseq
        %v926 = vshrl.u32 %v925, 7
        %v927 = vsub.s32 0, %v926
        %v928 = vrot.slane %v923, %v927
        %v930 = vadd.f32 %v922, %v928
        %v931 = vmax.f32 %v930, 0.0
        %v932 = vld [vmem:[%s4] sm:$0xff]
        %v933 = vld [vmem:[%s4 + $0x8] sm:$0xff]
        %v934 = vld [vmem:[%s4 + $0x10] sm:$0xff]
        %v935 = vld [vmem:[%s4 + $0x18] sm:$0xff]
        %v936 = vld [vmem:[%s4 + $0x20] sm:$0xff]
        %v937 = vld [vmem:[%s4 + $0x28] sm:$0xff]
        %v938 = vld [vmem:[%s4 + $0x30] sm:$0xff]
        %v939 = vld [vmem:[%s4 + $0x38] sm:$0xff]
        %v940 = vld [vmem:[%s4 + $0x40] sm:$0xff]
        %v941 = vld [vmem:[%s4 + $0x48] sm:$0xff]
        %v942 = vld [vmem:[%s4 + $0x50] sm:$0xff]
        %v943 = vld [vmem:[%s4 + $0x58] sm:$0xff]
        %v944 = vld [vmem:[%s4 + $0x60] sm:$0xff]
        %v945 = vld [vmem:[%s4 + $0x68] sm:$0xff]
        %v946 = vld [vmem:[%s4 + $0x70] sm:$0xff]
        %v947 = vld [vmem:[%s4 + $0x78] sm:$0xff]
        %v948 = vld [vmem:[%s4 + $0x80] sm:$0xff]
        %v949 = vld [vmem:[%s4 + $0x88] sm:$0xff]
        %v950 = vld [vmem:[%s4 + $0x90] sm:$0xff]
        %v951 = vld [vmem:[%s4 + $0x98] sm:$0xff]
        %v952 = vld [vmem:[%s4 + $0xa0] sm:$0xff]
        %v953 = vld [vmem:[%s4 + $0xa8] sm:$0xff]
        %v954 = vld [vmem:[%s4 + $0xb0] sm:$0xff]
        %v955 = vld [vmem:[%s4 + $0xb8] sm:$0xff]
        %v956 = vld [vmem:[%s4 + $0xc0] sm:$0xff]
        %v957 = vld [vmem:[%s4 + $0xc8] sm:$0xff]
        %v958 = vld [vmem:[%s4 + $0xd0] sm:$0xff]
        %v959 = vld [vmem:[%s4 + $0xd8] sm:$0xff]
        %v960 = vld [vmem:[%s4 + $0xe0] sm:$0xff]
        %v961 = vld [vmem:[%s4 + $0xe8] sm:$0xff]
        %v962 = vld [vmem:[%s4 + $0xf0] sm:$0xff]
        %v963 = vld [vmem:[%s4 + $0xf8] sm:$0xff]
        %v964 = vld [vmem:[%s5] sm:$0x3]
        %v966 = vlaneseq
        %v967 = vshrl.u32 %v966, 7
        %v968 = vsub.s32 0, %v967
        %v969 = vrot.slane %v964, %v968
        %v970 = vlaneseq
        %v971 = vshrl.u32 %v970, 7
        %v972 = vsub.s32 1, %v971
        %v973 = vrot.slane %v964, %v972
        %976 = vmatprep.subr.mxu0 %v933
        %977 = vmatpush1.msra.mxu0 %v932
        %978 = vmatprep.subr.mxu0 %v935
        %979 = vmatpush1.msra.mxu0 %v934
        %980 = vmatprep.subr.mxu0 %v937
        %981 = vmatpush1.msra.mxu0 %v936
        %982 = vmatprep.subr.mxu0 %v939
        %983 = vmatpush1.msra.mxu0 %v938
        %984 = vmatprep.subr.mxu0 %v941
        %985 = vmatpush1.msra.mxu0 %v940
        %986 = vmatprep.subr.mxu0 %v943
        %987 = vmatpush1.msra.mxu0 %v942
        %988 = vmatprep.subr.mxu0 %v945
        %989 = vmatpush1.msra.mxu0 %v944
        %990 = vmatprep.subr.mxu0 %v947
        %991 = vmatpush1.msra.mxu0 %v946
        %992 = vmatprep.subr.mxu0 %v949
        %993 = vmatpush1.msra.mxu0 %v948
        %994 = vmatprep.subr.mxu0 %v951
        %995 = vmatpush1.msra.mxu0 %v950
        %996 = vmatprep.subr.mxu0 %v953
        %997 = vmatpush1.msra.mxu0 %v952
        %998 = vmatprep.subr.mxu0 %v955
        %999 = vmatpush1.msra.mxu0 %v954
        %1000 = vmatprep.subr.mxu0 %v957
        %1001 = vmatpush1.msra.mxu0 %v956
        %1002 = vmatprep.subr.mxu0 %v959
        %1003 = vmatpush1.msra.mxu0 %v958
        %1004 = vmatprep.subr.mxu0 %v961
        %1005 = vmatpush1.msra.mxu0 %v960
        %1006 = vmatprep.subr.mxu0 %v963
        %1007 = vmatpush1.msra.mxu0 %v962
        %1008 = vmatprep.subr.mxu0 0.0
        %1009 = vmatpush1.msra.mxu0 0.0
        %1010 = vmatprep.subr.mxu0 0.0
        %1011 = vmatpush1.msra.mxu0 0.0
        %1012 = vmatprep.subr.mxu0 0.0
        %1013 = vmatpush1.msra.mxu0 0.0
        %1014 = vmatprep.subr.mxu0 0.0
        %1015 = vmatpush1.msra.mxu0 0.0
        %1016 = vmatprep.subr.mxu0 0.0
        %1017 = vmatpush1.msra.mxu0 0.0
        %1018 = vmatprep.subr.mxu0 0.0
        %1019 = vmatpush1.msra.mxu0 0.0
        %1020 = vmatprep.subr.mxu0 0.0
        %1021 = vmatpush1.msra.mxu0 0.0
        %1022 = vmatprep.subr.mxu0 0.0
        %1023 = vmatpush1.msra.mxu0 0.0
        %1024 = vmatprep.subr.mxu0 0.0
        %1025 = vmatpush1.msra.mxu0 0.0
        %1026 = vmatprep.subr.mxu0 0.0
        %1027 = vmatpush1.msra.mxu0 0.0
        %1028 = vmatprep.subr.mxu0 0.0
        %1029 = vmatpush1.msra.mxu0 0.0
        %1030 = vmatprep.subr.mxu0 0.0
        %1031 = vmatpush1.msra.mxu0 0.0
        %1032 = vmatprep.subr.mxu0 0.0
        %1033 = vmatpush1.msra.mxu0 0.0
        %1034 = vmatprep.subr.mxu0 0.0
        %1035 = vmatpush1.msra.mxu0 0.0
        %1036 = vmatprep.subr.mxu0 0.0
        %1037 = vmatpush1.msra.mxu0 0.0
        %1038 = vmatprep.subr.mxu0 0.0
        %1039 = vmatpush1.msra.mxu0 0.0
        %1040 = vmatprep.mubr.f32.mxu0 0.0
        %1041 = vmatmul.mubr.f32.gmra.mrb[0].mxu0 %v931
        %v1042 = vpop.f32.mrb[0].mxu0
        %v1043 = vadd.f32 %v969, %v1042
        %v1044 = vpop.f32.mrb[0].mxu0
        %v1045 = vadd.f32 %v973, %v1044
        %1046 = vdwg.mxu0
        %v1047 = vld [vmem:[%s7] sm:$0x1]
        %v1048 = vld [vmem:[%s6] sm:$0xff]
        %v1049 = vld [vmem:[%s6 + $0x8] sm:$0xff]
        %v1050 = vld [vmem:[%s6 + $0x10] sm:$0xff]
        %v1051 = vld [vmem:[%s6 + $0x18] sm:$0xff]
        %v1052 = vld [vmem:[%s6 + $0x20] sm:$0xff]
        %v1053 = vld [vmem:[%s6 + $0x28] sm:$0xff]
        %v1054 = vld [vmem:[%s6 + $0x30] sm:$0xff]
        %v1055 = vld [vmem:[%s6 + $0x38] sm:$0xff]
        %v1056 = vld [vmem:[%s6 + $0x40] sm:$0xff]
        %v1057 = vld [vmem:[%s6 + $0x48] sm:$0xff]
        %v1058 = vld [vmem:[%s6 + $0x50] sm:$0xff]
        %v1059 = vld [vmem:[%s6 + $0x58] sm:$0xff]
        %v1060 = vld [vmem:[%s6 + $0x60] sm:$0xff]
        %v1061 = vld [vmem:[%s6 + $0x68] sm:$0xff]
        %v1062 = vld [vmem:[%s6 + $0x70] sm:$0xff]
        %v1063 = vld [vmem:[%s6 + $0x78] sm:$0xff]
        %v1065 = vsel %vm504, 0.0, 0
        %1067 = vmatprep.subr.mxu0 %v1049
        %1068 = vmatpush1.msra.mxu0 %v1048
        %1069 = vmatprep.subr.mxu0 %v1051
        %1070 = vmatpush1.msra.mxu0 %v1050
        %1071 = vmatprep.subr.mxu0 %v1053
        %1072 = vmatpush1.msra.mxu0 %v1052
        %1073 = vmatprep.subr.mxu0 %v1055
        %1074 = vmatpush1.msra.mxu0 %v1054
        %1075 = vmatprep.subr.mxu0 %v1057
        %1076 = vmatpush1.msra.mxu0 %v1056
        %1077 = vmatprep.subr.mxu0 %v1059
        %1078 = vmatpush1.msra.mxu0 %v1058
        %1079 = vmatprep.subr.mxu0 %v1061
        %1080 = vmatpush1.msra.mxu0 %v1060
        %1081 = vmatprep.subr.mxu0 %v1063
        %1082 = vmatpush1.msra.mxu0 %v1062
        %1083 = vmatprep.subr.mxu0 0.0
        %1084 = vmatpush1.msra.mxu0 0.0
        %1085 = vmatprep.subr.mxu0 0.0
        %1086 = vmatpush1.msra.mxu0 0.0
        %1087 = vmatprep.subr.mxu0 0.0
        %1088 = vmatpush1.msra.mxu0 0.0
        %1089 = vmatprep.subr.mxu0 0.0
        %1090 = vmatpush1.msra.mxu0 0.0
        %1091 = vmatprep.subr.mxu0 0.0
        %1092 = vmatpush1.msra.mxu0 0.0
        %1093 = vmatprep.subr.mxu0 0.0
        %1094 = vmatpush1.msra.mxu0 0.0
        %1095 = vmatprep.subr.mxu0 0.0
        %1096 = vmatpush1.msra.mxu0 0.0
        %1097 = vmatprep.subr.mxu0 0.0
        %1098 = vmatpush1.msra.mxu0 0.0
        %1099 = vmatprep.subr.mxu0 0.0
        %1100 = vmatpush1.msra.mxu0 0.0
        %1101 = vmatprep.subr.mxu0 0.0
        %1102 = vmatpush1.msra.mxu0 0.0
        %1103 = vmatprep.subr.mxu0 0.0
        %1104 = vmatpush1.msra.mxu0 0.0
        %1105 = vmatprep.subr.mxu0 0.0
        %1106 = vmatpush1.msra.mxu0 0.0
        %1107 = vmatprep.subr.mxu0 0.0
        %1108 = vmatpush1.msra.mxu0 0.0
        %1109 = vmatprep.subr.mxu0 0.0
        %1110 = vmatpush1.msra.mxu0 0.0
        %1111 = vmatprep.subr.mxu0 0.0
        %1112 = vmatpush1.msra.mxu0 0.0
        %1113 = vmatprep.subr.mxu0 0.0
        %1114 = vmatpush1.msra.mxu0 0.0
        %1115 = vmatprep.subr.mxu0 0.0
        %1116 = vmatpush1.msra.mxu0 0.0
        %1117 = vmatprep.subr.mxu0 0.0
        %1118 = vmatpush1.msra.mxu0 0.0
        %1119 = vmatprep.subr.mxu0 0.0
        %1120 = vmatpush1.msra.mxu0 0.0
        %1121 = vmatprep.subr.mxu0 0.0
        %1122 = vmatpush1.msra.mxu0 0.0
        %1123 = vmatprep.subr.mxu0 0.0
        %1124 = vmatpush1.msra.mxu0 0.0
        %1125 = vmatprep.subr.mxu0 0.0
        %1126 = vmatpush1.msra.mxu0 0.0
        %1127 = vmatprep.subr.mxu0 0.0
        %1128 = vmatpush1.msra.mxu0 0.0
        %1129 = vmatprep.subr.mxu0 0.0
        %1130 = vmatpush1.msra.mxu0 0.0
        %1131 = vmatprep.mubr.f32.mxu0 0.0
        %1132 = vmatmul.mubr.f32.gmra.mrb[0].mxu0 %v1065
        %v1133 = vpop.f32.mrb[0].mxu0
        %v1134 = vadd.f32 0.0, %v1133
        %v1135 = vpop.f32.mrb[0].mxu0
        %v1136 = vadd.f32 0.0, %v1135
        %1137 = vdwg.mxu0
        %v1138 = vadd.f32 %v1043, %v1134
        %v1139 = vxor.u32 %v1138, 2147483648
        %v1140 = vmul.f32 %v1139, 1.442695
        %v1141 = vpow.pop %v1140
        %v1142 = vadd.f32 %v1141, 1.0
        %v1143 = vrcp.pop %v1142
        %v1144 = vmul.f32 1.0, %v1143
        %v1145 = vadd.f32 %v1136, %v1047
        %v1146 = vmul.f32 %v1144, %v1145
        %v1147 = vadd.f32 %v1045, %v1146
        %v1148 = vtanh.pop %v1147
        %v1149 = vsub.f32 1.0, %v1144
        %1151 = vrot.lane.b32.xlu0 %v1148, 64
        %v1152 = vpop.permute.xlu0 %1151
        %v1154 = vmul.f32 %v1149, %v1152
        %v1155 = vmul.f32 %v1144, 0.0
        %v1156 = vadd.f32 %v1154, %v1155
        %1158 = vrot.lane.b32.xlu0 %v1156, 64
        %v1159 = vpop.permute.xlu0 %1158
        %vm1161 = vcmask 516096
        %1162 = vst.msk [vmem:[#allocation3] sm:$0x1] %vm1161, %v1159
        %v1163 = vld [vmem:[%s6] sm:$0xff]
        %v1164 = vld [vmem:[%s6 + $0x8] sm:$0xff]
        %v1165 = vld [vmem:[%s6 + $0x10] sm:$0xff]
        %v1166 = vld [vmem:[%s6 + $0x18] sm:$0xff]
        %v1167 = vld [vmem:[%s6 + $0x20] sm:$0xff]
        %v1168 = vld [vmem:[%s6 + $0x28] sm:$0xff]
        %v1169 = vld [vmem:[%s6 + $0x30] sm:$0xff]
        %v1170 = vld [vmem:[%s6 + $0x38] sm:$0xff]
        %v1171 = vld [vmem:[%s6 + $0x40] sm:$0xff]
        %v1172 = vld [vmem:[%s6 + $0x48] sm:$0xff]
        %v1173 = vld [vmem:[%s6 + $0x50] sm:$0xff]
        %v1174 = vld [vmem:[%s6 + $0x58] sm:$0xff]
        %v1175 = vld [vmem:[%s6 + $0x60] sm:$0xff]
        %v1176 = vld [vmem:[%s6 + $0x68] sm:$0xff]
        %v1177 = vld [vmem:[%s6 + $0x70] sm:$0xff]
        %v1178 = vld [vmem:[%s6 + $0x78] sm:$0xff]
        %v1179 = vsel %vm504, %v1159, 0
        %1181 = vmatprep.subr.mxu0 %v1164
        %1182 = vmatpush1.msra.mxu0 %v1163
        %1183 = vmatprep.subr.mxu0 %v1166
        %1184 = vmatpush1.msra.mxu0 %v1165
        %1185 = vmatprep.subr.mxu0 %v1168
        %1186 = vmatpush1.msra.mxu0 %v1167
        %1187 = vmatprep.subr.mxu0 %v1170
        %1188 = vmatpush1.msra.mxu0 %v1169
        %1189 = vmatprep.subr.mxu0 %v1172
        %1190 = vmatpush1.msra.mxu0 %v1171
        %1191 = vmatprep.subr.mxu0 %v1174
        %1192 = vmatpush1.msra.mxu0 %v1173
        %1193 = vmatprep.subr.mxu0 %v1176
        %1194 = vmatpush1.msra.mxu0 %v1175
        %1195 = vmatprep.subr.mxu0 %v1178
        %1196 = vmatpush1.msra.mxu0 %v1177
        %1197 = vmatprep.subr.mxu0 0.0
        %1198 = vmatpush1.msra.mxu0 0.0
        %1199 = vmatprep.subr.mxu0 0.0
        %1200 = vmatpush1.msra.mxu0 0.0
        %1201 = vmatprep.subr.mxu0 0.0
        %1202 = vmatpush1.msra.mxu0 0.0
        %1203 = vmatprep.subr.mxu0 0.0
        %1204 = vmatpush1.msra.mxu0 0.0
        %1205 = vmatprep.subr.mxu0 0.0
        %1206 = vmatpush1.msra.mxu0 0.0
        %1207 = vmatprep.subr.mxu0 0.0
        %1208 = vmatpush1.msra.mxu0 0.0
        %1209 = vmatprep.subr.mxu0 0.0
        %1210 = vmatpush1.msra.mxu0 0.0
        %1211 = vmatprep.subr.mxu0 0.0
        %1212 = vmatpush1.msra.mxu0 0.0
        %1213 = vmatprep.subr.mxu0 0.0
        %1214 = vmatpush1.msra.mxu0 0.0
        %1215 = vmatprep.subr.mxu0 0.0
        %1216 = vmatpush1.msra.mxu0 0.0
        %1217 = vmatprep.subr.mxu0 0.0
        %1218 = vmatpush1.msra.mxu0 0.0
        %1219 = vmatprep.subr.mxu0 0.0
        %1220 = vmatpush1.msra.mxu0 0.0
        %1221 = vmatprep.subr.mxu0 0.0
        %1222 = vmatpush1.msra.mxu0 0.0
        %1223 = vmatprep.subr.mxu0 0.0
        %1224 = vmatpush1.msra.mxu0 0.0
        %1225 = vmatprep.subr.mxu0 0.0
        %1226 = vmatpush1.msra.mxu0 0.0
        %1227 = vmatprep.subr.mxu0 0.0
        %1228 = vmatpush1.msra.mxu0 0.0
        %1229 = vmatprep.subr.mxu0 0.0
        %1230 = vmatpush1.msra.mxu0 0.0
        %1231 = vmatprep.subr.mxu0 0.0
        %1232 = vmatpush1.msra.mxu0 0.0
        %1233 = vmatprep.subr.mxu0 0.0
        %1234 = vmatpush1.msra.mxu0 0.0
        %1235 = vmatprep.subr.mxu0 0.0
        %1236 = vmatpush1.msra.mxu0 0.0
        %1237 = vmatprep.subr.mxu0 0.0
        %1238 = vmatpush1.msra.mxu0 0.0
        %1239 = vmatprep.subr.mxu0 0.0
        %1240 = vmatpush1.msra.mxu0 0.0
        %1241 = vmatprep.subr.mxu0 0.0
        %1242 = vmatpush1.msra.mxu0 0.0
        %1243 = vmatprep.subr.mxu0 0.0
        %1244 = vmatpush1.msra.mxu0 0.0
        %1245 = vmatprep.mubr.f32.mxu0 0.0
        %1246 = vmatmul.mubr.f32.gmra.mrb[0].mxu0 %v1179
        %v1247 = vpop.f32.mrb[0].mxu0
        %v1248 = vadd.f32 0.0, %v1247
        %v1249 = vpop.f32.mrb[0].mxu0
        %v1250 = vadd.f32 0.0, %v1249
        %1251 = vdwg.mxu0
        %v1253 = vrot.slane %v1248, 7
        %v1255 = vadd.f32 %v1043, %v1253
        %v1256 = vxor.u32 %v1255, 2147483648
        %v1257 = vmul.f32 %v1256, 1.442695
        %v1258 = vpow.pop %v1257
        %v1259 = vadd.f32 %v1258, 1.0
        %v1260 = vrcp.pop %v1259
        %v1261 = vmul.f32 1.0, %v1260
        %v1262 = vadd.f32 %v1250, %v1047
        %v1264 = vrot.slane %v1262, 7
        %v1266 = vmul.f32 %v1261, %v1264
        %v1267 = vadd.f32 %v1045, %v1266
        %v1268 = vtanh.pop %v1267
        %v1269 = vsub.f32 1.0, %v1261
        %1271 = vrot.lane.b32.xlu0 %v1268, 64
        %v1272 = vpop.permute.xlu0 %1271
        %v1274 = vmul.f32 %v1269, %v1272
        %v1275 = vrot.slane %v1156, 7
        %v1277 = vmul.f32 %v1261, %v1275
        %v1278 = vadd.f32 %v1274, %v1277
        %1280 = vrot.lane.b32.xlu0 %v1278, 64
        %v1281 = vpop.permute.xlu0 %1280
        %vm1283 = vcmask 517121
        %1284 = vst.msk [vmem:[#allocation3] sm:$0x2] %vm1283, %v1281
        %v1285 = vld [vmem:[%s6] sm:$0xff]
        %v1286 = vld [vmem:[%s6 + $0x8] sm:$0xff]
        %v1287 = vld [vmem:[%s6 + $0x10] sm:$0xff]
        %v1288 = vld [vmem:[%s6 + $0x18] sm:$0xff]
        %v1289 = vld [vmem:[%s6 + $0x20] sm:$0xff]
        %v1290 = vld [vmem:[%s6 + $0x28] sm:$0xff]
        %v1291 = vld [vmem:[%s6 + $0x30] sm:$0xff]
        %v1292 = vld [vmem:[%s6 + $0x38] sm:$0xff]
        %v1293 = vld [vmem:[%s6 + $0x40] sm:$0xff]
        %v1294 = vld [vmem:[%s6 + $0x48] sm:$0xff]
        %v1295 = vld [vmem:[%s6 + $0x50] sm:$0xff]
        %v1296 = vld [vmem:[%s6 + $0x58] sm:$0xff]
        %v1297 = vld [vmem:[%s6 + $0x60] sm:$0xff]
        %v1298 = vld [vmem:[%s6 + $0x68] sm:$0xff]
        %v1299 = vld [vmem:[%s6 + $0x70] sm:$0xff]
        %v1300 = vld [vmem:[%s6 + $0x78] sm:$0xff]
        %v1301 = vrot.slane %v1278, 1
        %1302 = vrot.lane.b32.xlu0 %v1301, 64
        %v1303 = vpop.permute.xlu0 %1302
        %v1304 = vsel %vm504, %v1303, 0
        %1306 = vmatprep.subr.mxu0 %v1286
        %1307 = vmatpush1.msra.mxu0 %v1285
        %1308 = vmatprep.subr.mxu0 %v1288
        %1309 = vmatpush1.msra.mxu0 %v1287
        %1310 = vmatprep.subr.mxu0 %v1290
        %1311 = vmatpush1.msra.mxu0 %v1289
        %1312 = vmatprep.subr.mxu0 %v1292
        %1313 = vmatpush1.msra.mxu0 %v1291
        %1314 = vmatprep.subr.mxu0 %v1294
        %1315 = vmatpush1.msra.mxu0 %v1293
        %1316 = vmatprep.subr.mxu0 %v1296
        %1317 = vmatpush1.msra.mxu0 %v1295
        %1318 = vmatprep.subr.mxu0 %v1298
        %1319 = vmatpush1.msra.mxu0 %v1297
        %1320 = vmatprep.subr.mxu0 %v1300
        %1321 = vmatpush1.msra.mxu0 %v1299
        %1322 = vmatprep.subr.mxu0 0.0
        %1323 = vmatpush1.msra.mxu0 0.0
        %1324 = vmatprep.subr.mxu0 0.0
        %1325 = vmatpush1.msra.mxu0 0.0
        %1326 = vmatprep.subr.mxu0 0.0
        %1327 = vmatpush1.msra.mxu0 0.0
        %1328 = vmatprep.subr.mxu0 0.0
        %1329 = vmatpush1.msra.mxu0 0.0
        %1330 = vmatprep.subr.mxu0 0.0
        %1331 = vmatpush1.msra.mxu0 0.0
        %1332 = vmatprep.subr.mxu0 0.0
        %1333 = vmatpush1.msra.mxu0 0.0
        %1334 = vmatprep.subr.mxu0 0.0
        %1335 = vmatpush1.msra.mxu0 0.0
        %1336 = vmatprep.subr.mxu0 0.0
        %1337 = vmatpush1.msra.mxu0 0.0
        %1338 = vmatprep.subr.mxu0 0.0
        %1339 = vmatpush1.msra.mxu0 0.0
        %1340 = vmatprep.subr.mxu0 0.0
        %1341 = vmatpush1.msra.mxu0 0.0
        %1342 = vmatprep.subr.mxu0 0.0
        %1343 = vmatpush1.msra.mxu0 0.0
        %1344 = vmatprep.subr.mxu0 0.0
        %1345 = vmatpush1.msra.mxu0 0.0
        %1346 = vmatprep.subr.mxu0 0.0
        %1347 = vmatpush1.msra.mxu0 0.0
        %1348 = vmatprep.subr.mxu0 0.0
        %1349 = vmatpush1.msra.mxu0 0.0
        %1350 = vmatprep.subr.mxu0 0.0
        %1351 = vmatpush1.msra.mxu0 0.0
        %1352 = vmatprep.subr.mxu0 0.0
        %1353 = vmatpush1.msra.mxu0 0.0
        %1354 = vmatprep.subr.mxu0 0.0
        %1355 = vmatpush1.msra.mxu0 0.0
        %1356 = vmatprep.subr.mxu0 0.0
        %1357 = vmatpush1.msra.mxu0 0.0
        %1358 = vmatprep.subr.mxu0 0.0
        %1359 = vmatpush1.msra.mxu0 0.0
        %1360 = vmatprep.subr.mxu0 0.0
        %1361 = vmatpush1.msra.mxu0 0.0
        %1362 = vmatprep.subr.mxu0 0.0
        %1363 = vmatpush1.msra.mxu0 0.0
        %1364 = vmatprep.subr.mxu0 0.0
        %1365 = vmatpush1.msra.mxu0 0.0
        %1366 = vmatprep.subr.mxu0 0.0
        %1367 = vmatpush1.msra.mxu0 0.0
        %1368 = vmatprep.subr.mxu0 0.0
        %1369 = vmatpush1.msra.mxu0 0.0
        %1370 = vmatprep.mubr.f32.mxu0 0.0
        %1371 = vmatmul.mubr.f32.gmra.mrb[0].mxu0 %v1304
        %v1372 = vpop.f32.mrb[0].mxu0
        %v1373 = vadd.f32 0.0, %v1372
        %v1374 = vpop.f32.mrb[0].mxu0
        %v1375 = vadd.f32 0.0, %v1374
        %1376 = vdwg.mxu0
        %v1378 = vrot.slane %v1373, 6
        %v1380 = vadd.f32 %v1043, %v1378
        %v1381 = vxor.u32 %v1380, 2147483648
        %v1382 = vmul.f32 %v1381, 1.442695
        %v1383 = vpow.pop %v1382
        %v1384 = vadd.f32 %v1383, 1.0
        %v1385 = vrcp.pop %v1384
        %v1386 = vmul.f32 1.0, %v1385
        %v1387 = vadd.f32 %v1375, %v1047
        %v1389 = vrot.slane %v1387, 6
        %v1391 = vmul.f32 %v1386, %v1389
        %v1392 = vadd.f32 %v1045, %v1391
        %v1393 = vtanh.pop %v1392
        %v1394 = vsub.f32 1.0, %v1386
        %1396 = vrot.lane.b32.xlu0 %v1393, 64
        %v1397 = vpop.permute.xlu0 %1396
        %v1399 = vmul.f32 %v1394, %v1397
        %v1400 = vrot.slane %v1278, 7
        %v1402 = vmul.f32 %v1386, %v1400
        %v1403 = vadd.f32 %v1399, %v1402
        %1405 = vrot.lane.b32.xlu0 %v1403, 64
        %v1406 = vpop.permute.xlu0 %1405
        %vm1408 = vcmask 518146
        %1409 = vst.msk [vmem:[#allocation3] sm:$0x4] %vm1408, %v1406
        %v1410 = vld [vmem:[%s6] sm:$0xff]
        %v1411 = vld [vmem:[%s6 + $0x8] sm:$0xff]
        %v1412 = vld [vmem:[%s6 + $0x10] sm:$0xff]
        %v1413 = vld [vmem:[%s6 + $0x18] sm:$0xff]
        %v1414 = vld [vmem:[%s6 + $0x20] sm:$0xff]
        %v1415 = vld [vmem:[%s6 + $0x28] sm:$0xff]
        %v1416 = vld [vmem:[%s6 + $0x30] sm:$0xff]
        %v1417 = vld [vmem:[%s6 + $0x38] sm:$0xff]
        %v1418 = vld [vmem:[%s6 + $0x40] sm:$0xff]
        %v1419 = vld [vmem:[%s6 + $0x48] sm:$0xff]
        %v1420 = vld [vmem:[%s6 + $0x50] sm:$0xff]
        %v1421 = vld [vmem:[%s6 + $0x58] sm:$0xff]
        %v1422 = vld [vmem:[%s6 + $0x60] sm:$0xff]
        %v1423 = vld [vmem:[%s6 + $0x68] sm:$0xff]
        %v1424 = vld [vmem:[%s6 + $0x70] sm:$0xff]
        %v1425 = vld [vmem:[%s6 + $0x78] sm:$0xff]
        %v1426 = vrot.slane %v1403, 2
        %1427 = vrot.lane.b32.xlu0 %v1426, 64
        %v1428 = vpop.permute.xlu0 %1427
        %v1429 = vsel %vm504, %v1428, 0
        %1431 = vmatprep.subr.mxu0 %v1411
        %1432 = vmatpush1.msra.mxu0 %v1410
        %1433 = vmatprep.subr.mxu0 %v1413
        %1434 = vmatpush1.msra.mxu0 %v1412
        %1435 = vmatprep.subr.mxu0 %v1415
        %1436 = vmatpush1.msra.mxu0 %v1414
        %1437 = vmatprep.subr.mxu0 %v1417
        %1438 = vmatpush1.msra.mxu0 %v1416
        %1439 = vmatprep.subr.mxu0 %v1419
        %1440 = vmatpush1.msra.mxu0 %v1418
        %1441 = vmatprep.subr.mxu0 %v1421
        %1442 = vmatpush1.msra.mxu0 %v1420
        %1443 = vmatprep.subr.mxu0 %v1423
        %1444 = vmatpush1.msra.mxu0 %v1422
        %1445 = vmatprep.subr.mxu0 %v1425
        %1446 = vmatpush1.msra.mxu0 %v1424
        %1447 = vmatprep.subr.mxu0 0.0
        %1448 = vmatpush1.msra.mxu0 0.0
        %1449 = vmatprep.subr.mxu0 0.0
        %1450 = vmatpush1.msra.mxu0 0.0
        %1451 = vmatprep.subr.mxu0 0.0
        %1452 = vmatpush1.msra.mxu0 0.0
        %1453 = vmatprep.subr.mxu0 0.0
        %1454 = vmatpush1.msra.mxu0 0.0
        %1455 = vmatprep.subr.mxu0 0.0
        %1456 = vmatpush1.msra.mxu0 0.0
        %1457 = vmatprep.subr.mxu0 0.0
        %1458 = vmatpush1.msra.mxu0 0.0
        %1459 = vmatprep.subr.mxu0 0.0
        %1460 = vmatpush1.msra.mxu0 0.0
        %1461 = vmatprep.subr.mxu0 0.0
        %1462 = vmatpush1.msra.mxu0 0.0
        %1463 = vmatprep.subr.mxu0 0.0
        %1464 = vmatpush1.msra.mxu0 0.0
        %1465 = vmatprep.subr.mxu0 0.0
        %1466 = vmatpush1.msra.mxu0 0.0
        %1467 = vmatprep.subr.mxu0 0.0
        %1468 = vmatpush1.msra.mxu0 0.0
        %1469 = vmatprep.subr.mxu0 0.0
        %1470 = vmatpush1.msra.mxu0 0.0
        %1471 = vmatprep.subr.mxu0 0.0
        %1472 = vmatpush1.msra.mxu0 0.0
        %1473 = vmatprep.subr.mxu0 0.0
        %1474 = vmatpush1.msra.mxu0 0.0
        %1475 = vmatprep.subr.mxu0 0.0
        %1476 = vmatpush1.msra.mxu0 0.0
        %1477 = vmatprep.subr.mxu0 0.0
        %1478 = vmatpush1.msra.mxu0 0.0
        %1479 = vmatprep.subr.mxu0 0.0
        %1480 = vmatpush1.msra.mxu0 0.0
        %1481 = vmatprep.subr.mxu0 0.0
        %1482 = vmatpush1.msra.mxu0 0.0
        %1483 = vmatprep.subr.mxu0 0.0
        %1484 = vmatpush1.msra.mxu0 0.0
        %1485 = vmatprep.subr.mxu0 0.0
        %1486 = vmatpush1.msra.mxu0 0.0
        %1487 = vmatprep.subr.mxu0 0.0
        %1488 = vmatpush1.msra.mxu0 0.0
        %1489 = vmatprep.subr.mxu0 0.0
        %1490 = vmatpush1.msra.mxu0 0.0
        %1491 = vmatprep.subr.mxu0 0.0
        %1492 = vmatpush1.msra.mxu0 0.0
        %1493 = vmatprep.subr.mxu0 0.0
        %1494 = vmatpush1.msra.mxu0 0.0
        %1495 = vmatprep.mubr.f32.mxu0 0.0
        %1496 = vmatmul.mubr.f32.gmra.mrb[0].mxu0 %v1429
        %v1497 = vpop.f32.mrb[0].mxu0
        %v1498 = vadd.f32 0.0, %v1497
        %v1499 = vpop.f32.mrb[0].mxu0
        %v1500 = vadd.f32 0.0, %v1499
        %1501 = vdwg.mxu0
        %v1503 = vrot.slane %v1498, 5
        %v1505 = vadd.f32 %v1043, %v1503
        %v1506 = vxor.u32 %v1505, 2147483648
        %v1507 = vmul.f32 %v1506, 1.442695
        %v1508 = vpow.pop %v1507
        %v1509 = vadd.f32 %v1508, 1.0
        %v1510 = vrcp.pop %v1509
        %v1511 = vmul.f32 1.0, %v1510
        %v1512 = vadd.f32 %v1500, %v1047
        %v1514 = vrot.slane %v1512, 5
        %v1516 = vmul.f32 %v1511, %v1514
        %v1517 = vadd.f32 %v1045, %v1516
        %v1518 = vtanh.pop %v1517
        %v1519 = vsub.f32 1.0, %v1511
        %1521 = vrot.lane.b32.xlu0 %v1518, 64
        %v1522 = vpop.permute.xlu0 %1521
        %v1524 = vmul.f32 %v1519, %v1522
        %v1525 = vrot.slane %v1403, 7
        %v1527 = vmul.f32 %v1511, %v1525
        %v1528 = vadd.f32 %v1524, %v1527
        %1530 = vrot.lane.b32.xlu0 %v1528, 64
        %v1531 = vpop.permute.xlu0 %1530
        %vm1533 = vcmask 519171
        %1534 = vst.msk [vmem:[#allocation3] sm:$0x8] %vm1533, %v1531
        %v1535 = vld [vmem:[%s6] sm:$0xff]
        %v1536 = vld [vmem:[%s6 + $0x8] sm:$0xff]
        %v1537 = vld [vmem:[%s6 + $0x10] sm:$0xff]
        %v1538 = vld [vmem:[%s6 + $0x18] sm:$0xff]
        %v1539 = vld [vmem:[%s6 + $0x20] sm:$0xff]
        %v1540 = vld [vmem:[%s6 + $0x28] sm:$0xff]
        %v1541 = vld [vmem:[%s6 + $0x30] sm:$0xff]
        %v1542 = vld [vmem:[%s6 + $0x38] sm:$0xff]
        %v1543 = vld [vmem:[%s6 + $0x40] sm:$0xff]
        %v1544 = vld [vmem:[%s6 + $0x48] sm:$0xff]
        %v1545 = vld [vmem:[%s6 + $0x50] sm:$0xff]
        %v1546 = vld [vmem:[%s6 + $0x58] sm:$0xff]
        %v1547 = vld [vmem:[%s6 + $0x60] sm:$0xff]
        %v1548 = vld [vmem:[%s6 + $0x68] sm:$0xff]
        %v1549 = vld [vmem:[%s6 + $0x70] sm:$0xff]
        %v1550 = vld [vmem:[%s6 + $0x78] sm:$0xff]
        %v1551 = vrot.slane %v1528, 3
        %1552 = vrot.lane.b32.xlu0 %v1551, 64
        %v1553 = vpop.permute.xlu0 %1552
        %v1554 = vsel %vm504, %v1553, 0
        %1556 = vmatprep.subr.mxu0 %v1536
        %1557 = vmatpush1.msra.mxu0 %v1535
        %1558 = vmatprep.subr.mxu0 %v1538
        %1559 = vmatpush1.msra.mxu0 %v1537
        %1560 = vmatprep.subr.mxu0 %v1540
        %1561 = vmatpush1.msra.mxu0 %v1539
        %1562 = vmatprep.subr.mxu0 %v1542
        %1563 = vmatpush1.msra.mxu0 %v1541
        %1564 = vmatprep.subr.mxu0 %v1544
        %1565 = vmatpush1.msra.mxu0 %v1543
        %1566 = vmatprep.subr.mxu0 %v1546
        %1567 = vmatpush1.msra.mxu0 %v1545
        %1568 = vmatprep.subr.mxu0 %v1548
        %1569 = vmatpush1.msra.mxu0 %v1547
        %1570 = vmatprep.subr.mxu0 %v1550
        %1571 = vmatpush1.msra.mxu0 %v1549
        %1572 = vmatprep.subr.mxu0 0.0
        %1573 = vmatpush1.msra.mxu0 0.0
        %1574 = vmatprep.subr.mxu0 0.0
        %1575 = vmatpush1.msra.mxu0 0.0
        %1576 = vmatprep.subr.mxu0 0.0
        %1577 = vmatpush1.msra.mxu0 0.0
        %1578 = vmatprep.subr.mxu0 0.0
        %1579 = vmatpush1.msra.mxu0 0.0
        %1580 = vmatprep.subr.mxu0 0.0
        %1581 = vmatpush1.msra.mxu0 0.0
        %1582 = vmatprep.subr.mxu0 0.0
        %1583 = vmatpush1.msra.mxu0 0.0
        %1584 = vmatprep.subr.mxu0 0.0
        %1585 = vmatpush1.msra.mxu0 0.0
        %1586 = vmatprep.subr.mxu0 0.0
        %1587 = vmatpush1.msra.mxu0 0.0
        %1588 = vmatprep.subr.mxu0 0.0
        %1589 = vmatpush1.msra.mxu0 0.0
        %1590 = vmatprep.subr.mxu0 0.0
        %1591 = vmatpush1.msra.mxu0 0.0
        %1592 = vmatprep.subr.mxu0 0.0
        %1593 = vmatpush1.msra.mxu0 0.0
        %1594 = vmatprep.subr.mxu0 0.0
        %1595 = vmatpush1.msra.mxu0 0.0
        %1596 = vmatprep.subr.mxu0 0.0
        %1597 = vmatpush1.msra.mxu0 0.0
        %1598 = vmatprep.subr.mxu0 0.0
        %1599 = vmatpush1.msra.mxu0 0.0
        %1600 = vmatprep.subr.mxu0 0.0
        %1601 = vmatpush1.msra.mxu0 0.0
        %1602 = vmatprep.subr.mxu0 0.0
        %1603 = vmatpush1.msra.mxu0 0.0
        %1604 = vmatprep.subr.mxu0 0.0
        %1605 = vmatpush1.msra.mxu0 0.0
        %1606 = vmatprep.subr.mxu0 0.0
        %1607 = vmatpush1.msra.mxu0 0.0
        %1608 = vmatprep.subr.mxu0 0.0
        %1609 = vmatpush1.msra.mxu0 0.0
        %1610 = vmatprep.subr.mxu0 0.0
        %1611 = vmatpush1.msra.mxu0 0.0
        %1612 = vmatprep.subr.mxu0 0.0
        %1613 = vmatpush1.msra.mxu0 0.0
        %1614 = vmatprep.subr.mxu0 0.0
        %1615 = vmatpush1.msra.mxu0 0.0
        %1616 = vmatprep.subr.mxu0 0.0
        %1617 = vmatpush1.msra.mxu0 0.0
        %1618 = vmatprep.subr.mxu0 0.0
        %1619 = vmatpush1.msra.mxu0 0.0
        %1620 = vmatprep.mubr.f32.mxu0 0.0
        %1621 = vmatmul.mubr.f32.gmra.mrb[0].mxu0 %v1554
        %v1622 = vpop.f32.mrb[0].mxu0
        %v1623 = vadd.f32 0.0, %v1622
        %v1624 = vpop.f32.mrb[0].mxu0
        %v1625 = vadd.f32 0.0, %v1624
        %1626 = vdwg.mxu0
        %v1628 = vrot.slane %v1623, 4
        %v1630 = vadd.f32 %v1043, %v1628
        %v1631 = vxor.u32 %v1630, 2147483648
        %v1632 = vmul.f32 %v1631, 1.442695
        %v1633 = vpow.pop %v1632
        %v1634 = vadd.f32 %v1633, 1.0
        %v1635 = vrcp.pop %v1634
        %v1636 = vmul.f32 1.0, %v1635
        %v1637 = vadd.f32 %v1625, %v1047
        %v1639 = vrot.slane %v1637, 4
        %v1641 = vmul.f32 %v1636, %v1639
        %v1642 = vadd.f32 %v1045, %v1641
        %v1643 = vtanh.pop %v1642
        %v1644 = vsub.f32 1.0, %v1636
        %1646 = vrot.lane.b32.xlu0 %v1643, 64
        %v1647 = vpop.permute.xlu0 %1646
        %v1649 = vmul.f32 %v1644, %v1647
        %v1650 = vrot.slane %v1528, 7
        %v1652 = vmul.f32 %v1636, %v1650
        %v1653 = vadd.f32 %v1649, %v1652
        %1655 = vrot.lane.b32.xlu0 %v1653, 64
        %v1656 = vpop.permute.xlu0 %1655
        %vm1658 = vcmask 520196
        %1659 = vst.msk [vmem:[#allocation3] sm:$0x10] %vm1658, %v1656
        %v1660 = vld [vmem:[%s6] sm:$0xff]
        %v1661 = vld [vmem:[%s6 + $0x8] sm:$0xff]
        %v1662 = vld [vmem:[%s6 + $0x10] sm:$0xff]
        %v1663 = vld [vmem:[%s6 + $0x18] sm:$0xff]
        %v1664 = vld [vmem:[%s6 + $0x20] sm:$0xff]
        %v1665 = vld [vmem:[%s6 + $0x28] sm:$0xff]
        %v1666 = vld [vmem:[%s6 + $0x30] sm:$0xff]
        %v1667 = vld [vmem:[%s6 + $0x38] sm:$0xff]
        %v1668 = vld [vmem:[%s6 + $0x40] sm:$0xff]
        %v1669 = vld [vmem:[%s6 + $0x48] sm:$0xff]
        %v1670 = vld [vmem:[%s6 + $0x50] sm:$0xff]
        %v1671 = vld [vmem:[%s6 + $0x58] sm:$0xff]
        %v1672 = vld [vmem:[%s6 + $0x60] sm:$0xff]
        %v1673 = vld [vmem:[%s6 + $0x68] sm:$0xff]
        %v1674 = vld [vmem:[%s6 + $0x70] sm:$0xff]
        %v1675 = vld [vmem:[%s6 + $0x78] sm:$0xff]
        %v1676 = vrot.slane %v1653, 4
        %1677 = vrot.lane.b32.xlu0 %v1676, 64
        %v1678 = vpop.permute.xlu0 %1677
        %v1679 = vsel %vm504, %v1678, 0
        %1681 = vmatprep.subr.mxu0 %v1661
        %1682 = vmatpush1.msra.mxu0 %v1660
        %1683 = vmatprep.subr.mxu0 %v1663
        %1684 = vmatpush1.msra.mxu0 %v1662
        %1685 = vmatprep.subr.mxu0 %v1665
        %1686 = vmatpush1.msra.mxu0 %v1664
        %1687 = vmatprep.subr.mxu0 %v1667
        %1688 = vmatpush1.msra.mxu0 %v1666
        %1689 = vmatprep.subr.mxu0 %v1669
        %1690 = vmatpush1.msra.mxu0 %v1668
        %1691 = vmatprep.subr.mxu0 %v1671
        %1692 = vmatpush1.msra.mxu0 %v1670
        %1693 = vmatprep.subr.mxu0 %v1673
        %1694 = vmatpush1.msra.mxu0 %v1672
        %1695 = vmatprep.subr.mxu0 %v1675
        %1696 = vmatpush1.msra.mxu0 %v1674
        %1697 = vmatprep.subr.mxu0 0.0
        %1698 = vmatpush1.msra.mxu0 0.0
        %1699 = vmatprep.subr.mxu0 0.0
        %1700 = vmatpush1.msra.mxu0 0.0
        %1701 = vmatprep.subr.mxu0 0.0
        %1702 = vmatpush1.msra.mxu0 0.0
        %1703 = vmatprep.subr.mxu0 0.0
        %1704 = vmatpush1.msra.mxu0 0.0
        %1705 = vmatprep.subr.mxu0 0.0
        %1706 = vmatpush1.msra.mxu0 0.0
        %1707 = vmatprep.subr.mxu0 0.0
        %1708 = vmatpush1.msra.mxu0 0.0
        %1709 = vmatprep.subr.mxu0 0.0
        %1710 = vmatpush1.msra.mxu0 0.0
        %1711 = vmatprep.subr.mxu0 0.0
        %1712 = vmatpush1.msra.mxu0 0.0
        %1713 = vmatprep.subr.mxu0 0.0
        %1714 = vmatpush1.msra.mxu0 0.0
        %1715 = vmatprep.subr.mxu0 0.0
        %1716 = vmatpush1.msra.mxu0 0.0
        %1717 = vmatprep.subr.mxu0 0.0
        %1718 = vmatpush1.msra.mxu0 0.0
        %1719 = vmatprep.subr.mxu0 0.0
        %1720 = vmatpush1.msra.mxu0 0.0
        %1721 = vmatprep.subr.mxu0 0.0
        %1722 = vmatpush1.msra.mxu0 0.0
        %1723 = vmatprep.subr.mxu0 0.0
        %1724 = vmatpush1.msra.mxu0 0.0
        %1725 = vmatprep.subr.mxu0 0.0
        %1726 = vmatpush1.msra.mxu0 0.0
        %1727 = vmatprep.subr.mxu0 0.0
        %1728 = vmatpush1.msra.mxu0 0.0
        %1729 = vmatprep.subr.mxu0 0.0
        %1730 = vmatpush1.msra.mxu0 0.0
        %1731 = vmatprep.subr.mxu0 0.0
        %1732 = vmatpush1.msra.mxu0 0.0
        %1733 = vmatprep.subr.mxu0 0.0
        %1734 = vmatpush1.msra.mxu0 0.0
        %1735 = vmatprep.subr.mxu0 0.0
        %1736 = vmatpush1.msra.mxu0 0.0
        %1737 = vmatprep.subr.mxu0 0.0
        %1738 = vmatpush1.msra.mxu0 0.0
        %1739 = vmatprep.subr.mxu0 0.0
        %1740 = vmatpush1.msra.mxu0 0.0
        %1741 = vmatprep.subr.mxu0 0.0
        %1742 = vmatpush1.msra.mxu0 0.0
        %1743 = vmatprep.subr.mxu0 0.0
        %1744 = vmatpush1.msra.mxu0 0.0
        %1745 = vmatprep.mubr.f32.mxu0 0.0
        %1746 = vmatmul.mubr.f32.gmra.mrb[0].mxu0 %v1679
        %v1747 = vpop.f32.mrb[0].mxu0
        %v1748 = vadd.f32 0.0, %v1747
        %v1749 = vpop.f32.mrb[0].mxu0
        %v1750 = vadd.f32 0.0, %v1749
        %1751 = vdwg.mxu0
        %v1753 = vrot.slane %v1748, 3
        %v1755 = vadd.f32 %v1043, %v1753
        %v1756 = vxor.u32 %v1755, 2147483648
        %v1757 = vmul.f32 %v1756, 1.442695
        %v1758 = vpow.pop %v1757
        %v1759 = vadd.f32 %v1758, 1.0
        %v1760 = vrcp.pop %v1759
        %v1761 = vmul.f32 1.0, %v1760
        %v1762 = vadd.f32 %v1750, %v1047
        %v1764 = vrot.slane %v1762, 3
        %v1766 = vmul.f32 %v1761, %v1764
        %v1767 = vadd.f32 %v1045, %v1766
        %v1768 = vtanh.pop %v1767
        %v1769 = vsub.f32 1.0, %v1761
        %1771 = vrot.lane.b32.xlu0 %v1768, 64
        %v1772 = vpop.permute.xlu0 %1771
        %v1774 = vmul.f32 %v1769, %v1772
        %v1775 = vrot.slane %v1653, 7
        %v1777 = vmul.f32 %v1761, %v1775
        %v1778 = vadd.f32 %v1774, %v1777
        %1780 = vrot.lane.b32.xlu0 %v1778, 64
        %v1781 = vpop.permute.xlu0 %1780
        %vm1783 = vcmask 521221
        %1784 = vst.msk [vmem:[#allocation3] sm:$0x20] %vm1783, %v1781
        %v1785 = vld [vmem:[%s6] sm:$0xff]
        %v1786 = vld [vmem:[%s6 + $0x8] sm:$0xff]
        %v1787 = vld [vmem:[%s6 + $0x10] sm:$0xff]
        %v1788 = vld [vmem:[%s6 + $0x18] sm:$0xff]
        %v1789 = vld [vmem:[%s6 + $0x20] sm:$0xff]
        %v1790 = vld [vmem:[%s6 + $0x28] sm:$0xff]
        %v1791 = vld [vmem:[%s6 + $0x30] sm:$0xff]
        %v1792 = vld [vmem:[%s6 + $0x38] sm:$0xff]
        %v1793 = vld [vmem:[%s6 + $0x40] sm:$0xff]
        %v1794 = vld [vmem:[%s6 + $0x48] sm:$0xff]
        %v1795 = vld [vmem:[%s6 + $0x50] sm:$0xff]
        %v1796 = vld [vmem:[%s6 + $0x58] sm:$0xff]
        %v1797 = vld [vmem:[%s6 + $0x60] sm:$0xff]
        %v1798 = vld [vmem:[%s6 + $0x68] sm:$0xff]
        %v1799 = vld [vmem:[%s6 + $0x70] sm:$0xff]
        %v1800 = vld [vmem:[%s6 + $0x78] sm:$0xff]
        %v1801 = vrot.slane %v1778, 5
        %1802 = vrot.lane.b32.xlu0 %v1801, 64
        %v1803 = vpop.permute.xlu0 %1802
        %v1804 = vsel %vm504, %v1803, 0
        %1806 = vmatprep.subr.mxu0 %v1786
        %1807 = vmatpush1.msra.mxu0 %v1785
        %1808 = vmatprep.subr.mxu0 %v1788
        %1809 = vmatpush1.msra.mxu0 %v1787
        %1810 = vmatprep.subr.mxu0 %v1790
        %1811 = vmatpush1.msra.mxu0 %v1789
        %1812 = vmatprep.subr.mxu0 %v1792
        %1813 = vmatpush1.msra.mxu0 %v1791
        %1814 = vmatprep.subr.mxu0 %v1794
        %1815 = vmatpush1.msra.mxu0 %v1793
        %1816 = vmatprep.subr.mxu0 %v1796
        %1817 = vmatpush1.msra.mxu0 %v1795
        %1818 = vmatprep.subr.mxu0 %v1798
        %1819 = vmatpush1.msra.mxu0 %v1797
        %1820 = vmatprep.subr.mxu0 %v1800
        %1821 = vmatpush1.msra.mxu0 %v1799
        %1822 = vmatprep.subr.mxu0 0.0
        %1823 = vmatpush1.msra.mxu0 0.0
        %1824 = vmatprep.subr.mxu0 0.0
        %1825 = vmatpush1.msra.mxu0 0.0
        %1826 = vmatprep.subr.mxu0 0.0
        %1827 = vmatpush1.msra.mxu0 0.0
        %1828 = vmatprep.subr.mxu0 0.0
        %1829 = vmatpush1.msra.mxu0 0.0
        %1830 = vmatprep.subr.mxu0 0.0
        %1831 = vmatpush1.msra.mxu0 0.0
        %1832 = vmatprep.subr.mxu0 0.0
        %1833 = vmatpush1.msra.mxu0 0.0
        %1834 = vmatprep.subr.mxu0 0.0
        %1835 = vmatpush1.msra.mxu0 0.0
        %1836 = vmatprep.subr.mxu0 0.0
        %1837 = vmatpush1.msra.mxu0 0.0
        %1838 = vmatprep.subr.mxu0 0.0
        %1839 = vmatpush1.msra.mxu0 0.0
        %1840 = vmatprep.subr.mxu0 0.0
        %1841 = vmatpush1.msra.mxu0 0.0
        %1842 = vmatprep.subr.mxu0 0.0
        %1843 = vmatpush1.msra.mxu0 0.0
        %1844 = vmatprep.subr.mxu0 0.0
        %1845 = vmatpush1.msra.mxu0 0.0
        %1846 = vmatprep.subr.mxu0 0.0
        %1847 = vmatpush1.msra.mxu0 0.0
        %1848 = vmatprep.subr.mxu0 0.0
        %1849 = vmatpush1.msra.mxu0 0.0
        %1850 = vmatprep.subr.mxu0 0.0
        %1851 = vmatpush1.msra.mxu0 0.0
        %1852 = vmatprep.subr.mxu0 0.0
        %1853 = vmatpush1.msra.mxu0 0.0
        %1854 = vmatprep.subr.mxu0 0.0
        %1855 = vmatpush1.msra.mxu0 0.0
        %1856 = vmatprep.subr.mxu0 0.0
        %1857 = vmatpush1.msra.mxu0 0.0
        %1858 = vmatprep.subr.mxu0 0.0
        %1859 = vmatpush1.msra.mxu0 0.0
        %1860 = vmatprep.subr.mxu0 0.0
        %1861 = vmatpush1.msra.mxu0 0.0
        %1862 = vmatprep.subr.mxu0 0.0
        %1863 = vmatpush1.msra.mxu0 0.0
        %1864 = vmatprep.subr.mxu0 0.0
        %1865 = vmatpush1.msra.mxu0 0.0
        %1866 = vmatprep.subr.mxu0 0.0
        %1867 = vmatpush1.msra.mxu0 0.0
        %1868 = vmatprep.subr.mxu0 0.0
        %1869 = vmatpush1.msra.mxu0 0.0
        %1870 = vmatprep.mubr.f32.mxu0 0.0
        %1871 = vmatmul.mubr.f32.gmra.mrb[0].mxu0 %v1804
        %v1872 = vpop.f32.mrb[0].mxu0
        %v1873 = vadd.f32 0.0, %v1872
        %v1874 = vpop.f32.mrb[0].mxu0
        %v1875 = vadd.f32 0.0, %v1874
        %1876 = vdwg.mxu0
        %v1878 = vrot.slane %v1873, 2
        %v1880 = vadd.f32 %v1043, %v1878
        %v1881 = vxor.u32 %v1880, 2147483648
        %v1882 = vmul.f32 %v1881, 1.442695
        %v1883 = vpow.pop %v1882
        %v1884 = vadd.f32 %v1883, 1.0
        %v1885 = vrcp.pop %v1884
        %v1886 = vmul.f32 1.0, %v1885
        %v1887 = vadd.f32 %v1875, %v1047
        %v1889 = vrot.slane %v1887, 2
        %v1891 = vmul.f32 %v1886, %v1889
        %v1892 = vadd.f32 %v1045, %v1891
        %v1893 = vtanh.pop %v1892
        %v1894 = vsub.f32 1.0, %v1886
        %1896 = vrot.lane.b32.xlu0 %v1893, 64
        %v1897 = vpop.permute.xlu0 %1896
        %v1899 = vmul.f32 %v1894, %v1897
        %v1900 = vrot.slane %v1778, 7
        %v1902 = vmul.f32 %v1886, %v1900
        %v1903 = vadd.f32 %v1899, %v1902
        %1905 = vrot.lane.b32.xlu0 %v1903, 64
        %v1906 = vpop.permute.xlu0 %1905
        %vm1908 = vcmask 522246
        %1909 = vst.msk [vmem:[#allocation3] sm:$0x40] %vm1908, %v1906
        %v1910 = vld [vmem:[%s6] sm:$0xff]
        %v1911 = vld [vmem:[%s6 + $0x8] sm:$0xff]
        %v1912 = vld [vmem:[%s6 + $0x10] sm:$0xff]
        %v1913 = vld [vmem:[%s6 + $0x18] sm:$0xff]
        %v1914 = vld [vmem:[%s6 + $0x20] sm:$0xff]
        %v1915 = vld [vmem:[%s6 + $0x28] sm:$0xff]
        %v1916 = vld [vmem:[%s6 + $0x30] sm:$0xff]
        %v1917 = vld [vmem:[%s6 + $0x38] sm:$0xff]
        %v1918 = vld [vmem:[%s6 + $0x40] sm:$0xff]
        %v1919 = vld [vmem:[%s6 + $0x48] sm:$0xff]
        %v1920 = vld [vmem:[%s6 + $0x50] sm:$0xff]
        %v1921 = vld [vmem:[%s6 + $0x58] sm:$0xff]
        %v1922 = vld [vmem:[%s6 + $0x60] sm:$0xff]
        %v1923 = vld [vmem:[%s6 + $0x68] sm:$0xff]
        %v1924 = vld [vmem:[%s6 + $0x70] sm:$0xff]
        %v1925 = vld [vmem:[%s6 + $0x78] sm:$0xff]
        %v1926 = vrot.slane %v1903, 6
        %1927 = vrot.lane.b32.xlu0 %v1926, 64
        %v1928 = vpop.permute.xlu0 %1927
        %v1929 = vsel %vm504, %v1928, 0
        %1931 = vmatprep.subr.mxu0 %v1911
        %1932 = vmatpush1.msra.mxu0 %v1910
        %1933 = vmatprep.subr.mxu0 %v1913
        %1934 = vmatpush1.msra.mxu0 %v1912
        %1935 = vmatprep.subr.mxu0 %v1915
        %1936 = vmatpush1.msra.mxu0 %v1914
        %1937 = vmatprep.subr.mxu0 %v1917
        %1938 = vmatpush1.msra.mxu0 %v1916
        %1939 = vmatprep.subr.mxu0 %v1919
        %1940 = vmatpush1.msra.mxu0 %v1918
        %1941 = vmatprep.subr.mxu0 %v1921
        %1942 = vmatpush1.msra.mxu0 %v1920
        %1943 = vmatprep.subr.mxu0 %v1923
        %1944 = vmatpush1.msra.mxu0 %v1922
        %1945 = vmatprep.subr.mxu0 %v1925
        %1946 = vmatpush1.msra.mxu0 %v1924
        %1947 = vmatprep.subr.mxu0 0.0
        %1948 = vmatpush1.msra.mxu0 0.0
        %1949 = vmatprep.subr.mxu0 0.0
        %1950 = vmatpush1.msra.mxu0 0.0
        %1951 = vmatprep.subr.mxu0 0.0
        %1952 = vmatpush1.msra.mxu0 0.0
        %1953 = vmatprep.subr.mxu0 0.0
        %1954 = vmatpush1.msra.mxu0 0.0
        %1955 = vmatprep.subr.mxu0 0.0
        %1956 = vmatpush1.msra.mxu0 0.0
        %1957 = vmatprep.subr.mxu0 0.0
        %1958 = vmatpush1.msra.mxu0 0.0
        %1959 = vmatprep.subr.mxu0 0.0
        %1960 = vmatpush1.msra.mxu0 0.0
        %1961 = vmatprep.subr.mxu0 0.0
        %1962 = vmatpush1.msra.mxu0 0.0
        %1963 = vmatprep.subr.mxu0 0.0
        %1964 = vmatpush1.msra.mxu0 0.0
        %1965 = vmatprep.subr.mxu0 0.0
        %1966 = vmatpush1.msra.mxu0 0.0
        %1967 = vmatprep.subr.mxu0 0.0
        %1968 = vmatpush1.msra.mxu0 0.0
        %1969 = vmatprep.subr.mxu0 0.0
        %1970 = vmatpush1.msra.mxu0 0.0
        %1971 = vmatprep.subr.mxu0 0.0
        %1972 = vmatpush1.msra.mxu0 0.0
        %1973 = vmatprep.subr.mxu0 0.0
        %1974 = vmatpush1.msra.mxu0 0.0
        %1975 = vmatprep.subr.mxu0 0.0
        %1976 = vmatpush1.msra.mxu0 0.0
        %1977 = vmatprep.subr.mxu0 0.0
        %1978 = vmatpush1.msra.mxu0 0.0
        %1979 = vmatprep.subr.mxu0 0.0
        %1980 = vmatpush1.msra.mxu0 0.0
        %1981 = vmatprep.subr.mxu0 0.0
        %1982 = vmatpush1.msra.mxu0 0.0
        %1983 = vmatprep.subr.mxu0 0.0
        %1984 = vmatpush1.msra.mxu0 0.0
        %1985 = vmatprep.subr.mxu0 0.0
        %1986 = vmatpush1.msra.mxu0 0.0
        %1987 = vmatprep.subr.mxu0 0.0
        %1988 = vmatpush1.msra.mxu0 0.0
        %1989 = vmatprep.subr.mxu0 0.0
        %1990 = vmatpush1.msra.mxu0 0.0
        %1991 = vmatprep.subr.mxu0 0.0
        %1992 = vmatpush1.msra.mxu0 0.0
        %1993 = vmatprep.subr.mxu0 0.0
        %1994 = vmatpush1.msra.mxu0 0.0
        %1995 = vmatprep.mubr.f32.mxu0 0.0
        %1996 = vmatmul.mubr.f32.gmra.mrb[0].mxu0 %v1929
        %v1997 = vpop.f32.mrb[0].mxu0
        %v1998 = vadd.f32 0.0, %v1997
        %v1999 = vpop.f32.mrb[0].mxu0
        %v2000 = vadd.f32 0.0, %v1999
        %2001 = vdwg.mxu0
        %v2003 = vrot.slane %v1998, 1
        %v2005 = vadd.f32 %v1043, %v2003
        %v2006 = vxor.u32 %v2005, 2147483648
        %v2007 = vmul.f32 %v2006, 1.442695
        %v2008 = vpow.pop %v2007
        %v2009 = vadd.f32 %v2008, 1.0
        %v2010 = vrcp.pop %v2009
        %v2011 = vmul.f32 1.0, %v2010
        %v2012 = vadd.f32 %v2000, %v1047
        %v2014 = vrot.slane %v2012, 1
        %v2016 = vmul.f32 %v2011, %v2014
        %v2017 = vadd.f32 %v1045, %v2016
        %v2018 = vtanh.pop %v2017
        %v2019 = vsub.f32 1.0, %v2011
        %2021 = vrot.lane.b32.xlu0 %v2018, 64
        %v2022 = vpop.permute.xlu0 %2021
        %v2024 = vmul.f32 %v2019, %v2022
        %v2025 = vrot.slane %v1903, 7
        %v2027 = vmul.f32 %v2011, %v2025
        %v2028 = vadd.f32 %v2024, %v2027
        %2030 = vrot.lane.b32.xlu0 %v2028, 64
        %v2031 = vpop.permute.xlu0 %2030
        %vm2033 = vcmask 523271
        %2034 = vst.msk [vmem:[#allocation3] sm:$0x80] %vm2033, %v2031
        %v2035 = vld [vmem:[#allocation3] sm:$0xff]
        %v2037 = vsel %vm504, %v2035, 0
        %2039 = vmatprep.subr.mxu0 0.0
        %2040 = vmatpush1.xpose.msra.mxu0 %v2037
        %2041 = vmatprep.subr.mxu0 0.0
        %2042 = vmatpush1.xpose.msra.mxu0 0.0
        %2043 = vmatprep.subr.mxu0 0.0
        %2044 = vmatpush1.xpose.msra.mxu0 0.0
        %2045 = vmatprep.subr.mxu0 0.0
        %2046 = vmatpush1.xpose.msra.mxu0 0.0
        %2047 = vmatprep.subr.mxu0 0.0
        %2048 = vmatpush1.xpose.msra.mxu0 0.0
        %2049 = vmatprep.subr.mxu0 0.0
        %2050 = vmatpush1.xpose.msra.mxu0 0.0
        %2051 = vmatprep.subr.mxu0 0.0
        %2052 = vmatpush1.xpose.msra.mxu0 0.0
        %2053 = vmatprep.subr.mxu0 0.0
        %2054 = vmatpush1.xpose.msra.mxu0 0.0
        %2055 = vmatprep.subr.mxu0 0.0
        %2056 = vmatpush1.xpose.msra.mxu0 0.0
        %2057 = vmatprep.subr.mxu0 0.0
        %2058 = vmatpush1.xpose.msra.mxu0 0.0
        %2059 = vmatprep.subr.mxu0 0.0
        %2060 = vmatpush1.xpose.msra.mxu0 0.0
        %2061 = vmatprep.subr.mxu0 0.0
        %2062 = vmatpush1.xpose.msra.mxu0 0.0
        %2063 = vmatprep.subr.mxu0 0.0
        %2064 = vmatpush1.xpose.msra.mxu0 0.0
        %2065 = vmatprep.subr.mxu0 0.0
        %2066 = vmatpush1.xpose.msra.mxu0 0.0
        %2067 = vmatprep.subr.mxu0 0.0
        %2068 = vmatpush1.xpose.msra.mxu0 0.0
        %2069 = vmatprep.subr.mxu0 0.0
        %2070 = vmatpush1.xpose.msra.mxu0 0.0
        %2071 = vmatprep.subr.mxu0 0.0
        %2072 = vmatpush1.xpose.msra.mxu0 0.0
        %2073 = vmatprep.subr.mxu0 0.0
        %2074 = vmatpush1.xpose.msra.mxu0 0.0
        %2075 = vmatprep.subr.mxu0 0.0
        %2076 = vmatpush1.xpose.msra.mxu0 0.0
        %2077 = vmatprep.subr.mxu0 0.0
        %2078 = vmatpush1.xpose.msra.mxu0 0.0
        %2079 = vmatprep.subr.mxu0 0.0
        %2080 = vmatpush1.xpose.msra.mxu0 0.0
        %2081 = vmatprep.subr.mxu0 0.0
        %2082 = vmatpush1.xpose.msra.mxu0 0.0
        %2083 = vmatprep.subr.mxu0 0.0
        %2084 = vmatpush1.xpose.msra.mxu0 0.0
        %2085 = vmatprep.subr.mxu0 0.0
        %2086 = vmatpush1.xpose.msra.mxu0 0.0
        %2087 = vmatprep.subr.mxu0 0.0
        %2088 = vmatpush1.xpose.msra.mxu0 0.0
        %2089 = vmatprep.subr.mxu0 0.0
        %2090 = vmatpush1.xpose.msra.mxu0 0.0
        %2091 = vmatprep.subr.mxu0 0.0
        %2092 = vmatpush1.xpose.msra.mxu0 0.0
        %2093 = vmatprep.subr.mxu0 0.0
        %2094 = vmatpush1.xpose.msra.mxu0 0.0
        %2095 = vmatprep.subr.mxu0 0.0
        %2096 = vmatpush1.xpose.msra.mxu0 0.0
        %2097 = vmatprep.subr.mxu0 0.0
        %2098 = vmatpush1.xpose.msra.mxu0 0.0
        %2099 = vmatprep.subr.mxu0 0.0
        %2100 = vmatpush1.xpose.msra.mxu0 0.0
        %2101 = vmatprep.subr.mxu0 0.0
        %2102 = vmatpush1.xpose.msra.mxu0 0.0
        %2103 = vmatprep.mubr.f32.mxu0 0.0
        %2104 = vmatmul.mubr.f32.gmra.mrb[0].mxu0 %v2037
        %v2105 = vpop.f32.mrb[0].mxu0
        %v2106 = vadd.f32 0.0, %v2105
        %v2107 = vpop.f32.mrb[0].mxu0
        %2108 = vdwg.mxu0
        %v2109 = vmul.f32 %v2106, 0.125
        %vm2110 = vcmask 64512
        %v2111 = vsel %vm2110, %v2109, -inf
        %2112 = vmax.xlane.f32.xlu0 %v2111
        %v2113 = vpop.xlane.xlu0 %2112
        %v2114 = vsub.f32 %v2109, %v2113
        %v2115 = vmul.f32 %v2114, 1.442695
        %v2116 = vpow.pop %v2115
        %v2117 = vsel %vm2110, %v2116, 0.0
        %2118 = vadd.xlane.f32.xlu0 %v2117
        %v2119 = vpop.xlane.xlu0 %2118
        %v2120 = vrcp.pop %v2119
        %v2121 = vmul.f32 %v2116, %v2120
        %v2123 = vsel %vm2110, %v2121, 0
        %2125 = vmatprep.subr.mxu0 0.0
        %2126 = vmatpush1.msra.mxu0 %v2035
        %2127 = vmatprep.subr.mxu0 0.0
        %2128 = vmatpush1.msra.mxu0 0.0
        %2129 = vmatprep.subr.mxu0 0.0
        %2130 = vmatpush1.msra.mxu0 0.0
        %2131 = vmatprep.subr.mxu0 0.0
        %2132 = vmatpush1.msra.mxu0 0.0
        %2133 = vmatprep.subr.mxu0 0.0
        %2134 = vmatpush1.msra.mxu0 0.0
        %2135 = vmatprep.subr.mxu0 0.0
        %2136 = vmatpush1.msra.mxu0 0.0
        %2137 = vmatprep.subr.mxu0 0.0
        %2138 = vmatpush1.msra.mxu0 0.0
        %2139 = vmatprep.subr.mxu0 0.0
        %2140 = vmatpush1.msra.mxu0 0.0
        %2141 = vmatprep.subr.mxu0 0.0
        %2142 = vmatpush1.msra.mxu0 0.0
        %2143 = vmatprep.subr.mxu0 0.0
        %2144 = vmatpush1.msra.mxu0 0.0
        %2145 = vmatprep.subr.mxu0 0.0
        %2146 = vmatpush1.msra.mxu0 0.0
        %2147 = vmatprep.subr.mxu0 0.0
        %2148 = vmatpush1.msra.mxu0 0.0
        %2149 = vmatprep.subr.mxu0 0.0
        %2150 = vmatpush1.msra.mxu0 0.0
        %2151 = vmatprep.subr.mxu0 0.0
        %2152 = vmatpush1.msra.mxu0 0.0
        %2153 = vmatprep.subr.mxu0 0.0
        %2154 = vmatpush1.msra.mxu0 0.0
        %2155 = vmatprep.subr.mxu0 0.0
        %2156 = vmatpush1.msra.mxu0 0.0
        %2157 = vmatprep.subr.mxu0 0.0
        %2158 = vmatpush1.msra.mxu0 0.0
        %2159 = vmatprep.subr.mxu0 0.0
        %2160 = vmatpush1.msra.mxu0 0.0
        %2161 = vmatprep.subr.mxu0 0.0
        %2162 = vmatpush1.msra.mxu0 0.0
        %2163 = vmatprep.subr.mxu0 0.0
        %2164 = vmatpush1.msra.mxu0 0.0
        %2165 = vmatprep.subr.mxu0 0.0
        %2166 = vmatpush1.msra.mxu0 0.0
        %2167 = vmatprep.subr.mxu0 0.0
        %2168 = vmatpush1.msra.mxu0 0.0
        %2169 = vmatprep.subr.mxu0 0.0
        %2170 = vmatpush1.msra.mxu0 0.0
        %2171 = vmatprep.subr.mxu0 0.0
        %2172 = vmatpush1.msra.mxu0 0.0
        %2173 = vmatprep.subr.mxu0 0.0
        %2174 = vmatpush1.msra.mxu0 0.0
        %2175 = vmatprep.subr.mxu0 0.0
        %2176 = vmatpush1.msra.mxu0 0.0
        %2177 = vmatprep.subr.mxu0 0.0
        %2178 = vmatpush1.msra.mxu0 0.0
        %2179 = vmatprep.subr.mxu0 0.0
        %2180 = vmatpush1.msra.mxu0 0.0
        %2181 = vmatprep.subr.mxu0 0.0
        %2182 = vmatpush1.msra.mxu0 0.0
        %2183 = vmatprep.subr.mxu0 0.0
        %2184 = vmatpush1.msra.mxu0 0.0
        %2185 = vmatprep.subr.mxu0 0.0
        %2186 = vmatpush1.msra.mxu0 0.0
        %2187 = vmatprep.subr.mxu0 0.0
        %2188 = vmatpush1.msra.mxu0 0.0
        %2189 = vmatprep.mubr.f32.mxu0 0.0
        %2190 = vmatmul.mubr.f32.gmra.mrb[0].mxu0 %v2123
        %v2191 = vpop.f32.mrb[0].mxu0
        %v2192 = vadd.f32 0.0, %v2191
        %v2193 = vpop.f32.mrb[0].mxu0
        %2194 = vdwg.mxu0
        %v2195 = vld [vmem:[%s8] sm:$0xff]
        %v2196 = vld [vmem:[%s8 + $0x8] sm:$0xff]
        %v2197 = vld [vmem:[%s8 + $0x10] sm:$0xff]
        %v2198 = vld [vmem:[%s8 + $0x18] sm:$0xff]
        %v2199 = vld [vmem:[%s8 + $0x20] sm:$0xff]
        %v2200 = vld [vmem:[%s8 + $0x28] sm:$0xff]
        %v2201 = vld [vmem:[%s8 + $0x30] sm:$0xff]
        %v2202 = vld [vmem:[%s8 + $0x38] sm:$0xff]
        %v2203 = vld [vmem:[%s9] sm:$0x1]
        %v2205 = vlaneseq
        %v2206 = vshrl.u32 %v2205, 7
        %v2207 = vsub.s32 0, %v2206
        %v2208 = vrot.slane %v2203, %v2207
        %v2211 = vsel %vm504, %v2192, 0
        %2213 = vmatprep.subr.mxu0 0.0
        %2214 = vmatpush1.msra.mxu0 %v2195
        %2215 = vmatprep.subr.mxu0 0.0
        %2216 = vmatpush1.msra.mxu0 %v2196
        %2217 = vmatprep.subr.mxu0 0.0
        %2218 = vmatpush1.msra.mxu0 %v2197
        %2219 = vmatprep.subr.mxu0 0.0
        %2220 = vmatpush1.msra.mxu0 %v2198
        %2221 = vmatprep.subr.mxu0 0.0
        %2222 = vmatpush1.msra.mxu0 %v2199
        %2223 = vmatprep.subr.mxu0 0.0
        %2224 = vmatpush1.msra.mxu0 %v2200
        %2225 = vmatprep.subr.mxu0 0.0
        %2226 = vmatpush1.msra.mxu0 %v2201
        %2227 = vmatprep.subr.mxu0 0.0
        %2228 = vmatpush1.msra.mxu0 %v2202
        %2229 = vmatprep.subr.mxu0 0.0
        %2230 = vmatpush1.msra.mxu0 0.0
        %2231 = vmatprep.subr.mxu0 0.0
        %2232 = vmatpush1.msra.mxu0 0.0
        %2233 = vmatprep.subr.mxu0 0.0
        %2234 = vmatpush1.msra.mxu0 0.0
        %2235 = vmatprep.subr.mxu0 0.0
        %2236 = vmatpush1.msra.mxu0 0.0
        %2237 = vmatprep.subr.mxu0 0.0
        %2238 = vmatpush1.msra.mxu0 0.0
        %2239 = vmatprep.subr.mxu0 0.0
        %2240 = vmatpush1.msra.mxu0 0.0
        %2241 = vmatprep.subr.mxu0 0.0
        %2242 = vmatpush1.msra.mxu0 0.0
        %2243 = vmatprep.subr.mxu0 0.0
        %2244 = vmatpush1.msra.mxu0 0.0
        %2245 = vmatprep.subr.mxu0 0.0
        %2246 = vmatpush1.msra.mxu0 0.0
        %2247 = vmatprep.subr.mxu0 0.0
        %2248 = vmatpush1.msra.mxu0 0.0
        %2249 = vmatprep.subr.mxu0 0.0
        %2250 = vmatpush1.msra.mxu0 0.0
        %2251 = vmatprep.subr.mxu0 0.0
        %2252 = vmatpush1.msra.mxu0 0.0
        %2253 = vmatprep.subr.mxu0 0.0
        %2254 = vmatpush1.msra.mxu0 0.0
        %2255 = vmatprep.subr.mxu0 0.0
        %2256 = vmatpush1.msra.mxu0 0.0
        %2257 = vmatprep.subr.mxu0 0.0
        %2258 = vmatpush1.msra.mxu0 0.0
        %2259 = vmatprep.subr.mxu0 0.0
        %2260 = vmatpush1.msra.mxu0 0.0
        %2261 = vmatprep.subr.mxu0 0.0
        %2262 = vmatpush1.msra.mxu0 0.0
        %2263 = vmatprep.subr.mxu0 0.0
        %2264 = vmatpush1.msra.mxu0 0.0
        %2265 = vmatprep.subr.mxu0 0.0
        %2266 = vmatpush1.msra.mxu0 0.0
        %2267 = vmatprep.subr.mxu0 0.0
        %2268 = vmatpush1.msra.mxu0 0.0
        %2269 = vmatprep.subr.mxu0 0.0
        %2270 = vmatpush1.msra.mxu0 0.0
        %2271 = vmatprep.subr.mxu0 0.0
        %2272 = vmatpush1.msra.mxu0 0.0
        %2273 = vmatprep.subr.mxu0 0.0
        %2274 = vmatpush1.msra.mxu0 0.0
        %2275 = vmatprep.subr.mxu0 0.0
        %2276 = vmatpush1.msra.mxu0 0.0
        %2277 = vmatprep.mubr.f32.mxu0 0.0
        %2278 = vmatmul.mubr.f32.gmra.mrb[0].mxu0 %v2211
        %v2279 = vpop.f32.mrb[0].mxu0
        %v2280 = vadd.f32 %v2208, %v2279
        %v2281 = vpop.f32.mrb[0].mxu0
        %2282 = vdwg.mxu0
        %v2283 = vld [vmem:[%s447] sm:$0xff]
        %v2284 = vld [vmem:[%s10] sm:$0xff]
        %v2285 = vld [vmem:[%s10 + $0x8] sm:$0xff]
        %v2286 = vld [vmem:[%s10 + $0x10] sm:$0xff]
        %v2287 = vld [vmem:[%s10 + $0x18] sm:$0xff]
        %vm2288 = vcmask 261120
        %v2290 = vsel %vm2288, %v2283, 0
        %2292 = vmatprep.subr.mxu0 0.0
        %2293 = vmatpush1.msra.mxu0 %v2284
        %2294 = vmatprep.subr.mxu0 0.0
        %2295 = vmatpush1.msra.mxu0 %v2285
        %2296 = vmatprep.subr.mxu0 0.0
        %2297 = vmatpush1.msra.mxu0 %v2286
        %2298 = vmatprep.subr.mxu0 0.0
        %2299 = vmatpush1.msra.mxu0 %v2287
        %2300 = vmatprep.subr.mxu0 0.0
        %2301 = vmatpush1.msra.mxu0 0.0
        %2302 = vmatprep.subr.mxu0 0.0
        %2303 = vmatpush1.msra.mxu0 0.0
        %2304 = vmatprep.subr.mxu0 0.0
        %2305 = vmatpush1.msra.mxu0 0.0
        %2306 = vmatprep.subr.mxu0 0.0
        %2307 = vmatpush1.msra.mxu0 0.0
        %2308 = vmatprep.subr.mxu0 0.0
        %2309 = vmatpush1.msra.mxu0 0.0
        %2310 = vmatprep.subr.mxu0 0.0
        %2311 = vmatpush1.msra.mxu0 0.0
        %2312 = vmatprep.subr.mxu0 0.0
        %2313 = vmatpush1.msra.mxu0 0.0
        %2314 = vmatprep.subr.mxu0 0.0
        %2315 = vmatpush1.msra.mxu0 0.0
        %2316 = vmatprep.subr.mxu0 0.0
        %2317 = vmatpush1.msra.mxu0 0.0
        %2318 = vmatprep.subr.mxu0 0.0
        %2319 = vmatpush1.msra.mxu0 0.0
        %2320 = vmatprep.subr.mxu0 0.0
        %2321 = vmatpush1.msra.mxu0 0.0
        %2322 = vmatprep.subr.mxu0 0.0
        %2323 = vmatpush1.msra.mxu0 0.0
        %2324 = vmatprep.subr.mxu0 0.0
        %2325 = vmatpush1.msra.mxu0 0.0
        %2326 = vmatprep.subr.mxu0 0.0
        %2327 = vmatpush1.msra.mxu0 0.0
        %2328 = vmatprep.subr.mxu0 0.0
        %2329 = vmatpush1.msra.mxu0 0.0
        %2330 = vmatprep.subr.mxu0 0.0
        %2331 = vmatpush1.msra.mxu0 0.0
        %2332 = vmatprep.subr.mxu0 0.0
        %2333 = vmatpush1.msra.mxu0 0.0
        %2334 = vmatprep.subr.mxu0 0.0
        %2335 = vmatpush1.msra.mxu0 0.0
        %2336 = vmatprep.subr.mxu0 0.0
        %2337 = vmatpush1.msra.mxu0 0.0
        %2338 = vmatprep.subr.mxu0 0.0
        %2339 = vmatpush1.msra.mxu0 0.0
        %2340 = vmatprep.subr.mxu0 0.0
        %2341 = vmatpush1.msra.mxu0 0.0
        %2342 = vmatprep.subr.mxu0 0.0
        %2343 = vmatpush1.msra.mxu0 0.0
        %2344 = vmatprep.subr.mxu0 0.0
        %2345 = vmatpush1.msra.mxu0 0.0
        %2346 = vmatprep.subr.mxu0 0.0
        %2347 = vmatpush1.msra.mxu0 0.0
        %2348 = vmatprep.subr.mxu0 0.0
        %2349 = vmatpush1.msra.mxu0 0.0
        %2350 = vmatprep.subr.mxu0 0.0
        %2351 = vmatpush1.msra.mxu0 0.0
        %2352 = vmatprep.subr.mxu0 0.0
        %2353 = vmatpush1.msra.mxu0 0.0
        %2354 = vmatprep.subr.mxu0 0.0
        %2355 = vmatpush1.msra.mxu0 0.0
        %2356 = vmatprep.mubr.f32.mxu0 0.0
        %2357 = vmatmul.mubr.f32.gmra.mrb[0].mxu0 %v2290
        %v2358 = vpop.f32.mrb[0].mxu0
        %v2359 = vadd.f32 0.0, %v2358
        %v2360 = vpop.f32.mrb[0].mxu0
        %2361 = vdwg.mxu0
        %v2362 = vadd.f32 %v2280, %v2359
        %v2363 = vmax.f32 %v2362, 0.0
        %v2364 = vld [vmem:[%s11] sm:$0xff]
        %v2365 = vld [vmem:[%s11 + $0x8] sm:$0xff]
        %v2366 = vld [vmem:[%s11 + $0x10] sm:$0xff]
        %v2367 = vld [vmem:[%s11 + $0x18] sm:$0xff]
        %v2368 = vld [vmem:[%s11 + $0x20] sm:$0xff]
        %v2369 = vld [vmem:[%s11 + $0x28] sm:$0xff]
        %v2370 = vld [vmem:[%s11 + $0x30] sm:$0xff]
        %v2371 = vld [vmem:[%s11 + $0x38] sm:$0xff]
        %v2372 = vld [vmem:[#allocation4] sm:$0x1]
        %v2374 = vlaneseq
        %v2375 = vshrl.u32 %v2374, 7
        %v2376 = vsub.s32 0, %v2375
        %v2377 = vrot.slane %v2372, %v2376
        %v2380 = vsel %vm504, %v2363, 0
        %2382 = vmatprep.subr.mxu0 0.0
        %2383 = vmatpush1.msra.mxu0 %v2364
        %2384 = vmatprep.subr.mxu0 0.0
        %2385 = vmatpush1.msra.mxu0 %v2365
        %2386 = vmatprep.subr.mxu0 0.0
        %2387 = vmatpush1.msra.mxu0 %v2366
        %2388 = vmatprep.subr.mxu0 0.0
        %2389 = vmatpush1.msra.mxu0 %v2367
        %2390 = vmatprep.subr.mxu0 0.0
        %2391 = vmatpush1.msra.mxu0 %v2368
        %2392 = vmatprep.subr.mxu0 0.0
        %2393 = vmatpush1.msra.mxu0 %v2369
        %2394 = vmatprep.subr.mxu0 0.0
        %2395 = vmatpush1.msra.mxu0 %v2370
        %2396 = vmatprep.subr.mxu0 0.0
        %2397 = vmatpush1.msra.mxu0 %v2371
        %2398 = vmatprep.subr.mxu0 0.0
        %2399 = vmatpush1.msra.mxu0 0.0
        %2400 = vmatprep.subr.mxu0 0.0
        %2401 = vmatpush1.msra.mxu0 0.0
        %2402 = vmatprep.subr.mxu0 0.0
        %2403 = vmatpush1.msra.mxu0 0.0
        %2404 = vmatprep.subr.mxu0 0.0
        %2405 = vmatpush1.msra.mxu0 0.0
        %2406 = vmatprep.subr.mxu0 0.0
        %2407 = vmatpush1.msra.mxu0 0.0
        %2408 = vmatprep.subr.mxu0 0.0
        %2409 = vmatpush1.msra.mxu0 0.0
        %2410 = vmatprep.subr.mxu0 0.0
        %2411 = vmatpush1.msra.mxu0 0.0
        %2412 = vmatprep.subr.mxu0 0.0
        %2413 = vmatpush1.msra.mxu0 0.0
        %2414 = vmatprep.subr.mxu0 0.0
        %2415 = vmatpush1.msra.mxu0 0.0
        %2416 = vmatprep.subr.mxu0 0.0
        %2417 = vmatpush1.msra.mxu0 0.0
        %2418 = vmatprep.subr.mxu0 0.0
        %2419 = vmatpush1.msra.mxu0 0.0
        %2420 = vmatprep.subr.mxu0 0.0
        %2421 = vmatpush1.msra.mxu0 0.0
        %2422 = vmatprep.subr.mxu0 0.0
        %2423 = vmatpush1.msra.mxu0 0.0
        %2424 = vmatprep.subr.mxu0 0.0
        %2425 = vmatpush1.msra.mxu0 0.0
        %2426 = vmatprep.subr.mxu0 0.0
        %2427 = vmatpush1.msra.mxu0 0.0
        %2428 = vmatprep.subr.mxu0 0.0
        %2429 = vmatpush1.msra.mxu0 0.0
        %2430 = vmatprep.subr.mxu0 0.0
        %2431 = vmatpush1.msra.mxu0 0.0
        %2432 = vmatprep.subr.mxu0 0.0
        %2433 = vmatpush1.msra.mxu0 0.0
        %2434 = vmatprep.subr.mxu0 0.0
        %2435 = vmatpush1.msra.mxu0 0.0
        %2436 = vmatprep.subr.mxu0 0.0
        %2437 = vmatpush1.msra.mxu0 0.0
        %2438 = vmatprep.subr.mxu0 0.0
        %2439 = vmatpush1.msra.mxu0 0.0
        %2440 = vmatprep.subr.mxu0 0.0
        %2441 = vmatpush1.msra.mxu0 0.0
        %2442 = vmatprep.subr.mxu0 0.0
        %2443 = vmatpush1.msra.mxu0 0.0
        %2444 = vmatprep.subr.mxu0 0.0
        %2445 = vmatpush1.msra.mxu0 0.0
        %2446 = vmatprep.mubr.f32.mxu0 0.0
        %2447 = vmatmul.mubr.f32.gmra.mrb[0].mxu0 %v2380
        %v2448 = vpop.f32.mrb[0].mxu0
        %v2449 = vadd.f32 %v2377, %v2448
        %v2450 = vpop.f32.mrb[0].mxu0
        %2451 = vdwg.mxu0
        %2453 = vrot.lane.b32.xlu0 %v2280, 127
        %v2454 = vpop.permute.xlu0 %2453
        %v2456 = vmax.f32 %v2280, %v2454
        %v2457 = vsub.f32 %v2280, %v2456
        %v2458 = vmul.f32 %v2457, 1.442695
        %v2459 = vpow.pop %v2458
        %2461 = vrot.lane.b32.xlu0 %v2456, 1
        %v2462 = vpop.permute.xlu0 %2461
        %v2464 = vsub.f32 %v2280, %v2462
        %v2465 = vmul.f32 %v2464, 1.442695
        %v2466 = vpow.pop %v2465
        %2467 = vrot.lane.b32.xlu0 %v2280, 1
        %v2468 = vpop.permute.xlu0 %2467
        %v2470 = vmul.f32 %v2459, %v2468
        %2472 = vrot.lane.b32.xlu0 %v2449, 66
        %v2473 = vpop.permute.xlu0 %2472
        %v2475 = vmul.f32 %v2466, %v2473
        %2477 = vrot.lane.b32.xlu0 %v2475, 127
        %v2478 = vpop.permute.xlu0 %2477
        %v2480 = vadd.f32 %v2470, %v2478
        %2482 = vrot.lane.b32.xlu0 %v2466, 127
        %v2483 = vpop.permute.xlu0 %2482
        %v2485 = vadd.f32 %v2459, %v2483
        %v2486 = vrcp.pop %v2485
        %v2487 = vmul.f32 %v2480, %v2486
        %2489 = vrot.lane.b32.xlu0 %v2487, 63
        %v2490 = vpop.permute.xlu0 %2489
        %vm2491 = vcmask 7168
        %v2493 = vsel %vm2491, 1.0, 0
        %v2495 = vsel %vm2491, %v2490, 0
        %2497 = vmatprep.subr.mxu0 0.0
        %2498 = vmatpush1.xpose.msra.mxu0 %v2495
        %2499 = vmatprep.subr.mxu0 0.0
        %2500 = vmatpush1.xpose.msra.mxu0 0.0
        %2501 = vmatprep.subr.mxu0 0.0
        %2502 = vmatpush1.xpose.msra.mxu0 0.0
        %2503 = vmatprep.subr.mxu0 0.0
        %2504 = vmatpush1.xpose.msra.mxu0 0.0
        %2505 = vmatprep.subr.mxu0 0.0
        %2506 = vmatpush1.xpose.msra.mxu0 0.0
        %2507 = vmatprep.subr.mxu0 0.0
        %2508 = vmatpush1.xpose.msra.mxu0 0.0
        %2509 = vmatprep.subr.mxu0 0.0
        %2510 = vmatpush1.xpose.msra.mxu0 0.0
        %2511 = vmatprep.subr.mxu0 0.0
        %2512 = vmatpush1.xpose.msra.mxu0 0.0
        %2513 = vmatprep.subr.mxu0 0.0
        %2514 = vmatpush1.xpose.msra.mxu0 0.0
        %2515 = vmatprep.subr.mxu0 0.0
        %2516 = vmatpush1.xpose.msra.mxu0 0.0
        %2517 = vmatprep.subr.mxu0 0.0
        %2518 = vmatpush1.xpose.msra.mxu0 0.0
        %2519 = vmatprep.subr.mxu0 0.0
        %2520 = vmatpush1.xpose.msra.mxu0 0.0
        %2521 = vmatprep.subr.mxu0 0.0
        %2522 = vmatpush1.xpose.msra.mxu0 0.0
        %2523 = vmatprep.subr.mxu0 0.0
        %2524 = vmatpush1.xpose.msra.mxu0 0.0
        %2525 = vmatprep.subr.mxu0 0.0
        %2526 = vmatpush1.xpose.msra.mxu0 0.0
        %2527 = vmatprep.subr.mxu0 0.0
        %2528 = vmatpush1.xpose.msra.mxu0 0.0
        %2529 = vmatprep.subr.mxu0 0.0
        %2530 = vmatpush1.xpose.msra.mxu0 0.0
        %2531 = vmatprep.subr.mxu0 0.0
        %2532 = vmatpush1.xpose.msra.mxu0 0.0
        %2533 = vmatprep.subr.mxu0 0.0
        %2534 = vmatpush1.xpose.msra.mxu0 0.0
        %2535 = vmatprep.subr.mxu0 0.0
        %2536 = vmatpush1.xpose.msra.mxu0 0.0
        %2537 = vmatprep.subr.mxu0 0.0
        %2538 = vmatpush1.xpose.msra.mxu0 0.0
        %2539 = vmatprep.subr.mxu0 0.0
        %2540 = vmatpush1.xpose.msra.mxu0 0.0
        %2541 = vmatprep.subr.mxu0 0.0
        %2542 = vmatpush1.xpose.msra.mxu0 0.0
        %2543 = vmatprep.subr.mxu0 0.0
        %2544 = vmatpush1.xpose.msra.mxu0 0.0
        %2545 = vmatprep.subr.mxu0 0.0
        %2546 = vmatpush1.xpose.msra.mxu0 0.0
        %2547 = vmatprep.subr.mxu0 0.0
        %2548 = vmatpush1.xpose.msra.mxu0 0.0
        %2549 = vmatprep.subr.mxu0 0.0
        %2550 = vmatpush1.xpose.msra.mxu0 0.0
        %2551 = vmatprep.subr.mxu0 0.0
        %2552 = vmatpush1.xpose.msra.mxu0 0.0
        %2553 = vmatprep.subr.mxu0 0.0
        %2554 = vmatpush1.xpose.msra.mxu0 0.0
        %2555 = vmatprep.subr.mxu0 0.0
        %2556 = vmatpush1.xpose.msra.mxu0 0.0
        %2557 = vmatprep.subr.mxu0 0.0
        %2558 = vmatpush1.xpose.msra.mxu0 0.0
        %2559 = vmatprep.subr.mxu0 0.0
        %2560 = vmatpush1.xpose.msra.mxu0 0.0
        %2561 = vmatprep.mubr.f32.mxu0 0.0
        %2562 = vmatmul.mubr.f32.gmra.mrb[0].mxu0 %v2493
        %v2563 = vpop.f32.mrb[0].mxu0
        %v2564 = vadd.f32 0.0, %v2563
        %v2565 = vpop.f32.mrb[0].mxu0
        %2566 = vdwg.mxu0
        %vm2567 = vcmask 57344
        %2568 = vst.msk [vmem:[%s493] sm:$0x1] %vm2567, %v2564
        %s2569 = sand.u32 %s326, 1
        %s2570 = scalar_lea.sflag [#allocation7], %s2569
        %s2571 = sand.u32 %s326, 1
        %s2572 = scalar_lea.vmem [#allocation10], %s2571
        // Predicated region
        $region81: #{tpu_custom_call.1} parent=71 // pred_check
          %p2573 = pneg %p336
        $region82: #{tpu_custom_call.1} parent=71 // pred_check_branch
          %2575 = sbr.rel (%p2573) target = $region84
        $region83: #{tpu_custom_call.1} parent=71 // pred_region
          %s2577 = ssub.s32 16, 16
          %2578 = vsyncadd %s2570, %s2577
          %s2579 = smul.addr %s35, 16
          %s2580 = scalar_lea.hbm %s13, %s2579
          %s2582 = sshll.u32 %s2572, 4
          %s2583 = int_to_ptr.vmem [resolvable:$true] %s2582
          %2585 = dma.vmem_to_hbm [thread:$0]  %s2583, 16, %s2580, %s2570
        $region84: #{tpu_custom_call.1} parent=71 // pred_fallthru
          _
      $region72: #{tpu_custom_call.1} parent=5 // pred_fallthru
        _
      %p2586 = scmp.le.s32.totalorder 2, %s30
      // Predicated region
      $region85: #{tpu_custom_call.1} parent=5 // pred_check
        %p2587 = pneg %p2586
      $region86: #{tpu_custom_call.1} parent=5 // pred_check_branch
        %2589 = sbr.rel (%p2587) target = $region88
      $region87: #{tpu_custom_call.1} parent=5 // pred_region
        %s2590 = ssub.s32 %s30, 2
        // Predicated region
        $region89: #{tpu_custom_call.1} parent=87 // pred_check
          %p2591 = pneg %p342
        $region90: #{tpu_custom_call.1} parent=87 // pred_check_branch
          %2593 = sbr.rel (%p2591) target = $region92
        $region91: #{tpu_custom_call.1} parent=87 // pred_region
          %s2594 = sand.u32 %s327, 1
          %s2595 = scalar_lea.sflag [#allocation7], %s2594
          %s2596 = sand.u32 %s327, 1
          %s2597 = scalar_lea.vmem [#allocation10], %s2596
          %2598 = dma.done %s2595, 16
        $region92: #{tpu_custom_call.1} parent=87 // pred_fallthru
          _
      $region88: #{tpu_custom_call.1} parent=5 // pred_fallthru
        _
    $region6: #{tpu_custom_call.1} parent=1 // loop_footer
      %s34 = sadd.s32 1, %s30
    $region7: #{tpu_custom_call.1} parent=1 // loop_footer_branch
      %29 = sbr.rel target = $region3
    $region8: #{tpu_custom_call.1} parent=1 // loop_exit
      _
    %2599 = vsyncpa [#allocation6], 1
    %s2600 = scalar_lea.sflag [#allocation6], 1
    %2601 = vsyncpa %s2600, 1
    %2602 = vsyncpa [#allocation9], 1
    %s2603 = scalar_lea.sflag [#allocation9], 1
    %2604 = vsyncpa %s2603, 1
    %2605 = vsyncpa [#allocation7], 1
    %s2606 = scalar_lea.sflag [#allocation7], 1
    %2607 = vsyncpa %s2606, 1

</llo_original>
